<compile_context>
chip_gen: v7x
topology: tpu7x:2x2x1
jax: 0.10.0
libtpu: 0.0.40
codegen_flags: <defaults>
</compile_context>

<pallas_src>
import jax
import jax.numpy as jnp
from jax.experimental import pallas as pl
from jax.experimental.pallas import tpu as pltpu

HIDDEN = 32          # hidden_size
SEQ = 8              # seq_len
INTEREST = 4         # interest_num
ROUTING = 3          # routing_times
BATCH = 2

KH = INTEREST * HIDDEN          # 128 -> exactly one vreg lane width


def _round_up(x, m):
    return (x + m - 1) // m * m


def _choose_bt(b, max_bt=64):
    """Batch block: multiple of 8, <= max_bt, and >= 2 grid steps when B > 8 (v7x TCs)."""
    max_bt = max(8, _round_up(max_bt, 8))
    b8 = _round_up(max(b, 1), 8)
    if b8 <= 8:
        return 8
    half = _round_up((b8 + 1) // 2, 8)
    return min(max_bt, half)


def prepare_capsule_params(w):
    """One-time (parameter-load time) preparation of all kernel constants.

    w: (1, S, K*H, H) bilinear parameter.
    Returns:
      w_c : (S, H, K*H)   compact per-position projection matrices (no block-diag zeros)
      bmat: (K*H, K*H)    block-diagonal ones -> per-interest segmented lane reduce on MXU
      e3  : (S, S, K*H)   per-position mask-expansion matrices (MXU lane broadcast of mask)
    """
    w_c = jnp.transpose(w[0], (0, 2, 1)).astype(jnp.float32)              # (S, H, K*H)
    seg = jnp.arange(KH, dtype=jnp.int32) // HIDDEN
    bmat = (seg[:, None] == seg[None, :]).astype(jnp.float32)             # (128, 128)
    e3 = jnp.tile(jnp.eye(SEQ, dtype=jnp.float32)[:, :, None], (1, 1, KH))  # (S, S, K*H)
    return w_c, bmat, e3


def capsule_kernel(item_ref, mask_ref, w_ref, bmat_ref, e3_ref, out_ref,
                   hat_ref, hatm_ref, cw_ref):
    # item_ref: (S, bt, H)   mask_ref: (bt, S)   w_ref: (S, H, K*H)
    # bmat_ref: (K*H, K*H)   e3_ref: (S, S, K*H) out_ref: (bt, K*H)
    # scratch:  hat_ref / hatm_ref / cw_ref : (S, bt, K*H) f32 in VMEM
    bt = mask_ref.shape[0]
    maskbin = (mask_ref[...] != 0.0).astype(jnp.float32)                  # (bt, S)
    bmat = bmat_ref[...]                                                  # (128, 128)

    # scratch persists across grid steps -> re-init routing weights every block
    cw_ref[...] = jnp.zeros((SEQ, bt, KH), jnp.float32)

    # ---- projection phase: 8 small MXU matmuls straight into VMEM scratch -------------
    for s in range(SEQ):
        hat_s = jnp.dot(item_ref[s], w_ref[s],
                        preferred_element_type=jnp.float32)               # (bt, 128)
        keep_s = jnp.dot(maskbin, e3_ref[s],
                         preferred_element_type=jnp.float32)              # (bt, 128) in {0,1}
        hat_ref[s] = hat_s                                                # unmasked (delta)
        hatm_ref[s] = hat_s * keep_s                                      # masked (cap accum)

    # ---- dynamic routing, vectorized over the batch block ------------------------------
    cap = jnp.zeros((bt, KH), jnp.float32)
    for i in range(ROUTING):
        # softmax over the seq axis; values are replicated within each interest's 32 lanes
        m = cw_ref[0]
        for s in range(1, SEQ):
            m = jnp.maximum(m, cw_ref[s])
        den = jnp.zeros((bt, KH), jnp.float32)
        capu = jnp.zeros((bt, KH), jnp.float32)
        for s in range(SEQ):
            e = jnp.exp(cw_ref[s] - m)
            den = den + e
            capu = capu + e * hatm_ref[s]          # masking already folded into hatm
        cap = capu * pl.reciprocal(den, approx=True)

        # squash: per-interest norm via MXU segmented reduce, rsqrt on the EUP
        cn = jnp.dot(cap * cap, bmat, preferred_element_type=jnp.float32)
        cap = cap * (cn * jax.lax.rsqrt(cn + 1e-9) / (1.0 + cn))

        if i < 2:   # matches the hard-coded "if i < 2" gate in the PyTorch loop
            for s in range(SEQ):
                # delta uses the UNMASKED hat (masked positions feed next softmax denom)
                delta = jnp.dot(hat_ref[s] * cap, bmat,
                                preferred_element_type=jnp.float32)
                cw_ref[s] = cw_ref[s] + delta

    out_ref[...] = cap.astype(out_ref.dtype)       # (bt, 128) full-lane store


def capsule_network(item_eb, mask, params, max_block_b=64):
    """item_eb: (B, S, H); mask: (B, S); params from prepare_capsule_params(w)."""
    w_c, bmat, e3 = params
    B, S, H = item_eb.shape
    assert (S, H) == (SEQ, HIDDEN)
    bt = _choose_bt(B, max_block_b)
    b_pad = _round_up(B, bt)

    item_t = jnp.transpose(item_eb.astype(jnp.float32), (1, 0, 2))        # (S, B, H)
    maskf = mask.astype(jnp.float32)
    if b_pad != B:
        item_t = jnp.pad(item_t, ((0, 0), (0, b_pad - B), (0, 0)))
        maskf = jnp.pad(maskf, ((0, b_pad - B), (0, 0)))                  # padded rows masked

    out = pl.pallas_call(
        capsule_kernel,
        out_shape=jax.ShapeDtypeStruct((b_pad, KH), jnp.float32),
        grid_spec=pltpu.PrefetchScalarGridSpec(
            num_scalar_prefetch=0,
            grid=(b_pad // bt,),
            in_specs=[
                pl.BlockSpec((SEQ, bt, HIDDEN), lambda b: (0, b, 0)),     # item (S, bt, H)
                pl.BlockSpec((bt, SEQ), lambda b: (b, 0)),                # mask (bt, S)
                pl.BlockSpec((SEQ, HIDDEN, KH), lambda b: (0, 0, 0)),     # compact weight
                pl.BlockSpec((KH, KH), lambda b: (0, 0)),                 # bmat (const)
                pl.BlockSpec((SEQ, SEQ, KH), lambda b: (0, 0, 0)),        # e3 (const)
            ],
            out_specs=pl.BlockSpec((bt, KH), lambda b: (b, 0)),           # (bt, 128) lane-dense
            scratch_shapes=[
                pltpu.VMEM((SEQ, bt, KH), jnp.float32),                   # hat   (unmasked)
                pltpu.VMEM((SEQ, bt, KH), jnp.float32),                   # hat_masked
                pltpu.VMEM((SEQ, bt, KH), jnp.float32),                   # capsule weights
            ],
        ),
        compiler_params=pltpu.CompilerParams(
            dimension_semantics=("parallel",)),     # independent batch blocks (2 TCs on v7x)
    )(item_t, maskf, w_c, bmat, e3)

    return out[:B].reshape(B, INTEREST, HIDDEN)


def capsule_network_ref(item_eb, mask, w):
    """Pure-JAX reference mirroring the PyTorch forward (bilinear_type=2)."""
    B, S, H = item_eb.shape
    K = INTEREST
    u = item_eb[:, :, None, :]                                   # (B, S, 1, H)
    hat = jnp.sum(w[:, :S, :, :] * u, axis=3)                    # (B, S, K*H)
    hat = hat.reshape(B, S, K, H).transpose(0, 2, 1, 3)          # (B, K, S, H)
    cw = jnp.zeros((B, K, S), jnp.float32)
    cap = None
    for i in range(ROUTING):
        amask = jnp.broadcast_to(mask[:, None, :], (B, K, S))
        sw = jax.nn.softmax(cw, axis=-1)
        sw = jnp.where(amask == 0, 0.0, sw)[:, :, None, :]       # (B, K, 1, S)
        cap = jnp.matmul(sw, hat)                                # (B, K, 1, H)
        cn = jnp.sum(cap * cap, axis=-1, keepdims=True)
        sf = cn / (1 + cn) / jnp.sqrt(cn + 1e-9)
        cap = sf * cap
        if i < 2:
            delta = jnp.matmul(hat, jnp.swapaxes(cap, 2, 3)).reshape(B, K, S)
            cw = cw + delta
    return cap.reshape(B, K, H)


if __name__ == "__main__":
    key = jax.random.PRNGKey(0)
    k1, k2 = jax.random.split(key, 2)

    item_eb = jax.random.normal(k1, (BATCH, SEQ, HIDDEN), dtype=jnp.float32)
    # bilinear weight parameter (1, S, K*H, H)
    w = 0.02 * jax.random.normal(k2, (1, SEQ, INTEREST * HIDDEN, HIDDEN),
                                 dtype=jnp.float32)
    # mask: batch 0 fully valid, batch 1 has the last 3 positions padded
    mask = jnp.ones((BATCH, SEQ), dtype=jnp.float32)
    mask = mask.at[1, SEQ - 3:].set(0.0)

    # one-time parameter rearrangement (lives at param-load time in a real model)
    params = prepare_capsule_params(w)

    out = jax.block_until_ready(capsule_network(item_eb, mask, params))

    ref = capsule_network_ref(item_eb, mask, w)
    assert out.shape == (BATCH, INTEREST, HIDDEN)
    # tolerance slightly relaxed: softmax denominator uses the approximate EUP reciprocal
    assert jnp.allclose(out, ref, atol=5e-3, rtol=5e-3), "mismatch vs reference"

    print("KERNEL_OK")
</pallas_src>

<mosaic_0001>
module attributes {stable_mosaic.version = 11 : i64} {
  func.func @capsule_kernel(%arg0: i32, %arg1: memref<8x8x32xf32, #tpu.memory_space<vmem>>, %arg2: memref<8x8xf32, #tpu.memory_space<vmem>>, %arg3: memref<8x32x128xf32, #tpu.memory_space<vmem>>, %arg4: memref<128x128xf32, #tpu.memory_space<vmem>>, %arg5: memref<8x8x128xf32, #tpu.memory_space<vmem>>, %arg6: memref<8x128xf32, #tpu.memory_space<vmem>>, %arg7: memref<8x8x128xf32, #tpu.memory_space<vmem>>, %arg8: memref<8x8x128xf32, #tpu.memory_space<vmem>>, %arg9: memref<8x8x128xf32, #tpu.memory_space<vmem>>) attributes {dimension_semantics = [#tpu.dimension_semantics<parallel>], iteration_bounds = array<i64: 1>, scalar_prefetch = 0 : i64, scratch_operands = 3 : i64, tpu.core_type = #tpu.core_type<tc>, window_params = [{transform_indices = @transform_0, window_bounds = array<i64: 8, 8, 32>}, {transform_indices = @transform_1, window_bounds = array<i64: 8, 8>}, {pipeline_mode = #tpu.pipeline_mode<synchronous>, transform_indices = @transform_2, window_bounds = array<i64: 8, 32, 128>}, {pipeline_mode = #tpu.pipeline_mode<synchronous>, transform_indices = @transform_3, window_bounds = array<i64: 128, 128>}, {pipeline_mode = #tpu.pipeline_mode<synchronous>, transform_indices = @transform_4, window_bounds = array<i64: 8, 8, 128>}, {transform_indices = @transform_5, window_bounds = array<i64: 8, 128>}]} {
    %c0 = arith.constant 0 : index
    %c0_0 = arith.constant 0 : index
    %0 = vector.load %arg2[%c0, %c0_0] : memref<8x8xf32, #tpu.memory_space<vmem>>, vector<8x8xf32>
    %cst = arith.constant 0.000000e+00 : f32
    %1 = vector.broadcast %cst : f32 to vector<8x8xf32>
    %2 = arith.cmpf one, %0, %1 : vector<8x8xf32>
    %3 = arith.extui %2 : vector<8x8xi1> to vector<8x8xi32>
    %4 = arith.sitofp %3 : vector<8x8xi32> to vector<8x8xf32>
    %c0_1 = arith.constant 0 : index
    %c0_2 = arith.constant 0 : index
    %5 = vector.load %arg4[%c0_1, %c0_2] : memref<128x128xf32, #tpu.memory_space<vmem>>, vector<128x128xf32>
    %cst_3 = arith.constant 0.000000e+00 : f32
    %6 = vector.broadcast %cst_3 : f32 to vector<8x8x128xf32>
    %c0_4 = arith.constant 0 : index
    %c0_5 = arith.constant 0 : index
    %c0_6 = arith.constant 0 : index
    %7 = vector.load %arg9[%c0_4, %c0_5, %c0_6] : memref<8x8x128xf32, #tpu.memory_space<vmem>>, vector<8x8x128xf32>
    tpu.vector_store %arg9[%c0_4, %c0_5, %c0_6], %6 {strides = array<i32>} : memref<8x8x128xf32, #tpu.memory_space<vmem>>, vector<8x8x128xf32>,
    %c0_7 = arith.constant 0 : index
    %c0_8 = arith.constant 0 : index
    %c0_9 = arith.constant 0 : index
    %8 = vector.load %arg1[%c0_7, %c0_8, %c0_9] : memref<8x8x32xf32, #tpu.memory_space<vmem>>, vector<1x8x32xf32>
    %9 = vector.shape_cast %8 : vector<1x8x32xf32> to vector<8x32xf32>
    %c0_10 = arith.constant 0 : index
    %c0_11 = arith.constant 0 : index
    %c0_12 = arith.constant 0 : index
    %10 = vector.load %arg3[%c0_10, %c0_11, %c0_12] : memref<8x32x128xf32, #tpu.memory_space<vmem>>, vector<1x32x128xf32>
    %11 = vector.shape_cast %10 : vector<1x32x128xf32> to vector<32x128xf32>
    %cst_13 = arith.constant dense<0.000000e+00> : vector<8x128xf32>
    %12 = tpu.matmul %9, %11, %cst_13 {dimension_numbers = #tpu.dot_dimension_numbers<[1], [0], [0], [1], [0, 0, 1, 1], [], []>} : vector<8x32xf32>, vector<32x128xf32>, vector<8x128xf32> -> vector<8x128xf32>
    %c0_14 = arith.constant 0 : index
    %c0_15 = arith.constant 0 : index
    %c0_16 = arith.constant 0 : index
    %13 = vector.load %arg5[%c0_14, %c0_15, %c0_16] : memref<8x8x128xf32, #tpu.memory_space<vmem>>, vector<1x8x128xf32>
    %14 = vector.shape_cast %13 : vector<1x8x128xf32> to vector<8x128xf32>
    %cst_17 = arith.constant dense<0.000000e+00> : vector<8x128xf32>
    %15 = tpu.matmul %4, %14, %cst_17 {dimension_numbers = #tpu.dot_dimension_numbers<[1], [0], [0], [1], [0, 0, 1, 1], [], []>} : vector<8x8xf32>, vector<8x128xf32>, vector<8x128xf32> -> vector<8x128xf32>
    %c0_18 = arith.constant 0 : index
    %c0_19 = arith.constant 0 : index
    %c0_20 = arith.constant 0 : index
    %16 = vector.load %arg7[%c0_18, %c0_19, %c0_20] : memref<8x8x128xf32, #tpu.memory_space<vmem>>, vector<1x8x128xf32>
    %17 = vector.shape_cast %16 : vector<1x8x128xf32> to vector<8x128xf32>
    %18 = vector.shape_cast %12 : vector<8x128xf32> to vector<1x8x128xf32>
    tpu.vector_store %arg7[%c0_18, %c0_19, %c0_20], %18 {strides = array<i32>} : memref<8x8x128xf32, #tpu.memory_space<vmem>>, vector<1x8x128xf32>,
    %19 = arith.mulf %12, %15 : vector<8x128xf32>
    %c0_21 = arith.constant 0 : index
    %c0_22 = arith.constant 0 : index
    %c0_23 = arith.constant 0 : index
    %20 = vector.load %arg8[%c0_21, %c0_22, %c0_23] : memref<8x8x128xf32, #tpu.memory_space<vmem>>, vector<1x8x128xf32>
    %21 = vector.shape_cast %20 : vector<1x8x128xf32> to vector<8x128xf32>
    %22 = vector.shape_cast %19 : vector<8x128xf32> to vector<1x8x128xf32>
    tpu.vector_store %arg8[%c0_21, %c0_22, %c0_23], %22 {strides = array<i32>} : memref<8x8x128xf32, #tpu.memory_space<vmem>>, vector<1x8x128xf32>,
    %c1 = arith.constant 1 : index
    %c0_24 = arith.constant 0 : index
    %c0_25 = arith.constant 0 : index
    %23 = vector.load %arg1[%c1, %c0_24, %c0_25] : memref<8x8x32xf32, #tpu.memory_space<vmem>>, vector<1x8x32xf32>
    %24 = vector.shape_cast %23 : vector<1x8x32xf32> to vector<8x32xf32>
    %c1_26 = arith.constant 1 : index
    %c0_27 = arith.constant 0 : index
    %c0_28 = arith.constant 0 : index
    %25 = vector.load %arg3[%c1_26, %c0_27, %c0_28] : memref<8x32x128xf32, #tpu.memory_space<vmem>>, vector<1x32x128xf32>
    %26 = vector.shape_cast %25 : vector<1x32x128xf32> to vector<32x128xf32>
    %cst_29 = arith.constant dense<0.000000e+00> : vector<8x128xf32>
    %27 = tpu.matmul %24, %26, %cst_29 {dimension_numbers = #tpu.dot_dimension_numbers<[1], [0], [0], [1], [0, 0, 1, 1], [], []>} : vector<8x32xf32>, vector<32x128xf32>, vector<8x128xf32> -> vector<8x128xf32>
    %c1_30 = arith.constant 1 : index
    %c0_31 = arith.constant 0 : index
    %c0_32 = arith.constant 0 : index
    %28 = vector.load %arg5[%c1_30, %c0_31, %c0_32] : memref<8x8x128xf32, #tpu.memory_space<vmem>>, vector<1x8x128xf32>
    %29 = vector.shape_cast %28 : vector<1x8x128xf32> to vector<8x128xf32>
    %cst_33 = arith.constant dense<0.000000e+00> : vector<8x128xf32>
    %30 = tpu.matmul %4, %29, %cst_33 {dimension_numbers = #tpu.dot_dimension_numbers<[1], [0], [0], [1], [0, 0, 1, 1], [], []>} : vector<8x8xf32>, vector<8x128xf32>, vector<8x128xf32> -> vector<8x128xf32>
    %c1_34 = arith.constant 1 : index
    %c0_35 = arith.constant 0 : index
    %c0_36 = arith.constant 0 : index
    %31 = vector.load %arg7[%c1_34, %c0_35, %c0_36] : memref<8x8x128xf32, #tpu.memory_space<vmem>>, vector<1x8x128xf32>
    %32 = vector.shape_cast %31 : vector<1x8x128xf32> to vector<8x128xf32>
    %33 = vector.shape_cast %27 : vector<8x128xf32> to vector<1x8x128xf32>
    tpu.vector_store %arg7[%c1_34, %c0_35, %c0_36], %33 {strides = array<i32>} : memref<8x8x128xf32, #tpu.memory_space<vmem>>, vector<1x8x128xf32>,
    %34 = arith.mulf %27, %30 : vector<8x128xf32>
    %c1_37 = arith.constant 1 : index
    %c0_38 = arith.constant 0 : index
    %c0_39 = arith.constant 0 : index
    %35 = vector.load %arg8[%c1_37, %c0_38, %c0_39] : memref<8x8x128xf32, #tpu.memory_space<vmem>>, vector<1x8x128xf32>
    %36 = vector.shape_cast %35 : vector<1x8x128xf32> to vector<8x128xf32>
    %37 = vector.shape_cast %34 : vector<8x128xf32> to vector<1x8x128xf32>
    tpu.vector_store %arg8[%c1_37, %c0_38, %c0_39], %37 {strides = array<i32>} : memref<8x8x128xf32, #tpu.memory_space<vmem>>, vector<1x8x128xf32>,
    %c2 = arith.constant 2 : index
    %c0_40 = arith.constant 0 : index
    %c0_41 = arith.constant 0 : index
    %38 = vector.load %arg1[%c2, %c0_40, %c0_41] : memref<8x8x32xf32, #tpu.memory_space<vmem>>, vector<1x8x32xf32>
    %39 = vector.shape_cast %38 : vector<1x8x32xf32> to vector<8x32xf32>
    %c2_42 = arith.constant 2 : index
    %c0_43 = arith.constant 0 : index
    %c0_44 = arith.constant 0 : index
    %40 = vector.load %arg3[%c2_42, %c0_43, %c0_44] : memref<8x32x128xf32, #tpu.memory_space<vmem>>, vector<1x32x128xf32>
    %41 = vector.shape_cast %40 : vector<1x32x128xf32> to vector<32x128xf32>
    %cst_45 = arith.constant dense<0.000000e+00> : vector<8x128xf32>
    %42 = tpu.matmul %39, %41, %cst_45 {dimension_numbers = #tpu.dot_dimension_numbers<[1], [0], [0], [1], [0, 0, 1, 1], [], []>} : vector<8x32xf32>, vector<32x128xf32>, vector<8x128xf32> -> vector<8x128xf32>
    %c2_46 = arith.constant 2 : index
    %c0_47 = arith.constant 0 : index
    %c0_48 = arith.constant 0 : index
    %43 = vector.load %arg5[%c2_46, %c0_47, %c0_48] : memref<8x8x128xf32, #tpu.memory_space<vmem>>, vector<1x8x128xf32>
    %44 = vector.shape_cast %43 : vector<1x8x128xf32> to vector<8x128xf32>
    %cst_49 = arith.constant dense<0.000000e+00> : vector<8x128xf32>
    %45 = tpu.matmul %4, %44, %cst_49 {dimension_numbers = #tpu.dot_dimension_numbers<[1], [0], [0], [1], [0, 0, 1, 1], [], []>} : vector<8x8xf32>, vector<8x128xf32>, vector<8x128xf32> -> vector<8x128xf32>
    %c2_50 = arith.constant 2 : index
    %c0_51 = arith.constant 0 : index
    %c0_52 = arith.constant 0 : index
    %46 = vector.load %arg7[%c2_50, %c0_51, %c0_52] : memref<8x8x128xf32, #tpu.memory_space<vmem>>, vector<1x8x128xf32>
    %47 = vector.shape_cast %46 : vector<1x8x128xf32> to vector<8x128xf32>
    %48 = vector.shape_cast %42 : vector<8x128xf32> to vector<1x8x128xf32>
    tpu.vector_store %arg7[%c2_50, %c0_51, %c0_52], %48 {strides = array<i32>} : memref<8x8x128xf32, #tpu.memory_space<vmem>>, vector<1x8x128xf32>,
    %49 = arith.mulf %42, %45 : vector<8x128xf32>
    %c2_53 = arith.constant 2 : index
    %c0_54 = arith.constant 0 : index
    %c0_55 = arith.constant 0 : index
    %50 = vector.load %arg8[%c2_53, %c0_54, %c0_55] : memref<8x8x128xf32, #tpu.memory_space<vmem>>, vector<1x8x128xf32>
    %51 = vector.shape_cast %50 : vector<1x8x128xf32> to vector<8x128xf32>
    %52 = vector.shape_cast %49 : vector<8x128xf32> to vector<1x8x128xf32>
    tpu.vector_store %arg8[%c2_53, %c0_54, %c0_55], %52 {strides = array<i32>} : memref<8x8x128xf32, #tpu.memory_space<vmem>>, vector<1x8x128xf32>,
    %c3 = arith.constant 3 : index
    %c0_56 = arith.constant 0 : index
    %c0_57 = arith.constant 0 : index
    %53 = vector.load %arg1[%c3, %c0_56, %c0_57] : memref<8x8x32xf32, #tpu.memory_space<vmem>>, vector<1x8x32xf32>
    %54 = vector.shape_cast %53 : vector<1x8x32xf32> to vector<8x32xf32>
    %c3_58 = arith.constant 3 : index
    %c0_59 = arith.constant 0 : index
    %c0_60 = arith.constant 0 : index
    %55 = vector.load %arg3[%c3_58, %c0_59, %c0_60] : memref<8x32x128xf32, #tpu.memory_space<vmem>>, vector<1x32x128xf32>
    %56 = vector.shape_cast %55 : vector<1x32x128xf32> to vector<32x128xf32>
    %cst_61 = arith.constant dense<0.000000e+00> : vector<8x128xf32>
    %57 = tpu.matmul %54, %56, %cst_61 {dimension_numbers = #tpu.dot_dimension_numbers<[1], [0], [0], [1], [0, 0, 1, 1], [], []>} : vector<8x32xf32>, vector<32x128xf32>, vector<8x128xf32> -> vector<8x128xf32>
    %c3_62 = arith.constant 3 : index
    %c0_63 = arith.constant 0 : index
    %c0_64 = arith.constant 0 : index
    %58 = vector.load %arg5[%c3_62, %c0_63, %c0_64] : memref<8x8x128xf32, #tpu.memory_space<vmem>>, vector<1x8x128xf32>
    %59 = vector.shape_cast %58 : vector<1x8x128xf32> to vector<8x128xf32>
    %cst_65 = arith.constant dense<0.000000e+00> : vector<8x128xf32>
    %60 = tpu.matmul %4, %59, %cst_65 {dimension_numbers = #tpu.dot_dimension_numbers<[1], [0], [0], [1], [0, 0, 1, 1], [], []>} : vector<8x8xf32>, vector<8x128xf32>, vector<8x128xf32> -> vector<8x128xf32>
    %c3_66 = arith.constant 3 : index
    %c0_67 = arith.constant 0 : index
    %c0_68 = arith.constant 0 : index
    %61 = vector.load %arg7[%c3_66, %c0_67, %c0_68] : memref<8x8x128xf32, #tpu.memory_space<vmem>>, vector<1x8x128xf32>
    %62 = vector.shape_cast %61 : vector<1x8x128xf32> to vector<8x128xf32>
    %63 = vector.shape_cast %57 : vector<8x128xf32> to vector<1x8x128xf32>
    tpu.vector_store %arg7[%c3_66, %c0_67, %c0_68], %63 {strides = array<i32>} : memref<8x8x128xf32, #tpu.memory_space<vmem>>, vector<1x8x128xf32>,
    %64 = arith.mulf %57, %60 : vector<8x128xf32>
    %c3_69 = arith.constant 3 : index
    %c0_70 = arith.constant 0 : index
    %c0_71 = arith.constant 0 : index
    %65 = vector.load %arg8[%c3_69, %c0_70, %c0_71] : memref<8x8x128xf32, #tpu.memory_space<vmem>>, vector<1x8x128xf32>
    %66 = vector.shape_cast %65 : vector<1x8x128xf32> to vector<8x128xf32>
    %67 = vector.shape_cast %64 : vector<8x128xf32> to vector<1x8x128xf32>
    tpu.vector_store %arg8[%c3_69, %c0_70, %c0_71], %67 {strides = array<i32>} : memref<8x8x128xf32, #tpu.memory_space<vmem>>, vector<1x8x128xf32>,
    %c4 = arith.constant 4 : index
    %c0_72 = arith.constant 0 : index
    %c0_73 = arith.constant 0 : index
    %68 = vector.load %arg1[%c4, %c0_72, %c0_73] : memref<8x8x32xf32, #tpu.memory_space<vmem>>, vector<1x8x32xf32>
    %69 = vector.shape_cast %68 : vector<1x8x32xf32> to vector<8x32xf32>
    %c4_74 = arith.constant 4 : index
    %c0_75 = arith.constant 0 : index
    %c0_76 = arith.constant 0 : index
    %70 = vector.load %arg3[%c4_74, %c0_75, %c0_76] : memref<8x32x128xf32, #tpu.memory_space<vmem>>, vector<1x32x128xf32>
    %71 = vector.shape_cast %70 : vector<1x32x128xf32> to vector<32x128xf32>
    %cst_77 = arith.constant dense<0.000000e+00> : vector<8x128xf32>
    %72 = tpu.matmul %69, %71, %cst_77 {dimension_numbers = #tpu.dot_dimension_numbers<[1], [0], [0], [1], [0, 0, 1, 1], [], []>} : vector<8x32xf32>, vector<32x128xf32>, vector<8x128xf32> -> vector<8x128xf32>
    %c4_78 = arith.constant 4 : index
    %c0_79 = arith.constant 0 : index
    %c0_80 = arith.constant 0 : index
    %73 = vector.load %arg5[%c4_78, %c0_79, %c0_80] : memref<8x8x128xf32, #tpu.memory_space<vmem>>, vector<1x8x128xf32>
    %74 = vector.shape_cast %73 : vector<1x8x128xf32> to vector<8x128xf32>
    %cst_81 = arith.constant dense<0.000000e+00> : vector<8x128xf32>
    %75 = tpu.matmul %4, %74, %cst_81 {dimension_numbers = #tpu.dot_dimension_numbers<[1], [0], [0], [1], [0, 0, 1, 1], [], []>} : vector<8x8xf32>, vector<8x128xf32>, vector<8x128xf32> -> vector<8x128xf32>
    %c4_82 = arith.constant 4 : index
    %c0_83 = arith.constant 0 : index
    %c0_84 = arith.constant 0 : index
    %76 = vector.load %arg7[%c4_82, %c0_83, %c0_84] : memref<8x8x128xf32, #tpu.memory_space<vmem>>, vector<1x8x128xf32>
    %77 = vector.shape_cast %76 : vector<1x8x128xf32> to vector<8x128xf32>
    %78 = vector.shape_cast %72 : vector<8x128xf32> to vector<1x8x128xf32>
    tpu.vector_store %arg7[%c4_82, %c0_83, %c0_84], %78 {strides = array<i32>} : memref<8x8x128xf32, #tpu.memory_space<vmem>>, vector<1x8x128xf32>,
    %79 = arith.mulf %72, %75 : vector<8x128xf32>
    %c4_85 = arith.constant 4 : index
    %c0_86 = arith.constant 0 : index
    %c0_87 = arith.constant 0 : index
    %80 = vector.load %arg8[%c4_85, %c0_86, %c0_87] : memref<8x8x128xf32, #tpu.memory_space<vmem>>, vector<1x8x128xf32>
    %81 = vector.shape_cast %80 : vector<1x8x128xf32> to vector<8x128xf32>
    %82 = vector.shape_cast %79 : vector<8x128xf32> to vector<1x8x128xf32>
    tpu.vector_store %arg8[%c4_85, %c0_86, %c0_87], %82 {strides = array<i32>} : memref<8x8x128xf32, #tpu.memory_space<vmem>>, vector<1x8x128xf32>,
    %c5 = arith.constant 5 : index
    %c0_88 = arith.constant 0 : index
    %c0_89 = arith.constant 0 : index
    %83 = vector.load %arg1[%c5, %c0_88, %c0_89] : memref<8x8x32xf32, #tpu.memory_space<vmem>>, vector<1x8x32xf32>
    %84 = vector.shape_cast %83 : vector<1x8x32xf32> to vector<8x32xf32>
    %c5_90 = arith.constant 5 : index
    %c0_91 = arith.constant 0 : index
    %c0_92 = arith.constant 0 : index
    %85 = vector.load %arg3[%c5_90, %c0_91, %c0_92] : memref<8x32x128xf32, #tpu.memory_space<vmem>>, vector<1x32x128xf32>
    %86 = vector.shape_cast %85 : vector<1x32x128xf32> to vector<32x128xf32>
    %cst_93 = arith.constant dense<0.000000e+00> : vector<8x128xf32>
    %87 = tpu.matmul %84, %86, %cst_93 {dimension_numbers = #tpu.dot_dimension_numbers<[1], [0], [0], [1], [0, 0, 1, 1], [], []>} : vector<8x32xf32>, vector<32x128xf32>, vector<8x128xf32> -> vector<8x128xf32>
    %c5_94 = arith.constant 5 : index
    %c0_95 = arith.constant 0 : index
    %c0_96 = arith.constant 0 : index
    %88 = vector.load %arg5[%c5_94, %c0_95, %c0_96] : memref<8x8x128xf32, #tpu.memory_space<vmem>>, vector<1x8x128xf32>
    %89 = vector.shape_cast %88 : vector<1x8x128xf32> to vector<8x128xf32>
    %cst_97 = arith.constant dense<0.000000e+00> : vector<8x128xf32>
    %90 = tpu.matmul %4, %89, %cst_97 {dimension_numbers = #tpu.dot_dimension_numbers<[1], [0], [0], [1], [0, 0, 1, 1], [], []>} : vector<8x8xf32>, vector<8x128xf32>, vector<8x128xf32> -> vector<8x128xf32>
    %c5_98 = arith.constant 5 : index
    %c0_99 = arith.constant 0 : index
    %c0_100 = arith.constant 0 : index
    %91 = vector.load %arg7[%c5_98, %c0_99, %c0_100] : memref<8x8x128xf32, #tpu.memory_space<vmem>>, vector<1x8x128xf32>
    %92 = vector.shape_cast %91 : vector<1x8x128xf32> to vector<8x128xf32>
    %93 = vector.shape_cast %87 : vector<8x128xf32> to vector<1x8x128xf32>
    tpu.vector_store %arg7[%c5_98, %c0_99, %c0_100], %93 {strides = array<i32>} : memref<8x8x128xf32, #tpu.memory_space<vmem>>, vector<1x8x128xf32>,
    %94 = arith.mulf %87, %90 : vector<8x128xf32>
    %c5_101 = arith.constant 5 : index
    %c0_102 = arith.constant 0 : index
    %c0_103 = arith.constant 0 : index
    %95 = vector.load %arg8[%c5_101, %c0_102, %c0_103] : memref<8x8x128xf32, #tpu.memory_space<vmem>>, vector<1x8x128xf32>
    %96 = vector.shape_cast %95 : vector<1x8x128xf32> to vector<8x128xf32>
    %97 = vector.shape_cast %94 : vector<8x128xf32> to vector<1x8x128xf32>
    tpu.vector_store %arg8[%c5_101, %c0_102, %c0_103], %97 {strides = array<i32>} : memref<8x8x128xf32, #tpu.memory_space<vmem>>, vector<1x8x128xf32>,
    %c6 = arith.constant 6 : index
    %c0_104 = arith.constant 0 : index
    %c0_105 = arith.constant 0 : index
    %98 = vector.load %arg1[%c6, %c0_104, %c0_105] : memref<8x8x32xf32, #tpu.memory_space<vmem>>, vector<1x8x32xf32>
    %99 = vector.shape_cast %98 : vector<1x8x32xf32> to vector<8x32xf32>
    %c6_106 = arith.constant 6 : index
    %c0_107 = arith.constant 0 : index
    %c0_108 = arith.constant 0 : index
    %100 = vector.load %arg3[%c6_106, %c0_107, %c0_108] : memref<8x32x128xf32, #tpu.memory_space<vmem>>, vector<1x32x128xf32>
    %101 = vector.shape_cast %100 : vector<1x32x128xf32> to vector<32x128xf32>
    %cst_109 = arith.constant dense<0.000000e+00> : vector<8x128xf32>
    %102 = tpu.matmul %99, %101, %cst_109 {dimension_numbers = #tpu.dot_dimension_numbers<[1], [0], [0], [1], [0, 0, 1, 1], [], []>} : vector<8x32xf32>, vector<32x128xf32>, vector<8x128xf32> -> vector<8x128xf32>
    %c6_110 = arith.constant 6 : index
    %c0_111 = arith.constant 0 : index
    %c0_112 = arith.constant 0 : index
    %103 = vector.load %arg5[%c6_110, %c0_111, %c0_112] : memref<8x8x128xf32, #tpu.memory_space<vmem>>, vector<1x8x128xf32>
    %104 = vector.shape_cast %103 : vector<1x8x128xf32> to vector<8x128xf32>
    %cst_113 = arith.constant dense<0.000000e+00> : vector<8x128xf32>
    %105 = tpu.matmul %4, %104, %cst_113 {dimension_numbers = #tpu.dot_dimension_numbers<[1], [0], [0], [1], [0, 0, 1, 1], [], []>} : vector<8x8xf32>, vector<8x128xf32>, vector<8x128xf32> -> vector<8x128xf32>
    %c6_114 = arith.constant 6 : index
    %c0_115 = arith.constant 0 : index
    %c0_116 = arith.constant 0 : index
    %106 = vector.load %arg7[%c6_114, %c0_115, %c0_116] : memref<8x8x128xf32, #tpu.memory_space<vmem>>, vector<1x8x128xf32>
    %107 = vector.shape_cast %106 : vector<1x8x128xf32> to vector<8x128xf32>
    %108 = vector.shape_cast %102 : vector<8x128xf32> to vector<1x8x128xf32>
    tpu.vector_store %arg7[%c6_114, %c0_115, %c0_116], %108 {strides = array<i32>} : memref<8x8x128xf32, #tpu.memory_space<vmem>>, vector<1x8x128xf32>,
    %109 = arith.mulf %102, %105 : vector<8x128xf32>
    %c6_117 = arith.constant 6 : index
    %c0_118 = arith.constant 0 : index
    %c0_119 = arith.constant 0 : index
    %110 = vector.load %arg8[%c6_117, %c0_118, %c0_119] : memref<8x8x128xf32, #tpu.memory_space<vmem>>, vector<1x8x128xf32>
    %111 = vector.shape_cast %110 : vector<1x8x128xf32> to vector<8x128xf32>
    %112 = vector.shape_cast %109 : vector<8x128xf32> to vector<1x8x128xf32>
    tpu.vector_store %arg8[%c6_117, %c0_118, %c0_119], %112 {strides = array<i32>} : memref<8x8x128xf32, #tpu.memory_space<vmem>>, vector<1x8x128xf32>,
    %c7 = arith.constant 7 : index
    %c0_120 = arith.constant 0 : index
    %c0_121 = arith.constant 0 : index
    %113 = vector.load %arg1[%c7, %c0_120, %c0_121] : memref<8x8x32xf32, #tpu.memory_space<vmem>>, vector<1x8x32xf32>
    %114 = vector.shape_cast %113 : vector<1x8x32xf32> to vector<8x32xf32>
    %c7_122 = arith.constant 7 : index
    %c0_123 = arith.constant 0 : index
    %c0_124 = arith.constant 0 : index
    %115 = vector.load %arg3[%c7_122, %c0_123, %c0_124] : memref<8x32x128xf32, #tpu.memory_space<vmem>>, vector<1x32x128xf32>
    %116 = vector.shape_cast %115 : vector<1x32x128xf32> to vector<32x128xf32>
    %cst_125 = arith.constant dense<0.000000e+00> : vector<8x128xf32>
    %117 = tpu.matmul %114, %116, %cst_125 {dimension_numbers = #tpu.dot_dimension_numbers<[1], [0], [0], [1], [0, 0, 1, 1], [], []>} : vector<8x32xf32>, vector<32x128xf32>, vector<8x128xf32> -> vector<8x128xf32>
    %c7_126 = arith.constant 7 : index
    %c0_127 = arith.constant 0 : index
    %c0_128 = arith.constant 0 : index
    %118 = vector.load %arg5[%c7_126, %c0_127, %c0_128] : memref<8x8x128xf32, #tpu.memory_space<vmem>>, vector<1x8x128xf32>
    %119 = vector.shape_cast %118 : vector<1x8x128xf32> to vector<8x128xf32>
    %cst_129 = arith.constant dense<0.000000e+00> : vector<8x128xf32>
    %120 = tpu.matmul %4, %119, %cst_129 {dimension_numbers = #tpu.dot_dimension_numbers<[1], [0], [0], [1], [0, 0, 1, 1], [], []>} : vector<8x8xf32>, vector<8x128xf32>, vector<8x128xf32> -> vector<8x128xf32>
    %c7_130 = arith.constant 7 : index
    %c0_131 = arith.constant 0 : index
    %c0_132 = arith.constant 0 : index
    %121 = vector.load %arg7[%c7_130, %c0_131, %c0_132] : memref<8x8x128xf32, #tpu.memory_space<vmem>>, vector<1x8x128xf32>
    %122 = vector.shape_cast %121 : vector<1x8x128xf32> to vector<8x128xf32>
    %123 = vector.shape_cast %117 : vector<8x128xf32> to vector<1x8x128xf32>
    tpu.vector_store %arg7[%c7_130, %c0_131, %c0_132], %123 {strides = array<i32>} : memref<8x8x128xf32, #tpu.memory_space<vmem>>, vector<1x8x128xf32>,
    %124 = arith.mulf %117, %120 : vector<8x128xf32>
    %c7_133 = arith.constant 7 : index
    %c0_134 = arith.constant 0 : index
    %c0_135 = arith.constant 0 : index
    %125 = vector.load %arg8[%c7_133, %c0_134, %c0_135] : memref<8x8x128xf32, #tpu.memory_space<vmem>>, vector<1x8x128xf32>
    %126 = vector.shape_cast %125 : vector<1x8x128xf32> to vector<8x128xf32>
    %127 = vector.shape_cast %124 : vector<8x128xf32> to vector<1x8x128xf32>
    tpu.vector_store %arg8[%c7_133, %c0_134, %c0_135], %127 {strides = array<i32>} : memref<8x8x128xf32, #tpu.memory_space<vmem>>, vector<1x8x128xf32>,
    %c0_136 = arith.constant 0 : index
    %c0_137 = arith.constant 0 : index
    %c0_138 = arith.constant 0 : index
    %128 = vector.load %arg9[%c0_136, %c0_137, %c0_138] : memref<8x8x128xf32, #tpu.memory_space<vmem>>, vector<1x8x128xf32>
    %129 = vector.shape_cast %128 : vector<1x8x128xf32> to vector<8x128xf32>
    %c1_139 = arith.constant 1 : index
    %c0_140 = arith.constant 0 : index
    %c0_141 = arith.constant 0 : index
    %130 = vector.load %arg9[%c1_139, %c0_140, %c0_141] : memref<8x8x128xf32, #tpu.memory_space<vmem>>, vector<1x8x128xf32>
    %131 = vector.shape_cast %130 : vector<1x8x128xf32> to vector<8x128xf32>
    %132 = arith.maximumf %129, %131 : vector<8x128xf32>
    %c2_142 = arith.constant 2 : index
    %c0_143 = arith.constant 0 : index
    %c0_144 = arith.constant 0 : index
    %133 = vector.load %arg9[%c2_142, %c0_143, %c0_144] : memref<8x8x128xf32, #tpu.memory_space<vmem>>, vector<1x8x128xf32>
    %134 = vector.shape_cast %133 : vector<1x8x128xf32> to vector<8x128xf32>
    %135 = arith.maximumf %132, %134 : vector<8x128xf32>
    %c3_145 = arith.constant 3 : index
    %c0_146 = arith.constant 0 : index
    %c0_147 = arith.constant 0 : index
    %136 = vector.load %arg9[%c3_145, %c0_146, %c0_147] : memref<8x8x128xf32, #tpu.memory_space<vmem>>, vector<1x8x128xf32>
    %137 = vector.shape_cast %136 : vector<1x8x128xf32> to vector<8x128xf32>
    %138 = arith.maximumf %135, %137 : vector<8x128xf32>
    %c4_148 = arith.constant 4 : index
    %c0_149 = arith.constant 0 : index
    %c0_150 = arith.constant 0 : index
    %139 = vector.load %arg9[%c4_148, %c0_149, %c0_150] : memref<8x8x128xf32, #tpu.memory_space<vmem>>, vector<1x8x128xf32>
    %140 = vector.shape_cast %139 : vector<1x8x128xf32> to vector<8x128xf32>
    %141 = arith.maximumf %138, %140 : vector<8x128xf32>
    %c5_151 = arith.constant 5 : index
    %c0_152 = arith.constant 0 : index
    %c0_153 = arith.constant 0 : index
    %142 = vector.load %arg9[%c5_151, %c0_152, %c0_153] : memref<8x8x128xf32, #tpu.memory_space<vmem>>, vector<1x8x128xf32>
    %143 = vector.shape_cast %142 : vector<1x8x128xf32> to vector<8x128xf32>
    %144 = arith.maximumf %141, %143 : vector<8x128xf32>
    %c6_154 = arith.constant 6 : index
    %c0_155 = arith.constant 0 : index
    %c0_156 = arith.constant 0 : index
    %145 = vector.load %arg9[%c6_154, %c0_155, %c0_156] : memref<8x8x128xf32, #tpu.memory_space<vmem>>, vector<1x8x128xf32>
    %146 = vector.shape_cast %145 : vector<1x8x128xf32> to vector<8x128xf32>
    %147 = arith.maximumf %144, %146 : vector<8x128xf32>
    %c7_157 = arith.constant 7 : index
    %c0_158 = arith.constant 0 : index
    %c0_159 = arith.constant 0 : index
    %148 = vector.load %arg9[%c7_157, %c0_158, %c0_159] : memref<8x8x128xf32, #tpu.memory_space<vmem>>, vector<1x8x128xf32>
    %149 = vector.shape_cast %148 : vector<1x8x128xf32> to vector<8x128xf32>
    %150 = arith.maximumf %147, %149 : vector<8x128xf32>
    %cst_160 = arith.constant 0.000000e+00 : f32
    %151 = vector.broadcast %cst_160 : f32 to vector<8x128xf32>
    %cst_161 = arith.constant 0.000000e+00 : f32
    %152 = vector.broadcast %cst_161 : f32 to vector<8x128xf32>
    %c0_162 = arith.constant 0 : index
    %c0_163 = arith.constant 0 : index
    %c0_164 = arith.constant 0 : index
    %153 = vector.load %arg9[%c0_162, %c0_163, %c0_164] : memref<8x8x128xf32, #tpu.memory_space<vmem>>, vector<1x8x128xf32>
    %154 = vector.shape_cast %153 : vector<1x8x128xf32> to vector<8x128xf32>
    %155 = arith.subf %154, %150 : vector<8x128xf32>
    %156 = math.exp %155 : vector<8x128xf32>
    %157 = arith.addf %151, %156 : vector<8x128xf32>
    %c0_165 = arith.constant 0 : index
    %c0_166 = arith.constant 0 : index
    %c0_167 = arith.constant 0 : index
    %158 = vector.load %arg8[%c0_165, %c0_166, %c0_167] : memref<8x8x128xf32, #tpu.memory_space<vmem>>, vector<1x8x128xf32>
    %159 = vector.shape_cast %158 : vector<1x8x128xf32> to vector<8x128xf32>
    %160 = arith.mulf %156, %159 : vector<8x128xf32>
    %161 = arith.addf %152, %160 : vector<8x128xf32>
    %c1_168 = arith.constant 1 : index
    %c0_169 = arith.constant 0 : index
    %c0_170 = arith.constant 0 : index
    %162 = vector.load %arg9[%c1_168, %c0_169, %c0_170] : memref<8x8x128xf32, #tpu.memory_space<vmem>>, vector<1x8x128xf32>
    %163 = vector.shape_cast %162 : vector<1x8x128xf32> to vector<8x128xf32>
    %164 = arith.subf %163, %150 : vector<8x128xf32>
    %165 = math.exp %164 : vector<8x128xf32>
    %166 = arith.addf %157, %165 : vector<8x128xf32>
    %c1_171 = arith.constant 1 : index
    %c0_172 = arith.constant 0 : index
    %c0_173 = arith.constant 0 : index
    %167 = vector.load %arg8[%c1_171, %c0_172, %c0_173] : memref<8x8x128xf32, #tpu.memory_space<vmem>>, vector<1x8x128xf32>
    %168 = vector.shape_cast %167 : vector<1x8x128xf32> to vector<8x128xf32>
    %169 = arith.mulf %165, %168 : vector<8x128xf32>
    %170 = arith.addf %161, %169 : vector<8x128xf32>
    %c2_174 = arith.constant 2 : index
    %c0_175 = arith.constant 0 : index
    %c0_176 = arith.constant 0 : index
    %171 = vector.load %arg9[%c2_174, %c0_175, %c0_176] : memref<8x8x128xf32, #tpu.memory_space<vmem>>, vector<1x8x128xf32>
    %172 = vector.shape_cast %171 : vector<1x8x128xf32> to vector<8x128xf32>
    %173 = arith.subf %172, %150 : vector<8x128xf32>
    %174 = math.exp %173 : vector<8x128xf32>
    %175 = arith.addf %166, %174 : vector<8x128xf32>
    %c2_177 = arith.constant 2 : index
    %c0_178 = arith.constant 0 : index
    %c0_179 = arith.constant 0 : index
    %176 = vector.load %arg8[%c2_177, %c0_178, %c0_179] : memref<8x8x128xf32, #tpu.memory_space<vmem>>, vector<1x8x128xf32>
    %177 = vector.shape_cast %176 : vector<1x8x128xf32> to vector<8x128xf32>
    %178 = arith.mulf %174, %177 : vector<8x128xf32>
    %179 = arith.addf %170, %178 : vector<8x128xf32>
    %c3_180 = arith.constant 3 : index
    %c0_181 = arith.constant 0 : index
    %c0_182 = arith.constant 0 : index
    %180 = vector.load %arg9[%c3_180, %c0_181, %c0_182] : memref<8x8x128xf32, #tpu.memory_space<vmem>>, vector<1x8x128xf32>
    %181 = vector.shape_cast %180 : vector<1x8x128xf32> to vector<8x128xf32>
    %182 = arith.subf %181, %150 : vector<8x128xf32>
    %183 = math.exp %182 : vector<8x128xf32>
    %184 = arith.addf %175, %183 : vector<8x128xf32>
    %c3_183 = arith.constant 3 : index
    %c0_184 = arith.constant 0 : index
    %c0_185 = arith.constant 0 : index
    %185 = vector.load %arg8[%c3_183, %c0_184, %c0_185] : memref<8x8x128xf32, #tpu.memory_space<vmem>>, vector<1x8x128xf32>
    %186 = vector.shape_cast %185 : vector<1x8x128xf32> to vector<8x128xf32>
    %187 = arith.mulf %183, %186 : vector<8x128xf32>
    %188 = arith.addf %179, %187 : vector<8x128xf32>
    %c4_186 = arith.constant 4 : index
    %c0_187 = arith.constant 0 : index
    %c0_188 = arith.constant 0 : index
    %189 = vector.load %arg9[%c4_186, %c0_187, %c0_188] : memref<8x8x128xf32, #tpu.memory_space<vmem>>, vector<1x8x128xf32>
    %190 = vector.shape_cast %189 : vector<1x8x128xf32> to vector<8x128xf32>
    %191 = arith.subf %190, %150 : vector<8x128xf32>
    %192 = math.exp %191 : vector<8x128xf32>
    %193 = arith.addf %184, %192 : vector<8x128xf32>
    %c4_189 = arith.constant 4 : index
    %c0_190 = arith.constant 0 : index
    %c0_191 = arith.constant 0 : index
    %194 = vector.load %arg8[%c4_189, %c0_190, %c0_191] : memref<8x8x128xf32, #tpu.memory_space<vmem>>, vector<1x8x128xf32>
    %195 = vector.shape_cast %194 : vector<1x8x128xf32> to vector<8x128xf32>
    %196 = arith.mulf %192, %195 : vector<8x128xf32>
    %197 = arith.addf %188, %196 : vector<8x128xf32>
    %c5_192 = arith.constant 5 : index
    %c0_193 = arith.constant 0 : index
    %c0_194 = arith.constant 0 : index
    %198 = vector.load %arg9[%c5_192, %c0_193, %c0_194] : memref<8x8x128xf32, #tpu.memory_space<vmem>>, vector<1x8x128xf32>
    %199 = vector.shape_cast %198 : vector<1x8x128xf32> to vector<8x128xf32>
    %200 = arith.subf %199, %150 : vector<8x128xf32>
    %201 = math.exp %200 : vector<8x128xf32>
    %202 = arith.addf %193, %201 : vector<8x128xf32>
    %c5_195 = arith.constant 5 : index
    %c0_196 = arith.constant 0 : index
    %c0_197 = arith.constant 0 : index
    %203 = vector.load %arg8[%c5_195, %c0_196, %c0_197] : memref<8x8x128xf32, #tpu.memory_space<vmem>>, vector<1x8x128xf32>
    %204 = vector.shape_cast %203 : vector<1x8x128xf32> to vector<8x128xf32>
    %205 = arith.mulf %201, %204 : vector<8x128xf32>
    %206 = arith.addf %197, %205 : vector<8x128xf32>
    %c6_198 = arith.constant 6 : index
    %c0_199 = arith.constant 0 : index
    %c0_200 = arith.constant 0 : index
    %207 = vector.load %arg9[%c6_198, %c0_199, %c0_200] : memref<8x8x128xf32, #tpu.memory_space<vmem>>, vector<1x8x128xf32>
    %208 = vector.shape_cast %207 : vector<1x8x128xf32> to vector<8x128xf32>
    %209 = arith.subf %208, %150 : vector<8x128xf32>
    %210 = math.exp %209 : vector<8x128xf32>
    %211 = arith.addf %202, %210 : vector<8x128xf32>
    %c6_201 = arith.constant 6 : index
    %c0_202 = arith.constant 0 : index
    %c0_203 = arith.constant 0 : index
    %212 = vector.load %arg8[%c6_201, %c0_202, %c0_203] : memref<8x8x128xf32, #tpu.memory_space<vmem>>, vector<1x8x128xf32>
    %213 = vector.shape_cast %212 : vector<1x8x128xf32> to vector<8x128xf32>
    %214 = arith.mulf %210, %213 : vector<8x128xf32>
    %215 = arith.addf %206, %214 : vector<8x128xf32>
    %c7_204 = arith.constant 7 : index
    %c0_205 = arith.constant 0 : index
    %c0_206 = arith.constant 0 : index
    %216 = vector.load %arg9[%c7_204, %c0_205, %c0_206] : memref<8x8x128xf32, #tpu.memory_space<vmem>>, vector<1x8x128xf32>
    %217 = vector.shape_cast %216 : vector<1x8x128xf32> to vector<8x128xf32>
    %218 = arith.subf %217, %150 : vector<8x128xf32>
    %219 = math.exp %218 : vector<8x128xf32>
    %220 = arith.addf %211, %219 : vector<8x128xf32>
    %c7_207 = arith.constant 7 : index
    %c0_208 = arith.constant 0 : index
    %c0_209 = arith.constant 0 : index
    %221 = vector.load %arg8[%c7_207, %c0_208, %c0_209] : memref<8x8x128xf32, #tpu.memory_space<vmem>>, vector<1x8x128xf32>
    %222 = vector.shape_cast %221 : vector<1x8x128xf32> to vector<8x128xf32>
    %223 = arith.mulf %219, %222 : vector<8x128xf32>
    %224 = arith.addf %215, %223 : vector<8x128xf32>
    %225 = tpu.reciprocal %220 {approx = true} : vector<8x128xf32> -> vector<8x128xf32>
    %226 = arith.mulf %224, %225 : vector<8x128xf32>
    %227 = arith.mulf %226, %226 : vector<8x128xf32>
    %cst_210 = arith.constant dense<0.000000e+00> : vector<8x128xf32>
    %228 = tpu.matmul %227, %5, %cst_210 {dimension_numbers = #tpu.dot_dimension_numbers<[1], [0], [0], [1], [0, 0, 1, 1], [], []>} : vector<8x128xf32>, vector<128x128xf32>, vector<8x128xf32> -> vector<8x128xf32>
    %cst_211 = arith.constant 9.99999971E-10 : f32
    %229 = vector.broadcast %cst_211 : f32 to vector<8x128xf32>
    %230 = arith.addf %228, %229 : vector<8x128xf32>
    %231 = math.rsqrt %230 : vector<8x128xf32>
    %232 = arith.mulf %228, %231 : vector<8x128xf32>
    %cst_212 = arith.constant 1.000000e+00 : f32
    %233 = vector.broadcast %cst_212 : f32 to vector<8x128xf32>
    %234 = arith.addf %233, %228 : vector<8x128xf32>
    %235 = arith.divf %232, %234 : vector<8x128xf32>
    %236 = arith.mulf %226, %235 : vector<8x128xf32>
    %c0_213 = arith.constant 0 : index
    %c0_214 = arith.constant 0 : index
    %c0_215 = arith.constant 0 : index
    %237 = vector.load %arg7[%c0_213, %c0_214, %c0_215] : memref<8x8x128xf32, #tpu.memory_space<vmem>>, vector<1x8x128xf32>
    %238 = vector.shape_cast %237 : vector<1x8x128xf32> to vector<8x128xf32>
    %239 = arith.mulf %238, %236 : vector<8x128xf32>
    %cst_216 = arith.constant dense<0.000000e+00> : vector<8x128xf32>
    %240 = tpu.matmul %239, %5, %cst_216 {dimension_numbers = #tpu.dot_dimension_numbers<[1], [0], [0], [1], [0, 0, 1, 1], [], []>} : vector<8x128xf32>, vector<128x128xf32>, vector<8x128xf32> -> vector<8x128xf32>
    %c0_217 = arith.constant 0 : index
    %c0_218 = arith.constant 0 : index
    %c0_219 = arith.constant 0 : index
    %241 = vector.load %arg9[%c0_217, %c0_218, %c0_219] : memref<8x8x128xf32, #tpu.memory_space<vmem>>, vector<1x8x128xf32>
    %242 = vector.shape_cast %241 : vector<1x8x128xf32> to vector<8x128xf32>
    %243 = arith.addf %242, %240 : vector<8x128xf32>
    %c0_220 = arith.constant 0 : index
    %c0_221 = arith.constant 0 : index
    %c0_222 = arith.constant 0 : index
    %244 = vector.load %arg9[%c0_220, %c0_221, %c0_222] : memref<8x8x128xf32, #tpu.memory_space<vmem>>, vector<1x8x128xf32>
    %245 = vector.shape_cast %244 : vector<1x8x128xf32> to vector<8x128xf32>
    %246 = vector.shape_cast %243 : vector<8x128xf32> to vector<1x8x128xf32>
    tpu.vector_store %arg9[%c0_220, %c0_221, %c0_222], %246 {strides = array<i32>} : memref<8x8x128xf32, #tpu.memory_space<vmem>>, vector<1x8x128xf32>,
    %c1_223 = arith.constant 1 : index
    %c0_224 = arith.constant 0 : index
    %c0_225 = arith.constant 0 : index
    %247 = vector.load %arg7[%c1_223, %c0_224, %c0_225] : memref<8x8x128xf32, #tpu.memory_space<vmem>>, vector<1x8x128xf32>
    %248 = vector.shape_cast %247 : vector<1x8x128xf32> to vector<8x128xf32>
    %249 = arith.mulf %248, %236 : vector<8x128xf32>
    %cst_226 = arith.constant dense<0.000000e+00> : vector<8x128xf32>
    %250 = tpu.matmul %249, %5, %cst_226 {dimension_numbers = #tpu.dot_dimension_numbers<[1], [0], [0], [1], [0, 0, 1, 1], [], []>} : vector<8x128xf32>, vector<128x128xf32>, vector<8x128xf32> -> vector<8x128xf32>
    %c1_227 = arith.constant 1 : index
    %c0_228 = arith.constant 0 : index
    %c0_229 = arith.constant 0 : index
    %251 = vector.load %arg9[%c1_227, %c0_228, %c0_229] : memref<8x8x128xf32, #tpu.memory_space<vmem>>, vector<1x8x128xf32>
    %252 = vector.shape_cast %251 : vector<1x8x128xf32> to vector<8x128xf32>
    %253 = arith.addf %252, %250 : vector<8x128xf32>
    %c1_230 = arith.constant 1 : index
    %c0_231 = arith.constant 0 : index
    %c0_232 = arith.constant 0 : index
    %254 = vector.load %arg9[%c1_230, %c0_231, %c0_232] : memref<8x8x128xf32, #tpu.memory_space<vmem>>, vector<1x8x128xf32>
    %255 = vector.shape_cast %254 : vector<1x8x128xf32> to vector<8x128xf32>
    %256 = vector.shape_cast %253 : vector<8x128xf32> to vector<1x8x128xf32>
    tpu.vector_store %arg9[%c1_230, %c0_231, %c0_232], %256 {strides = array<i32>} : memref<8x8x128xf32, #tpu.memory_space<vmem>>, vector<1x8x128xf32>,
    %c2_233 = arith.constant 2 : index
    %c0_234 = arith.constant 0 : index
    %c0_235 = arith.constant 0 : index
    %257 = vector.load %arg7[%c2_233, %c0_234, %c0_235] : memref<8x8x128xf32, #tpu.memory_space<vmem>>, vector<1x8x128xf32>
    %258 = vector.shape_cast %257 : vector<1x8x128xf32> to vector<8x128xf32>
    %259 = arith.mulf %258, %236 : vector<8x128xf32>
    %cst_236 = arith.constant dense<0.000000e+00> : vector<8x128xf32>
    %260 = tpu.matmul %259, %5, %cst_236 {dimension_numbers = #tpu.dot_dimension_numbers<[1], [0], [0], [1], [0, 0, 1, 1], [], []>} : vector<8x128xf32>, vector<128x128xf32>, vector<8x128xf32> -> vector<8x128xf32>
    %c2_237 = arith.constant 2 : index
    %c0_238 = arith.constant 0 : index
    %c0_239 = arith.constant 0 : index
    %261 = vector.load %arg9[%c2_237, %c0_238, %c0_239] : memref<8x8x128xf32, #tpu.memory_space<vmem>>, vector<1x8x128xf32>
    %262 = vector.shape_cast %261 : vector<1x8x128xf32> to vector<8x128xf32>
    %263 = arith.addf %262, %260 : vector<8x128xf32>
    %c2_240 = arith.constant 2 : index
    %c0_241 = arith.constant 0 : index
    %c0_242 = arith.constant 0 : index
    %264 = vector.load %arg9[%c2_240, %c0_241, %c0_242] : memref<8x8x128xf32, #tpu.memory_space<vmem>>, vector<1x8x128xf32>
    %265 = vector.shape_cast %264 : vector<1x8x128xf32> to vector<8x128xf32>
    %266 = vector.shape_cast %263 : vector<8x128xf32> to vector<1x8x128xf32>
    tpu.vector_store %arg9[%c2_240, %c0_241, %c0_242], %266 {strides = array<i32>} : memref<8x8x128xf32, #tpu.memory_space<vmem>>, vector<1x8x128xf32>,
    %c3_243 = arith.constant 3 : index
    %c0_244 = arith.constant 0 : index
    %c0_245 = arith.constant 0 : index
    %267 = vector.load %arg7[%c3_243, %c0_244, %c0_245] : memref<8x8x128xf32, #tpu.memory_space<vmem>>, vector<1x8x128xf32>
    %268 = vector.shape_cast %267 : vector<1x8x128xf32> to vector<8x128xf32>
    %269 = arith.mulf %268, %236 : vector<8x128xf32>
    %cst_246 = arith.constant dense<0.000000e+00> : vector<8x128xf32>
    %270 = tpu.matmul %269, %5, %cst_246 {dimension_numbers = #tpu.dot_dimension_numbers<[1], [0], [0], [1], [0, 0, 1, 1], [], []>} : vector<8x128xf32>, vector<128x128xf32>, vector<8x128xf32> -> vector<8x128xf32>
    %c3_247 = arith.constant 3 : index
    %c0_248 = arith.constant 0 : index
    %c0_249 = arith.constant 0 : index
    %271 = vector.load %arg9[%c3_247, %c0_248, %c0_249] : memref<8x8x128xf32, #tpu.memory_space<vmem>>, vector<1x8x128xf32>
    %272 = vector.shape_cast %271 : vector<1x8x128xf32> to vector<8x128xf32>
    %273 = arith.addf %272, %270 : vector<8x128xf32>
    %c3_250 = arith.constant 3 : index
    %c0_251 = arith.constant 0 : index
    %c0_252 = arith.constant 0 : index
    %274 = vector.load %arg9[%c3_250, %c0_251, %c0_252] : memref<8x8x128xf32, #tpu.memory_space<vmem>>, vector<1x8x128xf32>
    %275 = vector.shape_cast %274 : vector<1x8x128xf32> to vector<8x128xf32>
    %276 = vector.shape_cast %273 : vector<8x128xf32> to vector<1x8x128xf32>
    tpu.vector_store %arg9[%c3_250, %c0_251, %c0_252], %276 {strides = array<i32>} : memref<8x8x128xf32, #tpu.memory_space<vmem>>, vector<1x8x128xf32>,
    %c4_253 = arith.constant 4 : index
    %c0_254 = arith.constant 0 : index
    %c0_255 = arith.constant 0 : index
    %277 = vector.load %arg7[%c4_253, %c0_254, %c0_255] : memref<8x8x128xf32, #tpu.memory_space<vmem>>, vector<1x8x128xf32>
    %278 = vector.shape_cast %277 : vector<1x8x128xf32> to vector<8x128xf32>
    %279 = arith.mulf %278, %236 : vector<8x128xf32>
    %cst_256 = arith.constant dense<0.000000e+00> : vector<8x128xf32>
    %280 = tpu.matmul %279, %5, %cst_256 {dimension_numbers = #tpu.dot_dimension_numbers<[1], [0], [0], [1], [0, 0, 1, 1], [], []>} : vector<8x128xf32>, vector<128x128xf32>, vector<8x128xf32> -> vector<8x128xf32>
    %c4_257 = arith.constant 4 : index
    %c0_258 = arith.constant 0 : index
    %c0_259 = arith.constant 0 : index
    %281 = vector.load %arg9[%c4_257, %c0_258, %c0_259] : memref<8x8x128xf32, #tpu.memory_space<vmem>>, vector<1x8x128xf32>
    %282 = vector.shape_cast %281 : vector<1x8x128xf32> to vector<8x128xf32>
    %283 = arith.addf %282, %280 : vector<8x128xf32>
    %c4_260 = arith.constant 4 : index
    %c0_261 = arith.constant 0 : index
    %c0_262 = arith.constant 0 : index
    %284 = vector.load %arg9[%c4_260, %c0_261, %c0_262] : memref<8x8x128xf32, #tpu.memory_space<vmem>>, vector<1x8x128xf32>
    %285 = vector.shape_cast %284 : vector<1x8x128xf32> to vector<8x128xf32>
    %286 = vector.shape_cast %283 : vector<8x128xf32> to vector<1x8x128xf32>
    tpu.vector_store %arg9[%c4_260, %c0_261, %c0_262], %286 {strides = array<i32>} : memref<8x8x128xf32, #tpu.memory_space<vmem>>, vector<1x8x128xf32>,
    %c5_263 = arith.constant 5 : index
    %c0_264 = arith.constant 0 : index
    %c0_265 = arith.constant 0 : index
    %287 = vector.load %arg7[%c5_263, %c0_264, %c0_265] : memref<8x8x128xf32, #tpu.memory_space<vmem>>, vector<1x8x128xf32>
    %288 = vector.shape_cast %287 : vector<1x8x128xf32> to vector<8x128xf32>
    %289 = arith.mulf %288, %236 : vector<8x128xf32>
    %cst_266 = arith.constant dense<0.000000e+00> : vector<8x128xf32>
    %290 = tpu.matmul %289, %5, %cst_266 {dimension_numbers = #tpu.dot_dimension_numbers<[1], [0], [0], [1], [0, 0, 1, 1], [], []>} : vector<8x128xf32>, vector<128x128xf32>, vector<8x128xf32> -> vector<8x128xf32>
    %c5_267 = arith.constant 5 : index
    %c0_268 = arith.constant 0 : index
    %c0_269 = arith.constant 0 : index
    %291 = vector.load %arg9[%c5_267, %c0_268, %c0_269] : memref<8x8x128xf32, #tpu.memory_space<vmem>>, vector<1x8x128xf32>
    %292 = vector.shape_cast %291 : vector<1x8x128xf32> to vector<8x128xf32>
    %293 = arith.addf %292, %290 : vector<8x128xf32>
    %c5_270 = arith.constant 5 : index
    %c0_271 = arith.constant 0 : index
    %c0_272 = arith.constant 0 : index
    %294 = vector.load %arg9[%c5_270, %c0_271, %c0_272] : memref<8x8x128xf32, #tpu.memory_space<vmem>>, vector<1x8x128xf32>
    %295 = vector.shape_cast %294 : vector<1x8x128xf32> to vector<8x128xf32>
    %296 = vector.shape_cast %293 : vector<8x128xf32> to vector<1x8x128xf32>
    tpu.vector_store %arg9[%c5_270, %c0_271, %c0_272], %296 {strides = array<i32>} : memref<8x8x128xf32, #tpu.memory_space<vmem>>, vector<1x8x128xf32>,
    %c6_273 = arith.constant 6 : index
    %c0_274 = arith.constant 0 : index
    %c0_275 = arith.constant 0 : index
    %297 = vector.load %arg7[%c6_273, %c0_274, %c0_275] : memref<8x8x128xf32, #tpu.memory_space<vmem>>, vector<1x8x128xf32>
    %298 = vector.shape_cast %297 : vector<1x8x128xf32> to vector<8x128xf32>
    %299 = arith.mulf %298, %236 : vector<8x128xf32>
    %cst_276 = arith.constant dense<0.000000e+00> : vector<8x128xf32>
    %300 = tpu.matmul %299, %5, %cst_276 {dimension_numbers = #tpu.dot_dimension_numbers<[1], [0], [0], [1], [0, 0, 1, 1], [], []>} : vector<8x128xf32>, vector<128x128xf32>, vector<8x128xf32> -> vector<8x128xf32>
    %c6_277 = arith.constant 6 : index
    %c0_278 = arith.constant 0 : index
    %c0_279 = arith.constant 0 : index
    %301 = vector.load %arg9[%c6_277, %c0_278, %c0_279] : memref<8x8x128xf32, #tpu.memory_space<vmem>>, vector<1x8x128xf32>
    %302 = vector.shape_cast %301 : vector<1x8x128xf32> to vector<8x128xf32>
    %303 = arith.addf %302, %300 : vector<8x128xf32>
    %c6_280 = arith.constant 6 : index
    %c0_281 = arith.constant 0 : index
    %c0_282 = arith.constant 0 : index
    %304 = vector.load %arg9[%c6_280, %c0_281, %c0_282] : memref<8x8x128xf32, #tpu.memory_space<vmem>>, vector<1x8x128xf32>
    %305 = vector.shape_cast %304 : vector<1x8x128xf32> to vector<8x128xf32>
    %306 = vector.shape_cast %303 : vector<8x128xf32> to vector<1x8x128xf32>
    tpu.vector_store %arg9[%c6_280, %c0_281, %c0_282], %306 {strides = array<i32>} : memref<8x8x128xf32, #tpu.memory_space<vmem>>, vector<1x8x128xf32>,
    %c7_283 = arith.constant 7 : index
    %c0_284 = arith.constant 0 : index
    %c0_285 = arith.constant 0 : index
    %307 = vector.load %arg7[%c7_283, %c0_284, %c0_285] : memref<8x8x128xf32, #tpu.memory_space<vmem>>, vector<1x8x128xf32>
    %308 = vector.shape_cast %307 : vector<1x8x128xf32> to vector<8x128xf32>
    %309 = arith.mulf %308, %236 : vector<8x128xf32>
    %cst_286 = arith.constant dense<0.000000e+00> : vector<8x128xf32>
    %310 = tpu.matmul %309, %5, %cst_286 {dimension_numbers = #tpu.dot_dimension_numbers<[1], [0], [0], [1], [0, 0, 1, 1], [], []>} : vector<8x128xf32>, vector<128x128xf32>, vector<8x128xf32> -> vector<8x128xf32>
    %c7_287 = arith.constant 7 : index
    %c0_288 = arith.constant 0 : index
    %c0_289 = arith.constant 0 : index
    %311 = vector.load %arg9[%c7_287, %c0_288, %c0_289] : memref<8x8x128xf32, #tpu.memory_space<vmem>>, vector<1x8x128xf32>
    %312 = vector.shape_cast %311 : vector<1x8x128xf32> to vector<8x128xf32>
    %313 = arith.addf %312, %310 : vector<8x128xf32>
    %c7_290 = arith.constant 7 : index
    %c0_291 = arith.constant 0 : index
    %c0_292 = arith.constant 0 : index
    %314 = vector.load %arg9[%c7_290, %c0_291, %c0_292] : memref<8x8x128xf32, #tpu.memory_space<vmem>>, vector<1x8x128xf32>
    %315 = vector.shape_cast %314 : vector<1x8x128xf32> to vector<8x128xf32>
    %316 = vector.shape_cast %313 : vector<8x128xf32> to vector<1x8x128xf32>
    tpu.vector_store %arg9[%c7_290, %c0_291, %c0_292], %316 {strides = array<i32>} : memref<8x8x128xf32, #tpu.memory_space<vmem>>, vector<1x8x128xf32>,
    %c0_293 = arith.constant 0 : index
    %c0_294 = arith.constant 0 : index
    %c0_295 = arith.constant 0 : index
    %317 = vector.load %arg9[%c0_293, %c0_294, %c0_295] : memref<8x8x128xf32, #tpu.memory_space<vmem>>, vector<1x8x128xf32>
    %318 = vector.shape_cast %317 : vector<1x8x128xf32> to vector<8x128xf32>
    %c1_296 = arith.constant 1 : index
    %c0_297 = arith.constant 0 : index
    %c0_298 = arith.constant 0 : index
    %319 = vector.load %arg9[%c1_296, %c0_297, %c0_298] : memref<8x8x128xf32, #tpu.memory_space<vmem>>, vector<1x8x128xf32>
    %320 = vector.shape_cast %319 : vector<1x8x128xf32> to vector<8x128xf32>
    %321 = arith.maximumf %318, %320 : vector<8x128xf32>
    %c2_299 = arith.constant 2 : index
    %c0_300 = arith.constant 0 : index
    %c0_301 = arith.constant 0 : index
    %322 = vector.load %arg9[%c2_299, %c0_300, %c0_301] : memref<8x8x128xf32, #tpu.memory_space<vmem>>, vector<1x8x128xf32>
    %323 = vector.shape_cast %322 : vector<1x8x128xf32> to vector<8x128xf32>
    %324 = arith.maximumf %321, %323 : vector<8x128xf32>
    %c3_302 = arith.constant 3 : index
    %c0_303 = arith.constant 0 : index
    %c0_304 = arith.constant 0 : index
    %325 = vector.load %arg9[%c3_302, %c0_303, %c0_304] : memref<8x8x128xf32, #tpu.memory_space<vmem>>, vector<1x8x128xf32>
    %326 = vector.shape_cast %325 : vector<1x8x128xf32> to vector<8x128xf32>
    %327 = arith.maximumf %324, %326 : vector<8x128xf32>
    %c4_305 = arith.constant 4 : index
    %c0_306 = arith.constant 0 : index
    %c0_307 = arith.constant 0 : index
    %328 = vector.load %arg9[%c4_305, %c0_306, %c0_307] : memref<8x8x128xf32, #tpu.memory_space<vmem>>, vector<1x8x128xf32>
    %329 = vector.shape_cast %328 : vector<1x8x128xf32> to vector<8x128xf32>
    %330 = arith.maximumf %327, %329 : vector<8x128xf32>
    %c5_308 = arith.constant 5 : index
    %c0_309 = arith.constant 0 : index
    %c0_310 = arith.constant 0 : index
    %331 = vector.load %arg9[%c5_308, %c0_309, %c0_310] : memref<8x8x128xf32, #tpu.memory_space<vmem>>, vector<1x8x128xf32>
    %332 = vector.shape_cast %331 : vector<1x8x128xf32> to vector<8x128xf32>
    %333 = arith.maximumf %330, %332 : vector<8x128xf32>
    %c6_311 = arith.constant 6 : index
    %c0_312 = arith.constant 0 : index
    %c0_313 = arith.constant 0 : index
    %334 = vector.load %arg9[%c6_311, %c0_312, %c0_313] : memref<8x8x128xf32, #tpu.memory_space<vmem>>, vector<1x8x128xf32>
    %335 = vector.shape_cast %334 : vector<1x8x128xf32> to vector<8x128xf32>
    %336 = arith.maximumf %333, %335 : vector<8x128xf32>
    %c7_314 = arith.constant 7 : index
    %c0_315 = arith.constant 0 : index
    %c0_316 = arith.constant 0 : index
    %337 = vector.load %arg9[%c7_314, %c0_315, %c0_316] : memref<8x8x128xf32, #tpu.memory_space<vmem>>, vector<1x8x128xf32>
    %338 = vector.shape_cast %337 : vector<1x8x128xf32> to vector<8x128xf32>
    %339 = arith.maximumf %336, %338 : vector<8x128xf32>
    %cst_317 = arith.constant 0.000000e+00 : f32
    %340 = vector.broadcast %cst_317 : f32 to vector<8x128xf32>
    %cst_318 = arith.constant 0.000000e+00 : f32
    %341 = vector.broadcast %cst_318 : f32 to vector<8x128xf32>
    %c0_319 = arith.constant 0 : index
    %c0_320 = arith.constant 0 : index
    %c0_321 = arith.constant 0 : index
    %342 = vector.load %arg9[%c0_319, %c0_320, %c0_321] : memref<8x8x128xf32, #tpu.memory_space<vmem>>, vector<1x8x128xf32>
    %343 = vector.shape_cast %342 : vector<1x8x128xf32> to vector<8x128xf32>
    %344 = arith.subf %343, %339 : vector<8x128xf32>
    %345 = math.exp %344 : vector<8x128xf32>
    %346 = arith.addf %340, %345 : vector<8x128xf32>
    %c0_322 = arith.constant 0 : index
    %c0_323 = arith.constant 0 : index
    %c0_324 = arith.constant 0 : index
    %347 = vector.load %arg8[%c0_322, %c0_323, %c0_324] : memref<8x8x128xf32, #tpu.memory_space<vmem>>, vector<1x8x128xf32>
    %348 = vector.shape_cast %347 : vector<1x8x128xf32> to vector<8x128xf32>
    %349 = arith.mulf %345, %348 : vector<8x128xf32>
    %350 = arith.addf %341, %349 : vector<8x128xf32>
    %c1_325 = arith.constant 1 : index
    %c0_326 = arith.constant 0 : index
    %c0_327 = arith.constant 0 : index
    %351 = vector.load %arg9[%c1_325, %c0_326, %c0_327] : memref<8x8x128xf32, #tpu.memory_space<vmem>>, vector<1x8x128xf32>
    %352 = vector.shape_cast %351 : vector<1x8x128xf32> to vector<8x128xf32>
    %353 = arith.subf %352, %339 : vector<8x128xf32>
    %354 = math.exp %353 : vector<8x128xf32>
    %355 = arith.addf %346, %354 : vector<8x128xf32>
    %c1_328 = arith.constant 1 : index
    %c0_329 = arith.constant 0 : index
    %c0_330 = arith.constant 0 : index
    %356 = vector.load %arg8[%c1_328, %c0_329, %c0_330] : memref<8x8x128xf32, #tpu.memory_space<vmem>>, vector<1x8x128xf32>
    %357 = vector.shape_cast %356 : vector<1x8x128xf32> to vector<8x128xf32>
    %358 = arith.mulf %354, %357 : vector<8x128xf32>
    %359 = arith.addf %350, %358 : vector<8x128xf32>
    %c2_331 = arith.constant 2 : index
    %c0_332 = arith.constant 0 : index
    %c0_333 = arith.constant 0 : index
    %360 = vector.load %arg9[%c2_331, %c0_332, %c0_333] : memref<8x8x128xf32, #tpu.memory_space<vmem>>, vector<1x8x128xf32>
    %361 = vector.shape_cast %360 : vector<1x8x128xf32> to vector<8x128xf32>
    %362 = arith.subf %361, %339 : vector<8x128xf32>
    %363 = math.exp %362 : vector<8x128xf32>
    %364 = arith.addf %355, %363 : vector<8x128xf32>
    %c2_334 = arith.constant 2 : index
    %c0_335 = arith.constant 0 : index
    %c0_336 = arith.constant 0 : index
    %365 = vector.load %arg8[%c2_334, %c0_335, %c0_336] : memref<8x8x128xf32, #tpu.memory_space<vmem>>, vector<1x8x128xf32>
    %366 = vector.shape_cast %365 : vector<1x8x128xf32> to vector<8x128xf32>
    %367 = arith.mulf %363, %366 : vector<8x128xf32>
    %368 = arith.addf %359, %367 : vector<8x128xf32>
    %c3_337 = arith.constant 3 : index
    %c0_338 = arith.constant 0 : index
    %c0_339 = arith.constant 0 : index
    %369 = vector.load %arg9[%c3_337, %c0_338, %c0_339] : memref<8x8x128xf32, #tpu.memory_space<vmem>>, vector<1x8x128xf32>
    %370 = vector.shape_cast %369 : vector<1x8x128xf32> to vector<8x128xf32>
    %371 = arith.subf %370, %339 : vector<8x128xf32>
    %372 = math.exp %371 : vector<8x128xf32>
    %373 = arith.addf %364, %372 : vector<8x128xf32>
    %c3_340 = arith.constant 3 : index
    %c0_341 = arith.constant 0 : index
    %c0_342 = arith.constant 0 : index
    %374 = vector.load %arg8[%c3_340, %c0_341, %c0_342] : memref<8x8x128xf32, #tpu.memory_space<vmem>>, vector<1x8x128xf32>
    %375 = vector.shape_cast %374 : vector<1x8x128xf32> to vector<8x128xf32>
    %376 = arith.mulf %372, %375 : vector<8x128xf32>
    %377 = arith.addf %368, %376 : vector<8x128xf32>
    %c4_343 = arith.constant 4 : index
    %c0_344 = arith.constant 0 : index
    %c0_345 = arith.constant 0 : index
    %378 = vector.load %arg9[%c4_343, %c0_344, %c0_345] : memref<8x8x128xf32, #tpu.memory_space<vmem>>, vector<1x8x128xf32>
    %379 = vector.shape_cast %378 : vector<1x8x128xf32> to vector<8x128xf32>
    %380 = arith.subf %379, %339 : vector<8x128xf32>
    %381 = math.exp %380 : vector<8x128xf32>
    %382 = arith.addf %373, %381 : vector<8x128xf32>
    %c4_346 = arith.constant 4 : index
    %c0_347 = arith.constant 0 : index
    %c0_348 = arith.constant 0 : index
    %383 = vector.load %arg8[%c4_346, %c0_347, %c0_348] : memref<8x8x128xf32, #tpu.memory_space<vmem>>, vector<1x8x128xf32>
    %384 = vector.shape_cast %383 : vector<1x8x128xf32> to vector<8x128xf32>
    %385 = arith.mulf %381, %384 : vector<8x128xf32>
    %386 = arith.addf %377, %385 : vector<8x128xf32>
    %c5_349 = arith.constant 5 : index
    %c0_350 = arith.constant 0 : index
    %c0_351 = arith.constant 0 : index
    %387 = vector.load %arg9[%c5_349, %c0_350, %c0_351] : memref<8x8x128xf32, #tpu.memory_space<vmem>>, vector<1x8x128xf32>
    %388 = vector.shape_cast %387 : vector<1x8x128xf32> to vector<8x128xf32>
    %389 = arith.subf %388, %339 : vector<8x128xf32>
    %390 = math.exp %389 : vector<8x128xf32>
    %391 = arith.addf %382, %390 : vector<8x128xf32>
    %c5_352 = arith.constant 5 : index
    %c0_353 = arith.constant 0 : index
    %c0_354 = arith.constant 0 : index
    %392 = vector.load %arg8[%c5_352, %c0_353, %c0_354] : memref<8x8x128xf32, #tpu.memory_space<vmem>>, vector<1x8x128xf32>
    %393 = vector.shape_cast %392 : vector<1x8x128xf32> to vector<8x128xf32>
    %394 = arith.mulf %390, %393 : vector<8x128xf32>
    %395 = arith.addf %386, %394 : vector<8x128xf32>
    %c6_355 = arith.constant 6 : index
    %c0_356 = arith.constant 0 : index
    %c0_357 = arith.constant 0 : index
    %396 = vector.load %arg9[%c6_355, %c0_356, %c0_357] : memref<8x8x128xf32, #tpu.memory_space<vmem>>, vector<1x8x128xf32>
    %397 = vector.shape_cast %396 : vector<1x8x128xf32> to vector<8x128xf32>
    %398 = arith.subf %397, %339 : vector<8x128xf32>
    %399 = math.exp %398 : vector<8x128xf32>
    %400 = arith.addf %391, %399 : vector<8x128xf32>
    %c6_358 = arith.constant 6 : index
    %c0_359 = arith.constant 0 : index
    %c0_360 = arith.constant 0 : index
    %401 = vector.load %arg8[%c6_358, %c0_359, %c0_360] : memref<8x8x128xf32, #tpu.memory_space<vmem>>, vector<1x8x128xf32>
    %402 = vector.shape_cast %401 : vector<1x8x128xf32> to vector<8x128xf32>
    %403 = arith.mulf %399, %402 : vector<8x128xf32>
    %404 = arith.addf %395, %403 : vector<8x128xf32>
    %c7_361 = arith.constant 7 : index
    %c0_362 = arith.constant 0 : index
    %c0_363 = arith.constant 0 : index
    %405 = vector.load %arg9[%c7_361, %c0_362, %c0_363] : memref<8x8x128xf32, #tpu.memory_space<vmem>>, vector<1x8x128xf32>
    %406 = vector.shape_cast %405 : vector<1x8x128xf32> to vector<8x128xf32>
    %407 = arith.subf %406, %339 : vector<8x128xf32>
    %408 = math.exp %407 : vector<8x128xf32>
    %409 = arith.addf %400, %408 : vector<8x128xf32>
    %c7_364 = arith.constant 7 : index
    %c0_365 = arith.constant 0 : index
    %c0_366 = arith.constant 0 : index
    %410 = vector.load %arg8[%c7_364, %c0_365, %c0_366] : memref<8x8x128xf32, #tpu.memory_space<vmem>>, vector<1x8x128xf32>
    %411 = vector.shape_cast %410 : vector<1x8x128xf32> to vector<8x128xf32>
    %412 = arith.mulf %408, %411 : vector<8x128xf32>
    %413 = arith.addf %404, %412 : vector<8x128xf32>
    %414 = tpu.reciprocal %409 {approx = true} : vector<8x128xf32> -> vector<8x128xf32>
    %415 = arith.mulf %413, %414 : vector<8x128xf32>
    %416 = arith.mulf %415, %415 : vector<8x128xf32>
    %cst_367 = arith.constant dense<0.000000e+00> : vector<8x128xf32>
    %417 = tpu.matmul %416, %5, %cst_367 {dimension_numbers = #tpu.dot_dimension_numbers<[1], [0], [0], [1], [0, 0, 1, 1], [], []>} : vector<8x128xf32>, vector<128x128xf32>, vector<8x128xf32> -> vector<8x128xf32>
    %cst_368 = arith.constant 9.99999971E-10 : f32
    %418 = vector.broadcast %cst_368 : f32 to vector<8x128xf32>
    %419 = arith.addf %417, %418 : vector<8x128xf32>
    %420 = math.rsqrt %419 : vector<8x128xf32>
    %421 = arith.mulf %417, %420 : vector<8x128xf32>
    %cst_369 = arith.constant 1.000000e+00 : f32
    %422 = vector.broadcast %cst_369 : f32 to vector<8x128xf32>
    %423 = arith.addf %422, %417 : vector<8x128xf32>
    %424 = arith.divf %421, %423 : vector<8x128xf32>
    %425 = arith.mulf %415, %424 : vector<8x128xf32>
    %c0_370 = arith.constant 0 : index
    %c0_371 = arith.constant 0 : index
    %c0_372 = arith.constant 0 : index
    %426 = vector.load %arg7[%c0_370, %c0_371, %c0_372] : memref<8x8x128xf32, #tpu.memory_space<vmem>>, vector<1x8x128xf32>
    %427 = vector.shape_cast %426 : vector<1x8x128xf32> to vector<8x128xf32>
    %428 = arith.mulf %427, %425 : vector<8x128xf32>
    %cst_373 = arith.constant dense<0.000000e+00> : vector<8x128xf32>
    %429 = tpu.matmul %428, %5, %cst_373 {dimension_numbers = #tpu.dot_dimension_numbers<[1], [0], [0], [1], [0, 0, 1, 1], [], []>} : vector<8x128xf32>, vector<128x128xf32>, vector<8x128xf32> -> vector<8x128xf32>
    %c0_374 = arith.constant 0 : index
    %c0_375 = arith.constant 0 : index
    %c0_376 = arith.constant 0 : index
    %430 = vector.load %arg9[%c0_374, %c0_375, %c0_376] : memref<8x8x128xf32, #tpu.memory_space<vmem>>, vector<1x8x128xf32>
    %431 = vector.shape_cast %430 : vector<1x8x128xf32> to vector<8x128xf32>
    %432 = arith.addf %431, %429 : vector<8x128xf32>
    %c0_377 = arith.constant 0 : index
    %c0_378 = arith.constant 0 : index
    %c0_379 = arith.constant 0 : index
    %433 = vector.load %arg9[%c0_377, %c0_378, %c0_379] : memref<8x8x128xf32, #tpu.memory_space<vmem>>, vector<1x8x128xf32>
    %434 = vector.shape_cast %433 : vector<1x8x128xf32> to vector<8x128xf32>
    %435 = vector.shape_cast %432 : vector<8x128xf32> to vector<1x8x128xf32>
    tpu.vector_store %arg9[%c0_377, %c0_378, %c0_379], %435 {strides = array<i32>} : memref<8x8x128xf32, #tpu.memory_space<vmem>>, vector<1x8x128xf32>,
    %c1_380 = arith.constant 1 : index
    %c0_381 = arith.constant 0 : index
    %c0_382 = arith.constant 0 : index
    %436 = vector.load %arg7[%c1_380, %c0_381, %c0_382] : memref<8x8x128xf32, #tpu.memory_space<vmem>>, vector<1x8x128xf32>
    %437 = vector.shape_cast %436 : vector<1x8x128xf32> to vector<8x128xf32>
    %438 = arith.mulf %437, %425 : vector<8x128xf32>
    %cst_383 = arith.constant dense<0.000000e+00> : vector<8x128xf32>
    %439 = tpu.matmul %438, %5, %cst_383 {dimension_numbers = #tpu.dot_dimension_numbers<[1], [0], [0], [1], [0, 0, 1, 1], [], []>} : vector<8x128xf32>, vector<128x128xf32>, vector<8x128xf32> -> vector<8x128xf32>
    %c1_384 = arith.constant 1 : index
    %c0_385 = arith.constant 0 : index
    %c0_386 = arith.constant 0 : index
    %440 = vector.load %arg9[%c1_384, %c0_385, %c0_386] : memref<8x8x128xf32, #tpu.memory_space<vmem>>, vector<1x8x128xf32>
    %441 = vector.shape_cast %440 : vector<1x8x128xf32> to vector<8x128xf32>
    %442 = arith.addf %441, %439 : vector<8x128xf32>
    %c1_387 = arith.constant 1 : index
    %c0_388 = arith.constant 0 : index
    %c0_389 = arith.constant 0 : index
    %443 = vector.load %arg9[%c1_387, %c0_388, %c0_389] : memref<8x8x128xf32, #tpu.memory_space<vmem>>, vector<1x8x128xf32>
    %444 = vector.shape_cast %443 : vector<1x8x128xf32> to vector<8x128xf32>
    %445 = vector.shape_cast %442 : vector<8x128xf32> to vector<1x8x128xf32>
    tpu.vector_store %arg9[%c1_387, %c0_388, %c0_389], %445 {strides = array<i32>} : memref<8x8x128xf32, #tpu.memory_space<vmem>>, vector<1x8x128xf32>,
    %c2_390 = arith.constant 2 : index
    %c0_391 = arith.constant 0 : index
    %c0_392 = arith.constant 0 : index
    %446 = vector.load %arg7[%c2_390, %c0_391, %c0_392] : memref<8x8x128xf32, #tpu.memory_space<vmem>>, vector<1x8x128xf32>
    %447 = vector.shape_cast %446 : vector<1x8x128xf32> to vector<8x128xf32>
    %448 = arith.mulf %447, %425 : vector<8x128xf32>
    %cst_393 = arith.constant dense<0.000000e+00> : vector<8x128xf32>
    %449 = tpu.matmul %448, %5, %cst_393 {dimension_numbers = #tpu.dot_dimension_numbers<[1], [0], [0], [1], [0, 0, 1, 1], [], []>} : vector<8x128xf32>, vector<128x128xf32>, vector<8x128xf32> -> vector<8x128xf32>
    %c2_394 = arith.constant 2 : index
    %c0_395 = arith.constant 0 : index
    %c0_396 = arith.constant 0 : index
    %450 = vector.load %arg9[%c2_394, %c0_395, %c0_396] : memref<8x8x128xf32, #tpu.memory_space<vmem>>, vector<1x8x128xf32>
    %451 = vector.shape_cast %450 : vector<1x8x128xf32> to vector<8x128xf32>
    %452 = arith.addf %451, %449 : vector<8x128xf32>
    %c2_397 = arith.constant 2 : index
    %c0_398 = arith.constant 0 : index
    %c0_399 = arith.constant 0 : index
    %453 = vector.load %arg9[%c2_397, %c0_398, %c0_399] : memref<8x8x128xf32, #tpu.memory_space<vmem>>, vector<1x8x128xf32>
    %454 = vector.shape_cast %453 : vector<1x8x128xf32> to vector<8x128xf32>
    %455 = vector.shape_cast %452 : vector<8x128xf32> to vector<1x8x128xf32>
    tpu.vector_store %arg9[%c2_397, %c0_398, %c0_399], %455 {strides = array<i32>} : memref<8x8x128xf32, #tpu.memory_space<vmem>>, vector<1x8x128xf32>,
    %c3_400 = arith.constant 3 : index
    %c0_401 = arith.constant 0 : index
    %c0_402 = arith.constant 0 : index
    %456 = vector.load %arg7[%c3_400, %c0_401, %c0_402] : memref<8x8x128xf32, #tpu.memory_space<vmem>>, vector<1x8x128xf32>
    %457 = vector.shape_cast %456 : vector<1x8x128xf32> to vector<8x128xf32>
    %458 = arith.mulf %457, %425 : vector<8x128xf32>
    %cst_403 = arith.constant dense<0.000000e+00> : vector<8x128xf32>
    %459 = tpu.matmul %458, %5, %cst_403 {dimension_numbers = #tpu.dot_dimension_numbers<[1], [0], [0], [1], [0, 0, 1, 1], [], []>} : vector<8x128xf32>, vector<128x128xf32>, vector<8x128xf32> -> vector<8x128xf32>
    %c3_404 = arith.constant 3 : index
    %c0_405 = arith.constant 0 : index
    %c0_406 = arith.constant 0 : index
    %460 = vector.load %arg9[%c3_404, %c0_405, %c0_406] : memref<8x8x128xf32, #tpu.memory_space<vmem>>, vector<1x8x128xf32>
    %461 = vector.shape_cast %460 : vector<1x8x128xf32> to vector<8x128xf32>
    %462 = arith.addf %461, %459 : vector<8x128xf32>
    %c3_407 = arith.constant 3 : index
    %c0_408 = arith.constant 0 : index
    %c0_409 = arith.constant 0 : index
    %463 = vector.load %arg9[%c3_407, %c0_408, %c0_409] : memref<8x8x128xf32, #tpu.memory_space<vmem>>, vector<1x8x128xf32>
    %464 = vector.shape_cast %463 : vector<1x8x128xf32> to vector<8x128xf32>
    %465 = vector.shape_cast %462 : vector<8x128xf32> to vector<1x8x128xf32>
    tpu.vector_store %arg9[%c3_407, %c0_408, %c0_409], %465 {strides = array<i32>} : memref<8x8x128xf32, #tpu.memory_space<vmem>>, vector<1x8x128xf32>,
    %c4_410 = arith.constant 4 : index
    %c0_411 = arith.constant 0 : index
    %c0_412 = arith.constant 0 : index
    %466 = vector.load %arg7[%c4_410, %c0_411, %c0_412] : memref<8x8x128xf32, #tpu.memory_space<vmem>>, vector<1x8x128xf32>
    %467 = vector.shape_cast %466 : vector<1x8x128xf32> to vector<8x128xf32>
    %468 = arith.mulf %467, %425 : vector<8x128xf32>
    %cst_413 = arith.constant dense<0.000000e+00> : vector<8x128xf32>
    %469 = tpu.matmul %468, %5, %cst_413 {dimension_numbers = #tpu.dot_dimension_numbers<[1], [0], [0], [1], [0, 0, 1, 1], [], []>} : vector<8x128xf32>, vector<128x128xf32>, vector<8x128xf32> -> vector<8x128xf32>
    %c4_414 = arith.constant 4 : index
    %c0_415 = arith.constant 0 : index
    %c0_416 = arith.constant 0 : index
    %470 = vector.load %arg9[%c4_414, %c0_415, %c0_416] : memref<8x8x128xf32, #tpu.memory_space<vmem>>, vector<1x8x128xf32>
    %471 = vector.shape_cast %470 : vector<1x8x128xf32> to vector<8x128xf32>
    %472 = arith.addf %471, %469 : vector<8x128xf32>
    %c4_417 = arith.constant 4 : index
    %c0_418 = arith.constant 0 : index
    %c0_419 = arith.constant 0 : index
    %473 = vector.load %arg9[%c4_417, %c0_418, %c0_419] : memref<8x8x128xf32, #tpu.memory_space<vmem>>, vector<1x8x128xf32>
    %474 = vector.shape_cast %473 : vector<1x8x128xf32> to vector<8x128xf32>
    %475 = vector.shape_cast %472 : vector<8x128xf32> to vector<1x8x128xf32>
    tpu.vector_store %arg9[%c4_417, %c0_418, %c0_419], %475 {strides = array<i32>} : memref<8x8x128xf32, #tpu.memory_space<vmem>>, vector<1x8x128xf32>,
    %c5_420 = arith.constant 5 : index
    %c0_421 = arith.constant 0 : index
    %c0_422 = arith.constant 0 : index
    %476 = vector.load %arg7[%c5_420, %c0_421, %c0_422] : memref<8x8x128xf32, #tpu.memory_space<vmem>>, vector<1x8x128xf32>
    %477 = vector.shape_cast %476 : vector<1x8x128xf32> to vector<8x128xf32>
    %478 = arith.mulf %477, %425 : vector<8x128xf32>
    %cst_423 = arith.constant dense<0.000000e+00> : vector<8x128xf32>
    %479 = tpu.matmul %478, %5, %cst_423 {dimension_numbers = #tpu.dot_dimension_numbers<[1], [0], [0], [1], [0, 0, 1, 1], [], []>} : vector<8x128xf32>, vector<128x128xf32>, vector<8x128xf32> -> vector<8x128xf32>
    %c5_424 = arith.constant 5 : index
    %c0_425 = arith.constant 0 : index
    %c0_426 = arith.constant 0 : index
    %480 = vector.load %arg9[%c5_424, %c0_425, %c0_426] : memref<8x8x128xf32, #tpu.memory_space<vmem>>, vector<1x8x128xf32>
    %481 = vector.shape_cast %480 : vector<1x8x128xf32> to vector<8x128xf32>
    %482 = arith.addf %481, %479 : vector<8x128xf32>
    %c5_427 = arith.constant 5 : index
    %c0_428 = arith.constant 0 : index
    %c0_429 = arith.constant 0 : index
    %483 = vector.load %arg9[%c5_427, %c0_428, %c0_429] : memref<8x8x128xf32, #tpu.memory_space<vmem>>, vector<1x8x128xf32>
    %484 = vector.shape_cast %483 : vector<1x8x128xf32> to vector<8x128xf32>
    %485 = vector.shape_cast %482 : vector<8x128xf32> to vector<1x8x128xf32>
    tpu.vector_store %arg9[%c5_427, %c0_428, %c0_429], %485 {strides = array<i32>} : memref<8x8x128xf32, #tpu.memory_space<vmem>>, vector<1x8x128xf32>,
    %c6_430 = arith.constant 6 : index
    %c0_431 = arith.constant 0 : index
    %c0_432 = arith.constant 0 : index
    %486 = vector.load %arg7[%c6_430, %c0_431, %c0_432] : memref<8x8x128xf32, #tpu.memory_space<vmem>>, vector<1x8x128xf32>
    %487 = vector.shape_cast %486 : vector<1x8x128xf32> to vector<8x128xf32>
    %488 = arith.mulf %487, %425 : vector<8x128xf32>
    %cst_433 = arith.constant dense<0.000000e+00> : vector<8x128xf32>
    %489 = tpu.matmul %488, %5, %cst_433 {dimension_numbers = #tpu.dot_dimension_numbers<[1], [0], [0], [1], [0, 0, 1, 1], [], []>} : vector<8x128xf32>, vector<128x128xf32>, vector<8x128xf32> -> vector<8x128xf32>
    %c6_434 = arith.constant 6 : index
    %c0_435 = arith.constant 0 : index
    %c0_436 = arith.constant 0 : index
    %490 = vector.load %arg9[%c6_434, %c0_435, %c0_436] : memref<8x8x128xf32, #tpu.memory_space<vmem>>, vector<1x8x128xf32>
    %491 = vector.shape_cast %490 : vector<1x8x128xf32> to vector<8x128xf32>
    %492 = arith.addf %491, %489 : vector<8x128xf32>
    %c6_437 = arith.constant 6 : index
    %c0_438 = arith.constant 0 : index
    %c0_439 = arith.constant 0 : index
    %493 = vector.load %arg9[%c6_437, %c0_438, %c0_439] : memref<8x8x128xf32, #tpu.memory_space<vmem>>, vector<1x8x128xf32>
    %494 = vector.shape_cast %493 : vector<1x8x128xf32> to vector<8x128xf32>
    %495 = vector.shape_cast %492 : vector<8x128xf32> to vector<1x8x128xf32>
    tpu.vector_store %arg9[%c6_437, %c0_438, %c0_439], %495 {strides = array<i32>} : memref<8x8x128xf32, #tpu.memory_space<vmem>>, vector<1x8x128xf32>,
    %c7_440 = arith.constant 7 : index
    %c0_441 = arith.constant 0 : index
    %c0_442 = arith.constant 0 : index
    %496 = vector.load %arg7[%c7_440, %c0_441, %c0_442] : memref<8x8x128xf32, #tpu.memory_space<vmem>>, vector<1x8x128xf32>
    %497 = vector.shape_cast %496 : vector<1x8x128xf32> to vector<8x128xf32>
    %498 = arith.mulf %497, %425 : vector<8x128xf32>
    %cst_443 = arith.constant dense<0.000000e+00> : vector<8x128xf32>
    %499 = tpu.matmul %498, %5, %cst_443 {dimension_numbers = #tpu.dot_dimension_numbers<[1], [0], [0], [1], [0, 0, 1, 1], [], []>} : vector<8x128xf32>, vector<128x128xf32>, vector<8x128xf32> -> vector<8x128xf32>
    %c7_444 = arith.constant 7 : index
    %c0_445 = arith.constant 0 : index
    %c0_446 = arith.constant 0 : index
    %500 = vector.load %arg9[%c7_444, %c0_445, %c0_446] : memref<8x8x128xf32, #tpu.memory_space<vmem>>, vector<1x8x128xf32>
    %501 = vector.shape_cast %500 : vector<1x8x128xf32> to vector<8x128xf32>
    %502 = arith.addf %501, %499 : vector<8x128xf32>
    %c7_447 = arith.constant 7 : index
    %c0_448 = arith.constant 0 : index
    %c0_449 = arith.constant 0 : index
    %503 = vector.load %arg9[%c7_447, %c0_448, %c0_449] : memref<8x8x128xf32, #tpu.memory_space<vmem>>, vector<1x8x128xf32>
    %504 = vector.shape_cast %503 : vector<1x8x128xf32> to vector<8x128xf32>
    %505 = vector.shape_cast %502 : vector<8x128xf32> to vector<1x8x128xf32>
    tpu.vector_store %arg9[%c7_447, %c0_448, %c0_449], %505 {strides = array<i32>} : memref<8x8x128xf32, #tpu.memory_space<vmem>>, vector<1x8x128xf32>,
    %c0_450 = arith.constant 0 : index
    %c0_451 = arith.constant 0 : index
    %c0_452 = arith.constant 0 : index
    %506 = vector.load %arg9[%c0_450, %c0_451, %c0_452] : memref<8x8x128xf32, #tpu.memory_space<vmem>>, vector<1x8x128xf32>
    %507 = vector.shape_cast %506 : vector<1x8x128xf32> to vector<8x128xf32>
    %c1_453 = arith.constant 1 : index
    %c0_454 = arith.constant 0 : index
    %c0_455 = arith.constant 0 : index
    %508 = vector.load %arg9[%c1_453, %c0_454, %c0_455] : memref<8x8x128xf32, #tpu.memory_space<vmem>>, vector<1x8x128xf32>
    %509 = vector.shape_cast %508 : vector<1x8x128xf32> to vector<8x128xf32>
    %510 = arith.maximumf %507, %509 : vector<8x128xf32>
    %c2_456 = arith.constant 2 : index
    %c0_457 = arith.constant 0 : index
    %c0_458 = arith.constant 0 : index
    %511 = vector.load %arg9[%c2_456, %c0_457, %c0_458] : memref<8x8x128xf32, #tpu.memory_space<vmem>>, vector<1x8x128xf32>
    %512 = vector.shape_cast %511 : vector<1x8x128xf32> to vector<8x128xf32>
    %513 = arith.maximumf %510, %512 : vector<8x128xf32>
    %c3_459 = arith.constant 3 : index
    %c0_460 = arith.constant 0 : index
    %c0_461 = arith.constant 0 : index
    %514 = vector.load %arg9[%c3_459, %c0_460, %c0_461] : memref<8x8x128xf32, #tpu.memory_space<vmem>>, vector<1x8x128xf32>
    %515 = vector.shape_cast %514 : vector<1x8x128xf32> to vector<8x128xf32>
    %516 = arith.maximumf %513, %515 : vector<8x128xf32>
    %c4_462 = arith.constant 4 : index
    %c0_463 = arith.constant 0 : index
    %c0_464 = arith.constant 0 : index
    %517 = vector.load %arg9[%c4_462, %c0_463, %c0_464] : memref<8x8x128xf32, #tpu.memory_space<vmem>>, vector<1x8x128xf32>
    %518 = vector.shape_cast %517 : vector<1x8x128xf32> to vector<8x128xf32>
    %519 = arith.maximumf %516, %518 : vector<8x128xf32>
    %c5_465 = arith.constant 5 : index
    %c0_466 = arith.constant 0 : index
    %c0_467 = arith.constant 0 : index
    %520 = vector.load %arg9[%c5_465, %c0_466, %c0_467] : memref<8x8x128xf32, #tpu.memory_space<vmem>>, vector<1x8x128xf32>
    %521 = vector.shape_cast %520 : vector<1x8x128xf32> to vector<8x128xf32>
    %522 = arith.maximumf %519, %521 : vector<8x128xf32>
    %c6_468 = arith.constant 6 : index
    %c0_469 = arith.constant 0 : index
    %c0_470 = arith.constant 0 : index
    %523 = vector.load %arg9[%c6_468, %c0_469, %c0_470] : memref<8x8x128xf32, #tpu.memory_space<vmem>>, vector<1x8x128xf32>
    %524 = vector.shape_cast %523 : vector<1x8x128xf32> to vector<8x128xf32>
    %525 = arith.maximumf %522, %524 : vector<8x128xf32>
    %c7_471 = arith.constant 7 : index
    %c0_472 = arith.constant 0 : index
    %c0_473 = arith.constant 0 : index
    %526 = vector.load %arg9[%c7_471, %c0_472, %c0_473] : memref<8x8x128xf32, #tpu.memory_space<vmem>>, vector<1x8x128xf32>
    %527 = vector.shape_cast %526 : vector<1x8x128xf32> to vector<8x128xf32>
    %528 = arith.maximumf %525, %527 : vector<8x128xf32>
    %cst_474 = arith.constant 0.000000e+00 : f32
    %529 = vector.broadcast %cst_474 : f32 to vector<8x128xf32>
    %cst_475 = arith.constant 0.000000e+00 : f32
    %530 = vector.broadcast %cst_475 : f32 to vector<8x128xf32>
    %c0_476 = arith.constant 0 : index
    %c0_477 = arith.constant 0 : index
    %c0_478 = arith.constant 0 : index
    %531 = vector.load %arg9[%c0_476, %c0_477, %c0_478] : memref<8x8x128xf32, #tpu.memory_space<vmem>>, vector<1x8x128xf32>
    %532 = vector.shape_cast %531 : vector<1x8x128xf32> to vector<8x128xf32>
    %533 = arith.subf %532, %528 : vector<8x128xf32>
    %534 = math.exp %533 : vector<8x128xf32>
    %535 = arith.addf %529, %534 : vector<8x128xf32>
    %c0_479 = arith.constant 0 : index
    %c0_480 = arith.constant 0 : index
    %c0_481 = arith.constant 0 : index
    %536 = vector.load %arg8[%c0_479, %c0_480, %c0_481] : memref<8x8x128xf32, #tpu.memory_space<vmem>>, vector<1x8x128xf32>
    %537 = vector.shape_cast %536 : vector<1x8x128xf32> to vector<8x128xf32>
    %538 = arith.mulf %534, %537 : vector<8x128xf32>
    %539 = arith.addf %530, %538 : vector<8x128xf32>
    %c1_482 = arith.constant 1 : index
    %c0_483 = arith.constant 0 : index
    %c0_484 = arith.constant 0 : index
    %540 = vector.load %arg9[%c1_482, %c0_483, %c0_484] : memref<8x8x128xf32, #tpu.memory_space<vmem>>, vector<1x8x128xf32>
    %541 = vector.shape_cast %540 : vector<1x8x128xf32> to vector<8x128xf32>
    %542 = arith.subf %541, %528 : vector<8x128xf32>
    %543 = math.exp %542 : vector<8x128xf32>
    %544 = arith.addf %535, %543 : vector<8x128xf32>
    %c1_485 = arith.constant 1 : index
    %c0_486 = arith.constant 0 : index
    %c0_487 = arith.constant 0 : index
    %545 = vector.load %arg8[%c1_485, %c0_486, %c0_487] : memref<8x8x128xf32, #tpu.memory_space<vmem>>, vector<1x8x128xf32>
    %546 = vector.shape_cast %545 : vector<1x8x128xf32> to vector<8x128xf32>
    %547 = arith.mulf %543, %546 : vector<8x128xf32>
    %548 = arith.addf %539, %547 : vector<8x128xf32>
    %c2_488 = arith.constant 2 : index
    %c0_489 = arith.constant 0 : index
    %c0_490 = arith.constant 0 : index
    %549 = vector.load %arg9[%c2_488, %c0_489, %c0_490] : memref<8x8x128xf32, #tpu.memory_space<vmem>>, vector<1x8x128xf32>
    %550 = vector.shape_cast %549 : vector<1x8x128xf32> to vector<8x128xf32>
    %551 = arith.subf %550, %528 : vector<8x128xf32>
    %552 = math.exp %551 : vector<8x128xf32>
    %553 = arith.addf %544, %552 : vector<8x128xf32>
    %c2_491 = arith.constant 2 : index
    %c0_492 = arith.constant 0 : index
    %c0_493 = arith.constant 0 : index
    %554 = vector.load %arg8[%c2_491, %c0_492, %c0_493] : memref<8x8x128xf32, #tpu.memory_space<vmem>>, vector<1x8x128xf32>
    %555 = vector.shape_cast %554 : vector<1x8x128xf32> to vector<8x128xf32>
    %556 = arith.mulf %552, %555 : vector<8x128xf32>
    %557 = arith.addf %548, %556 : vector<8x128xf32>
    %c3_494 = arith.constant 3 : index
    %c0_495 = arith.constant 0 : index
    %c0_496 = arith.constant 0 : index
    %558 = vector.load %arg9[%c3_494, %c0_495, %c0_496] : memref<8x8x128xf32, #tpu.memory_space<vmem>>, vector<1x8x128xf32>
    %559 = vector.shape_cast %558 : vector<1x8x128xf32> to vector<8x128xf32>
    %560 = arith.subf %559, %528 : vector<8x128xf32>
    %561 = math.exp %560 : vector<8x128xf32>
    %562 = arith.addf %553, %561 : vector<8x128xf32>
    %c3_497 = arith.constant 3 : index
    %c0_498 = arith.constant 0 : index
    %c0_499 = arith.constant 0 : index
    %563 = vector.load %arg8[%c3_497, %c0_498, %c0_499] : memref<8x8x128xf32, #tpu.memory_space<vmem>>, vector<1x8x128xf32>
    %564 = vector.shape_cast %563 : vector<1x8x128xf32> to vector<8x128xf32>
    %565 = arith.mulf %561, %564 : vector<8x128xf32>
    %566 = arith.addf %557, %565 : vector<8x128xf32>
    %c4_500 = arith.constant 4 : index
    %c0_501 = arith.constant 0 : index
    %c0_502 = arith.constant 0 : index
    %567 = vector.load %arg9[%c4_500, %c0_501, %c0_502] : memref<8x8x128xf32, #tpu.memory_space<vmem>>, vector<1x8x128xf32>
    %568 = vector.shape_cast %567 : vector<1x8x128xf32> to vector<8x128xf32>
    %569 = arith.subf %568, %528 : vector<8x128xf32>
    %570 = math.exp %569 : vector<8x128xf32>
    %571 = arith.addf %562, %570 : vector<8x128xf32>
    %c4_503 = arith.constant 4 : index
    %c0_504 = arith.constant 0 : index
    %c0_505 = arith.constant 0 : index
    %572 = vector.load %arg8[%c4_503, %c0_504, %c0_505] : memref<8x8x128xf32, #tpu.memory_space<vmem>>, vector<1x8x128xf32>
    %573 = vector.shape_cast %572 : vector<1x8x128xf32> to vector<8x128xf32>
    %574 = arith.mulf %570, %573 : vector<8x128xf32>
    %575 = arith.addf %566, %574 : vector<8x128xf32>
    %c5_506 = arith.constant 5 : index
    %c0_507 = arith.constant 0 : index
    %c0_508 = arith.constant 0 : index
    %576 = vector.load %arg9[%c5_506, %c0_507, %c0_508] : memref<8x8x128xf32, #tpu.memory_space<vmem>>, vector<1x8x128xf32>
    %577 = vector.shape_cast %576 : vector<1x8x128xf32> to vector<8x128xf32>
    %578 = arith.subf %577, %528 : vector<8x128xf32>
    %579 = math.exp %578 : vector<8x128xf32>
    %580 = arith.addf %571, %579 : vector<8x128xf32>
    %c5_509 = arith.constant 5 : index
    %c0_510 = arith.constant 0 : index
    %c0_511 = arith.constant 0 : index
    %581 = vector.load %arg8[%c5_509, %c0_510, %c0_511] : memref<8x8x128xf32, #tpu.memory_space<vmem>>, vector<1x8x128xf32>
    %582 = vector.shape_cast %581 : vector<1x8x128xf32> to vector<8x128xf32>
    %583 = arith.mulf %579, %582 : vector<8x128xf32>
    %584 = arith.addf %575, %583 : vector<8x128xf32>
    %c6_512 = arith.constant 6 : index
    %c0_513 = arith.constant 0 : index
    %c0_514 = arith.constant 0 : index
    %585 = vector.load %arg9[%c6_512, %c0_513, %c0_514] : memref<8x8x128xf32, #tpu.memory_space<vmem>>, vector<1x8x128xf32>
    %586 = vector.shape_cast %585 : vector<1x8x128xf32> to vector<8x128xf32>
    %587 = arith.subf %586, %528 : vector<8x128xf32>
    %588 = math.exp %587 : vector<8x128xf32>
    %589 = arith.addf %580, %588 : vector<8x128xf32>
    %c6_515 = arith.constant 6 : index
    %c0_516 = arith.constant 0 : index
    %c0_517 = arith.constant 0 : index
    %590 = vector.load %arg8[%c6_515, %c0_516, %c0_517] : memref<8x8x128xf32, #tpu.memory_space<vmem>>, vector<1x8x128xf32>
    %591 = vector.shape_cast %590 : vector<1x8x128xf32> to vector<8x128xf32>
    %592 = arith.mulf %588, %591 : vector<8x128xf32>
    %593 = arith.addf %584, %592 : vector<8x128xf32>
    %c7_518 = arith.constant 7 : index
    %c0_519 = arith.constant 0 : index
    %c0_520 = arith.constant 0 : index
    %594 = vector.load %arg9[%c7_518, %c0_519, %c0_520] : memref<8x8x128xf32, #tpu.memory_space<vmem>>, vector<1x8x128xf32>
    %595 = vector.shape_cast %594 : vector<1x8x128xf32> to vector<8x128xf32>
    %596 = arith.subf %595, %528 : vector<8x128xf32>
    %597 = math.exp %596 : vector<8x128xf32>
    %598 = arith.addf %589, %597 : vector<8x128xf32>
    %c7_521 = arith.constant 7 : index
    %c0_522 = arith.constant 0 : index
    %c0_523 = arith.constant 0 : index
    %599 = vector.load %arg8[%c7_521, %c0_522, %c0_523] : memref<8x8x128xf32, #tpu.memory_space<vmem>>, vector<1x8x128xf32>
    %600 = vector.shape_cast %599 : vector<1x8x128xf32> to vector<8x128xf32>
    %601 = arith.mulf %597, %600 : vector<8x128xf32>
    %602 = arith.addf %593, %601 : vector<8x128xf32>
    %603 = tpu.reciprocal %598 {approx = true} : vector<8x128xf32> -> vector<8x128xf32>
    %604 = arith.mulf %602, %603 : vector<8x128xf32>
    %605 = arith.mulf %604, %604 : vector<8x128xf32>
    %cst_524 = arith.constant dense<0.000000e+00> : vector<8x128xf32>
    %606 = tpu.matmul %605, %5, %cst_524 {dimension_numbers = #tpu.dot_dimension_numbers<[1], [0], [0], [1], [0, 0, 1, 1], [], []>} : vector<8x128xf32>, vector<128x128xf32>, vector<8x128xf32> -> vector<8x128xf32>
    %cst_525 = arith.constant 9.99999971E-10 : f32
    %607 = vector.broadcast %cst_525 : f32 to vector<8x128xf32>
    %608 = arith.addf %606, %607 : vector<8x128xf32>
    %609 = math.rsqrt %608 : vector<8x128xf32>
    %610 = arith.mulf %606, %609 : vector<8x128xf32>
    %cst_526 = arith.constant 1.000000e+00 : f32
    %611 = vector.broadcast %cst_526 : f32 to vector<8x128xf32>
    %612 = arith.addf %611, %606 : vector<8x128xf32>
    %613 = arith.divf %610, %612 : vector<8x128xf32>
    %614 = arith.mulf %604, %613 : vector<8x128xf32>
    %c0_527 = arith.constant 0 : index
    %c0_528 = arith.constant 0 : index
    %615 = vector.load %arg6[%c0_527, %c0_528] : memref<8x128xf32, #tpu.memory_space<vmem>>, vector<8x128xf32>
    tpu.vector_store %arg6[%c0_527, %c0_528], %614 {strides = array<i32>} : memref<8x128xf32, #tpu.memory_space<vmem>>, vector<8x128xf32>,
    return
  }
  func.func @transform_0(%arg0: i32) -> (i32, i32, i32) {
    %c0_i32 = arith.constant 0 : i32
    %c0_i32_0 = arith.constant 0 : i32
    %c0_i32_1 = arith.constant 0 : i32
    return %c0_i32, %arg0, %c0_i32_0 : i32, i32, i32
  }
  func.func @transform_1(%arg0: i32) -> (i32, i32) {
    %c0_i32 = arith.constant 0 : i32
    %c0_i32_0 = arith.constant 0 : i32
    return %arg0, %c0_i32 : i32, i32
  }
  func.func @transform_2(%arg0: i32) -> (i32, i32, i32) {
    %c0_i32 = arith.constant 0 : i32
    %c0_i32_0 = arith.constant 0 : i32
    %c0_i32_1 = arith.constant 0 : i32
    %c0_i32_2 = arith.constant 0 : i32
    return %c0_i32, %c0_i32_0, %c0_i32_1 : i32, i32, i32
  }
  func.func @transform_3(%arg0: i32) -> (i32, i32) {
    %c0_i32 = arith.constant 0 : i32
    %c0_i32_0 = arith.constant 0 : i32
    %c0_i32_1 = arith.constant 0 : i32
    return %c0_i32, %c0_i32_0 : i32, i32
  }
  func.func @transform_4(%arg0: i32) -> (i32, i32, i32) {
    %c0_i32 = arith.constant 0 : i32
    %c0_i32_0 = arith.constant 0 : i32
    %c0_i32_1 = arith.constant 0 : i32
    %c0_i32_2 = arith.constant 0 : i32
    return %c0_i32, %c0_i32_0, %c0_i32_1 : i32, i32, i32
  }
  func.func @transform_5(%arg0: i32) -> (i32, i32) {
    %c0_i32 = arith.constant 0 : i32
    %c0_i32_0 = arith.constant 0 : i32
    return %arg0, %c0_i32 : i32, i32
  }
}

</mosaic_0001>

<llo_original>
// kernel: tpu_custom_call.1
$region0: #{tpu_custom_call.1}
  #allocation0 [shape = 'u32[]', space=smem, size = 0x4, offset = 0x4, fixed_abs, tag = 'smem constant byte address 0x4 - core index']
  #allocation1 [shape = 'u32[144,128]{1,0:T(1,128)}', space=vmem, size = 0x12000, scoped, tag = 'internal scratch']
  #allocation2 [shape = 'f32[8,8,128]{2,1,0:T(8,128)}', space=vmem, size = 0x8000, scoped, tag = 'scratch operand']
  #allocation3 [shape = 'f32[8,8,128]{2,1,0:T(8,128)}', space=vmem, size = 0x8000, scoped, tag = 'scratch operand']
  #allocation4 [shape = 'f32[8,8,128]{2,1,0:T(8,128)}', space=vmem, size = 0x8000, scoped, tag = 'scratch operand']
  %s0 = inlined_call_operand.hbm [shape: f32[8,8,32], index: 0, kind: input, shape index: {}]
  %s1 = inlined_call_operand.hbm [shape: f32[8,8], index: 1, kind: input, shape index: {}]
  %s2 = inlined_call_operand.hbm [shape: f32[8,32,128], index: 2, kind: input, shape index: {}]
  %s3 = inlined_call_operand.hbm [shape: f32[128,128], index: 3, kind: input, shape index: {}]
  %s4 = inlined_call_operand.hbm [shape: f32[8,8,128], index: 4, kind: input, shape index: {}]
  %s5 = inlined_call_operand.hbm [shape: f32[8,128], index: 5, kind: output, shape index: {}]
  %s6 = sld [smem:[#allocation0]]
  $region50: #{tpu_custom_call.1} parent=0
    _
  %s8 = ssub.s32 1, %s6
  %s9 = scalar_select 0, %s8, %s6
  $region1: #{tpu_custom_call.1} parent=0
    #allocation5 [shape = 'u8[32768]{0}', space=vmem, size = 0x8000, scoped, tag = 'input window, operand 0, single buffered']
    #allocation6 [shape = 's32[1]{0}', space=sflag, size = 0x4, scoped, tag = 'scoped memory for tpu_custom_call.1']
    #allocation7 [shape = 's32[1]{0}', space=sflag, size = 0x4, scoped, tag = 'scoped memory for tpu_custom_call.1']
    #allocation8 [shape = 'u8[4096]{0}', space=vmem, size = 0x1000, scoped, tag = 'input window, operand 1, single buffered']
    #allocation9 [shape = 's32[1]{0}', space=sflag, size = 0x4, scoped, tag = 'scoped memory for tpu_custom_call.1']
    #allocation10 [shape = 'u8[131072]{0}', space=vmem, size = 0x20000, scoped, tag = 'input window, operand 2, single buffered']
    #allocation11 [shape = 'u8[65536]{0}', space=vmem, size = 0x10000, scoped, tag = 'input window, operand 3, single buffered']
    #allocation12 [shape = 's32[1]{0}', space=sflag, size = 0x4, scoped, tag = 'scoped memory for tpu_custom_call.1']
    #allocation13 [shape = 'u8[32768]{0}', space=vmem, size = 0x8000, scoped, tag = 'input window, operand 4, single buffered']
    #allocation14 [shape = 'u8[4096]{0}', space=vmem, size = 0x1000, scoped, tag = 'output window, operand 0, single buffered']
    %10 = vsyncpa [#allocation6], 0
    %11 = vsyncpa [#allocation9], 0
    %12 = vsyncpa [#allocation12], 0
    %13 = vsyncpa [#allocation7], 0
    // Predicated region
    $region2: #{tpu_custom_call.1} parent=1 // pred_check
      _
    $region3: #{tpu_custom_call.1} parent=1 // pred_check_branch
      %15 = sbr.rel (0) target = $region5
    $region4: #{tpu_custom_call.1} parent=1 // pred_region
      %s17 = ssub.s32 1024, 1024
      %18 = vsyncadd [#allocation6], %s17
      %s19 = sshll.u32 [#allocation5], 4
      %s20 = int_to_ptr.vmem [resolvable:$true] %s19
      %25 = dma.hbm_to_vmem [thread:$0]  %s0, 1024, %s20, [#allocation6], 128, 128, 8
    $region5: #{tpu_custom_call.1} parent=1 // pred_fallthru
      _
    // Predicated region
    $region6: #{tpu_custom_call.1} parent=1 // pred_check
      _
    $region7: #{tpu_custom_call.1} parent=1 // pred_check_branch
      %27 = sbr.rel (0) target = $region9
    $region8: #{tpu_custom_call.1} parent=1 // pred_region
      %s29 = ssub.s32 128, 128
      %30 = vsyncadd [#allocation9], %s29
      %s32 = sshll.u32 [#allocation8], 4
      %s33 = int_to_ptr.vmem [resolvable:$true] %s32
      %35 = dma.hbm_to_vmem [thread:$0]  %s1, 128, %s33, [#allocation9]
    $region9: #{tpu_custom_call.1} parent=1 // pred_fallthru
      _
    // Predicated region
    $region10: #{tpu_custom_call.1} parent=1 // pred_check
      _
    $region11: #{tpu_custom_call.1} parent=1 // pred_check_branch
      %37 = sbr.rel (0) target = $region13
    $region12: #{tpu_custom_call.1} parent=1 // pred_region
      %s39 = ssub.s32 4096, 4096
      %40 = vsyncadd [#allocation9], %s39
      %s41 = sshll.u32 [#allocation10], 4
      %s42 = int_to_ptr.vmem [resolvable:$true] %s41
      %47 = dma.hbm_to_vmem [thread:$0]  %s2, 4096, %s42, [#allocation9], 128, 128, 8
    $region13: #{tpu_custom_call.1} parent=1 // pred_fallthru
      _
    // Predicated region
    $region14: #{tpu_custom_call.1} parent=1 // pred_check
      _
    $region15: #{tpu_custom_call.1} parent=1 // pred_check_branch
      %49 = sbr.rel (0) target = $region17
    $region16: #{tpu_custom_call.1} parent=1 // pred_region
      %s51 = ssub.s32 2048, 2048
      %52 = vsyncadd [#allocation12], %s51
      %s53 = sshll.u32 [#allocation11], 4
      %s54 = int_to_ptr.vmem [resolvable:$true] %s53
      %59 = dma.hbm_to_vmem [thread:$0]  %s3, 2048, %s54, [#allocation12], 128, 128, 8
    $region17: #{tpu_custom_call.1} parent=1 // pred_fallthru
      _
    // Predicated region
    $region18: #{tpu_custom_call.1} parent=1 // pred_check
      _
    $region19: #{tpu_custom_call.1} parent=1 // pred_check_branch
      %61 = sbr.rel (0) target = $region21
    $region20: #{tpu_custom_call.1} parent=1 // pred_region
      %s63 = ssub.s32 1024, 1024
      %64 = vsyncadd [#allocation12], %s63
      %s65 = sshll.u32 [#allocation13], 4
      %s66 = int_to_ptr.vmem [resolvable:$true] %s65
      %71 = dma.hbm_to_vmem [thread:$0]  %s4, 1024, %s66, [#allocation12], 128, 128, 8
    $region21: #{tpu_custom_call.1} parent=1 // pred_fallthru
      _
    // Predicated region
    $region22: #{tpu_custom_call.1} parent=1 // pred_check
      _
    $region23: #{tpu_custom_call.1} parent=1 // pred_check_branch
      %73 = sbr.rel (0) target = $region25
    $region24: #{tpu_custom_call.1} parent=1 // pred_region
      %74 = dma.done [#allocation6], 1024
    $region25: #{tpu_custom_call.1} parent=1 // pred_fallthru
      _
    // Predicated region
    $region26: #{tpu_custom_call.1} parent=1 // pred_check
      _
    $region27: #{tpu_custom_call.1} parent=1 // pred_check_branch
      %76 = sbr.rel (0) target = $region29
    $region28: #{tpu_custom_call.1} parent=1 // pred_region
      %77 = dma.done [#allocation9], 128
    $region29: #{tpu_custom_call.1} parent=1 // pred_fallthru
      _
    // Predicated region
    $region30: #{tpu_custom_call.1} parent=1 // pred_check
      _
    $region31: #{tpu_custom_call.1} parent=1 // pred_check_branch
      %79 = sbr.rel (0) target = $region33
    $region32: #{tpu_custom_call.1} parent=1 // pred_region
      %80 = dma.done [#allocation9], 4096
    $region33: #{tpu_custom_call.1} parent=1 // pred_fallthru
      _
    // Predicated region
    $region34: #{tpu_custom_call.1} parent=1 // pred_check
      _
    $region35: #{tpu_custom_call.1} parent=1 // pred_check_branch
      %82 = sbr.rel (0) target = $region37
    $region36: #{tpu_custom_call.1} parent=1 // pred_region
      %83 = dma.done [#allocation12], 2048
    $region37: #{tpu_custom_call.1} parent=1 // pred_fallthru
      _
    // Predicated region
    $region38: #{tpu_custom_call.1} parent=1 // pred_check
      _
    $region39: #{tpu_custom_call.1} parent=1 // pred_check_branch
      %85 = sbr.rel (0) target = $region41
    $region40: #{tpu_custom_call.1} parent=1 // pred_region
      %86 = dma.done [#allocation12], 1024
    $region41: #{tpu_custom_call.1} parent=1 // pred_fallthru
      _
    %v87 = vld [vmem:[#allocation8] sm:$0xff]
    %vm88 = vcmp.ne.f32.partialorder %v87, 0.0
    %v89 = vsel %vm88, 1, 0
    %v90 = vcvt.s32.f32 %v89
    %v91 = vld [vmem:[#allocation11] sm:$0xff]
    %v92 = vld [vmem:[#allocation11 + $0x8] sm:$0xff]
    %v93 = vld [vmem:[#allocation11 + $0x10] sm:$0xff]
    %v94 = vld [vmem:[#allocation11 + $0x18] sm:$0xff]
    %v95 = vld [vmem:[#allocation11 + $0x20] sm:$0xff]
    %v96 = vld [vmem:[#allocation11 + $0x28] sm:$0xff]
    %v97 = vld [vmem:[#allocation11 + $0x30] sm:$0xff]
    %v98 = vld [vmem:[#allocation11 + $0x38] sm:$0xff]
    %v99 = vld [vmem:[#allocation11 + $0x40] sm:$0xff]
    %v100 = vld [vmem:[#allocation11 + $0x48] sm:$0xff]
    %v101 = vld [vmem:[#allocation11 + $0x50] sm:$0xff]
    %v102 = vld [vmem:[#allocation11 + $0x58] sm:$0xff]
    %v103 = vld [vmem:[#allocation11 + $0x60] sm:$0xff]
    %v104 = vld [vmem:[#allocation11 + $0x68] sm:$0xff]
    %v105 = vld [vmem:[#allocation11 + $0x70] sm:$0xff]
    %v106 = vld [vmem:[#allocation11 + $0x78] sm:$0xff]
    %107 = vst [vmem:[#allocation4] sm:$0xff] 0.0
    %108 = vst [vmem:[#allocation4 + $0x8] sm:$0xff] 0.0
    %109 = vst [vmem:[#allocation4 + $0x10] sm:$0xff] 0.0
    %110 = vst [vmem:[#allocation4 + $0x18] sm:$0xff] 0.0
    %111 = vst [vmem:[#allocation4 + $0x20] sm:$0xff] 0.0
    %112 = vst [vmem:[#allocation4 + $0x28] sm:$0xff] 0.0
    %113 = vst [vmem:[#allocation4 + $0x30] sm:$0xff] 0.0
    %114 = vst [vmem:[#allocation4 + $0x38] sm:$0xff] 0.0
    %v115 = vld [vmem:[#allocation5] sm:$0xff]
    %v116 = vld [vmem:[#allocation10] sm:$0xff]
    %v117 = vld [vmem:[#allocation10 + $0x8] sm:$0xff]
    %v118 = vld [vmem:[#allocation10 + $0x10] sm:$0xff]
    %v119 = vld [vmem:[#allocation10 + $0x18] sm:$0xff]
    %vm120 = vcmask 261120
    %v122 = vsel %vm120, %v115, 0
    %124 = vmatprep.subr.mxu0 0.0
    %125 = vmatpush1.msra.mxu0 %v116
    %126 = vmatprep.subr.mxu0 0.0
    %127 = vmatpush1.msra.mxu0 %v117
    %128 = vmatprep.subr.mxu0 0.0
    %129 = vmatpush1.msra.mxu0 %v118
    %130 = vmatprep.subr.mxu0 0.0
    %131 = vmatpush1.msra.mxu0 %v119
    %132 = vmatprep.subr.mxu0 0.0
    %133 = vmatpush1.msra.mxu0 0.0
    %134 = vmatprep.subr.mxu0 0.0
    %135 = vmatpush1.msra.mxu0 0.0
    %136 = vmatprep.subr.mxu0 0.0
    %137 = vmatpush1.msra.mxu0 0.0
    %138 = vmatprep.subr.mxu0 0.0
    %139 = vmatpush1.msra.mxu0 0.0
    %140 = vmatprep.subr.mxu0 0.0
    %141 = vmatpush1.msra.mxu0 0.0
    %142 = vmatprep.subr.mxu0 0.0
    %143 = vmatpush1.msra.mxu0 0.0
    %144 = vmatprep.subr.mxu0 0.0
    %145 = vmatpush1.msra.mxu0 0.0
    %146 = vmatprep.subr.mxu0 0.0
    %147 = vmatpush1.msra.mxu0 0.0
    %148 = vmatprep.subr.mxu0 0.0
    %149 = vmatpush1.msra.mxu0 0.0
    %150 = vmatprep.subr.mxu0 0.0
    %151 = vmatpush1.msra.mxu0 0.0
    %152 = vmatprep.subr.mxu0 0.0
    %153 = vmatpush1.msra.mxu0 0.0
    %154 = vmatprep.subr.mxu0 0.0
    %155 = vmatpush1.msra.mxu0 0.0
    %156 = vmatprep.subr.mxu0 0.0
    %157 = vmatpush1.msra.mxu0 0.0
    %158 = vmatprep.subr.mxu0 0.0
    %159 = vmatpush1.msra.mxu0 0.0
    %160 = vmatprep.subr.mxu0 0.0
    %161 = vmatpush1.msra.mxu0 0.0
    %162 = vmatprep.subr.mxu0 0.0
    %163 = vmatpush1.msra.mxu0 0.0
    %164 = vmatprep.subr.mxu0 0.0
    %165 = vmatpush1.msra.mxu0 0.0
    %166 = vmatprep.subr.mxu0 0.0
    %167 = vmatpush1.msra.mxu0 0.0
    %168 = vmatprep.subr.mxu0 0.0
    %169 = vmatpush1.msra.mxu0 0.0
    %170 = vmatprep.subr.mxu0 0.0
    %171 = vmatpush1.msra.mxu0 0.0
    %172 = vmatprep.subr.mxu0 0.0
    %173 = vmatpush1.msra.mxu0 0.0
    %174 = vmatprep.subr.mxu0 0.0
    %175 = vmatpush1.msra.mxu0 0.0
    %176 = vmatprep.subr.mxu0 0.0
    %177 = vmatpush1.msra.mxu0 0.0
    %178 = vmatprep.subr.mxu0 0.0
    %179 = vmatpush1.msra.mxu0 0.0
    %180 = vmatprep.subr.mxu0 0.0
    %181 = vmatpush1.msra.mxu0 0.0
    %182 = vmatprep.subr.mxu0 0.0
    %183 = vmatpush1.msra.mxu0 0.0
    %184 = vmatprep.subr.mxu0 0.0
    %185 = vmatpush1.msra.mxu0 0.0
    %186 = vmatprep.subr.mxu0 0.0
    %187 = vmatpush1.msra.mxu0 0.0
    %188 = vmatprep.mubr.f32.mxu0 0.0
    %189 = vmatmul.mubr.f32.gmra.mrb[0].mxu0 %v122
    %v190 = vpop.f32.mrb[0].mxu0
    %v191 = vadd.f32 0.0, %v190
    %v192 = vpop.f32.mrb[0].mxu0
    %193 = vdwg.mxu0
    %v194 = vld [vmem:[#allocation13] sm:$0xff]
    %vm195 = vcmask 64512
    %v197 = vsel %vm195, %v90, 0
    %199 = vmatprep.subr.mxu0 0.0
    %200 = vmatpush1.msra.mxu0 %v194
    %201 = vmatprep.subr.mxu0 0.0
    %202 = vmatpush1.msra.mxu0 0.0
    %203 = vmatprep.subr.mxu0 0.0
    %204 = vmatpush1.msra.mxu0 0.0
    %205 = vmatprep.subr.mxu0 0.0
    %206 = vmatpush1.msra.mxu0 0.0
    %207 = vmatprep.subr.mxu0 0.0
    %208 = vmatpush1.msra.mxu0 0.0
    %209 = vmatprep.subr.mxu0 0.0
    %210 = vmatpush1.msra.mxu0 0.0
    %211 = vmatprep.subr.mxu0 0.0
    %212 = vmatpush1.msra.mxu0 0.0
    %213 = vmatprep.subr.mxu0 0.0
    %214 = vmatpush1.msra.mxu0 0.0
    %215 = vmatprep.subr.mxu0 0.0
    %216 = vmatpush1.msra.mxu0 0.0
    %217 = vmatprep.subr.mxu0 0.0
    %218 = vmatpush1.msra.mxu0 0.0
    %219 = vmatprep.subr.mxu0 0.0
    %220 = vmatpush1.msra.mxu0 0.0
    %221 = vmatprep.subr.mxu0 0.0
    %222 = vmatpush1.msra.mxu0 0.0
    %223 = vmatprep.subr.mxu0 0.0
    %224 = vmatpush1.msra.mxu0 0.0
    %225 = vmatprep.subr.mxu0 0.0
    %226 = vmatpush1.msra.mxu0 0.0
    %227 = vmatprep.subr.mxu0 0.0
    %228 = vmatpush1.msra.mxu0 0.0
    %229 = vmatprep.subr.mxu0 0.0
    %230 = vmatpush1.msra.mxu0 0.0
    %231 = vmatprep.subr.mxu0 0.0
    %232 = vmatpush1.msra.mxu0 0.0
    %233 = vmatprep.subr.mxu0 0.0
    %234 = vmatpush1.msra.mxu0 0.0
    %235 = vmatprep.subr.mxu0 0.0
    %236 = vmatpush1.msra.mxu0 0.0
    %237 = vmatprep.subr.mxu0 0.0
    %238 = vmatpush1.msra.mxu0 0.0
    %239 = vmatprep.subr.mxu0 0.0
    %240 = vmatpush1.msra.mxu0 0.0
    %241 = vmatprep.subr.mxu0 0.0
    %242 = vmatpush1.msra.mxu0 0.0
    %243 = vmatprep.subr.mxu0 0.0
    %244 = vmatpush1.msra.mxu0 0.0
    %245 = vmatprep.subr.mxu0 0.0
    %246 = vmatpush1.msra.mxu0 0.0
    %247 = vmatprep.subr.mxu0 0.0
    %248 = vmatpush1.msra.mxu0 0.0
    %249 = vmatprep.subr.mxu0 0.0
    %250 = vmatpush1.msra.mxu0 0.0
    %251 = vmatprep.subr.mxu0 0.0
    %252 = vmatpush1.msra.mxu0 0.0
    %253 = vmatprep.subr.mxu0 0.0
    %254 = vmatpush1.msra.mxu0 0.0
    %255 = vmatprep.subr.mxu0 0.0
    %256 = vmatpush1.msra.mxu0 0.0
    %257 = vmatprep.subr.mxu0 0.0
    %258 = vmatpush1.msra.mxu0 0.0
    %259 = vmatprep.subr.mxu0 0.0
    %260 = vmatpush1.msra.mxu0 0.0
    %261 = vmatprep.subr.mxu0 0.0
    %262 = vmatpush1.msra.mxu0 0.0
    %263 = vmatprep.mubr.f32.mxu0 0.0
    %264 = vmatmul.mubr.f32.gmra.mrb[0].mxu0 %v197
    %v265 = vpop.f32.mrb[0].mxu0
    %v266 = vadd.f32 0.0, %v265
    %v267 = vpop.f32.mrb[0].mxu0
    %268 = vdwg.mxu0
    %269 = vst [vmem:[#allocation2] sm:$0xff] %v191
    %v270 = vmul.f32 %v191, %v266
    %271 = vst [vmem:[#allocation3] sm:$0xff] %v270
    %s272 = scalar_lea.vmem [#allocation5], 8
    %v273 = vld [vmem:[%s272] sm:$0xff]
    %s274 = scalar_lea.vmem [#allocation10], 32
    %v275 = vld [vmem:[%s274] sm:$0xff]
    %v276 = vld [vmem:[%s274 + $0x8] sm:$0xff]
    %v277 = vld [vmem:[%s274 + $0x10] sm:$0xff]
    %v278 = vld [vmem:[%s274 + $0x18] sm:$0xff]
    %v280 = vsel %vm120, %v273, 0
    %282 = vmatprep.subr.mxu0 0.0
    %283 = vmatpush1.msra.mxu0 %v275
    %284 = vmatprep.subr.mxu0 0.0
    %285 = vmatpush1.msra.mxu0 %v276
    %286 = vmatprep.subr.mxu0 0.0
    %287 = vmatpush1.msra.mxu0 %v277
    %288 = vmatprep.subr.mxu0 0.0
    %289 = vmatpush1.msra.mxu0 %v278
    %290 = vmatprep.subr.mxu0 0.0
    %291 = vmatpush1.msra.mxu0 0.0
    %292 = vmatprep.subr.mxu0 0.0
    %293 = vmatpush1.msra.mxu0 0.0
    %294 = vmatprep.subr.mxu0 0.0
    %295 = vmatpush1.msra.mxu0 0.0
    %296 = vmatprep.subr.mxu0 0.0
    %297 = vmatpush1.msra.mxu0 0.0
    %298 = vmatprep.subr.mxu0 0.0
    %299 = vmatpush1.msra.mxu0 0.0
    %300 = vmatprep.subr.mxu0 0.0
    %301 = vmatpush1.msra.mxu0 0.0
    %302 = vmatprep.subr.mxu0 0.0
    %303 = vmatpush1.msra.mxu0 0.0
    %304 = vmatprep.subr.mxu0 0.0
    %305 = vmatpush1.msra.mxu0 0.0
    %306 = vmatprep.subr.mxu0 0.0
    %307 = vmatpush1.msra.mxu0 0.0
    %308 = vmatprep.subr.mxu0 0.0
    %309 = vmatpush1.msra.mxu0 0.0
    %310 = vmatprep.subr.mxu0 0.0
    %311 = vmatpush1.msra.mxu0 0.0
    %312 = vmatprep.subr.mxu0 0.0
    %313 = vmatpush1.msra.mxu0 0.0
    %314 = vmatprep.subr.mxu0 0.0
    %315 = vmatpush1.msra.mxu0 0.0
    %316 = vmatprep.subr.mxu0 0.0
    %317 = vmatpush1.msra.mxu0 0.0
    %318 = vmatprep.subr.mxu0 0.0
    %319 = vmatpush1.msra.mxu0 0.0
    %320 = vmatprep.subr.mxu0 0.0
    %321 = vmatpush1.msra.mxu0 0.0
    %322 = vmatprep.subr.mxu0 0.0
    %323 = vmatpush1.msra.mxu0 0.0
    %324 = vmatprep.subr.mxu0 0.0
    %325 = vmatpush1.msra.mxu0 0.0
    %326 = vmatprep.subr.mxu0 0.0
    %327 = vmatpush1.msra.mxu0 0.0
    %328 = vmatprep.subr.mxu0 0.0
    %329 = vmatpush1.msra.mxu0 0.0
    %330 = vmatprep.subr.mxu0 0.0
    %331 = vmatpush1.msra.mxu0 0.0
    %332 = vmatprep.subr.mxu0 0.0
    %333 = vmatpush1.msra.mxu0 0.0
    %334 = vmatprep.subr.mxu0 0.0
    %335 = vmatpush1.msra.mxu0 0.0
    %336 = vmatprep.subr.mxu0 0.0
    %337 = vmatpush1.msra.mxu0 0.0
    %338 = vmatprep.subr.mxu0 0.0
    %339 = vmatpush1.msra.mxu0 0.0
    %340 = vmatprep.subr.mxu0 0.0
    %341 = vmatpush1.msra.mxu0 0.0
    %342 = vmatprep.subr.mxu0 0.0
    %343 = vmatpush1.msra.mxu0 0.0
    %344 = vmatprep.subr.mxu0 0.0
    %345 = vmatpush1.msra.mxu0 0.0
    %346 = vmatprep.mubr.f32.mxu0 0.0
    %347 = vmatmul.mubr.f32.gmra.mrb[0].mxu0 %v280
    %v348 = vpop.f32.mrb[0].mxu0
    %v349 = vadd.f32 0.0, %v348
    %v350 = vpop.f32.mrb[0].mxu0
    %351 = vdwg.mxu0
    %s352 = scalar_lea.vmem [#allocation13], 8
    %v353 = vld [vmem:[%s352] sm:$0xff]
    %354 = vmatprep.subr.mxu0 0.0
    %355 = vmatpush1.msra.mxu0 %v353
    %356 = vmatprep.subr.mxu0 0.0
    %357 = vmatpush1.msra.mxu0 0.0
    %358 = vmatprep.subr.mxu0 0.0
    %359 = vmatpush1.msra.mxu0 0.0
    %360 = vmatprep.subr.mxu0 0.0
    %361 = vmatpush1.msra.mxu0 0.0
    %362 = vmatprep.subr.mxu0 0.0
    %363 = vmatpush1.msra.mxu0 0.0
    %364 = vmatprep.subr.mxu0 0.0
    %365 = vmatpush1.msra.mxu0 0.0
    %366 = vmatprep.subr.mxu0 0.0
    %367 = vmatpush1.msra.mxu0 0.0
    %368 = vmatprep.subr.mxu0 0.0
    %369 = vmatpush1.msra.mxu0 0.0
    %370 = vmatprep.subr.mxu0 0.0
    %371 = vmatpush1.msra.mxu0 0.0
    %372 = vmatprep.subr.mxu0 0.0
    %373 = vmatpush1.msra.mxu0 0.0
    %374 = vmatprep.subr.mxu0 0.0
    %375 = vmatpush1.msra.mxu0 0.0
    %376 = vmatprep.subr.mxu0 0.0
    %377 = vmatpush1.msra.mxu0 0.0
    %378 = vmatprep.subr.mxu0 0.0
    %379 = vmatpush1.msra.mxu0 0.0
    %380 = vmatprep.subr.mxu0 0.0
    %381 = vmatpush1.msra.mxu0 0.0
    %382 = vmatprep.subr.mxu0 0.0
    %383 = vmatpush1.msra.mxu0 0.0
    %384 = vmatprep.subr.mxu0 0.0
    %385 = vmatpush1.msra.mxu0 0.0
    %386 = vmatprep.subr.mxu0 0.0
    %387 = vmatpush1.msra.mxu0 0.0
    %388 = vmatprep.subr.mxu0 0.0
    %389 = vmatpush1.msra.mxu0 0.0
    %390 = vmatprep.subr.mxu0 0.0
    %391 = vmatpush1.msra.mxu0 0.0
    %392 = vmatprep.subr.mxu0 0.0
    %393 = vmatpush1.msra.mxu0 0.0
    %394 = vmatprep.subr.mxu0 0.0
    %395 = vmatpush1.msra.mxu0 0.0
    %396 = vmatprep.subr.mxu0 0.0
    %397 = vmatpush1.msra.mxu0 0.0
    %398 = vmatprep.subr.mxu0 0.0
    %399 = vmatpush1.msra.mxu0 0.0
    %400 = vmatprep.subr.mxu0 0.0
    %401 = vmatpush1.msra.mxu0 0.0
    %402 = vmatprep.subr.mxu0 0.0
    %403 = vmatpush1.msra.mxu0 0.0
    %404 = vmatprep.subr.mxu0 0.0
    %405 = vmatpush1.msra.mxu0 0.0
    %406 = vmatprep.subr.mxu0 0.0
    %407 = vmatpush1.msra.mxu0 0.0
    %408 = vmatprep.subr.mxu0 0.0
    %409 = vmatpush1.msra.mxu0 0.0
    %410 = vmatprep.subr.mxu0 0.0
    %411 = vmatpush1.msra.mxu0 0.0
    %412 = vmatprep.subr.mxu0 0.0
    %413 = vmatpush1.msra.mxu0 0.0
    %414 = vmatprep.subr.mxu0 0.0
    %415 = vmatpush1.msra.mxu0 0.0
    %416 = vmatprep.subr.mxu0 0.0
    %417 = vmatpush1.msra.mxu0 0.0
    %418 = vmatprep.mubr.f32.mxu0 0.0
    %419 = vmatmul.mubr.f32.gmra.mrb[0].mxu0 %v197
    %v420 = vpop.f32.mrb[0].mxu0
    %v421 = vadd.f32 0.0, %v420
    %v422 = vpop.f32.mrb[0].mxu0
    %423 = vdwg.mxu0
    %s424 = scalar_lea.vmem [#allocation2], 8
    %425 = vst [vmem:[%s424] sm:$0xff] %v349
    %v426 = vmul.f32 %v349, %v421
    %s427 = scalar_lea.vmem [#allocation3], 8
    %428 = vst [vmem:[%s427] sm:$0xff] %v426
    %s429 = scalar_lea.vmem [#allocation5], 16
    %v430 = vld [vmem:[%s429] sm:$0xff]
    %s431 = scalar_lea.vmem [#allocation10], 64
    %v432 = vld [vmem:[%s431] sm:$0xff]
    %v433 = vld [vmem:[%s431 + $0x8] sm:$0xff]
    %v434 = vld [vmem:[%s431 + $0x10] sm:$0xff]
    %v435 = vld [vmem:[%s431 + $0x18] sm:$0xff]
    %v437 = vsel %vm120, %v430, 0
    %439 = vmatprep.subr.mxu0 0.0
    %440 = vmatpush1.msra.mxu0 %v432
    %441 = vmatprep.subr.mxu0 0.0
    %442 = vmatpush1.msra.mxu0 %v433
    %443 = vmatprep.subr.mxu0 0.0
    %444 = vmatpush1.msra.mxu0 %v434
    %445 = vmatprep.subr.mxu0 0.0
    %446 = vmatpush1.msra.mxu0 %v435
    %447 = vmatprep.subr.mxu0 0.0
    %448 = vmatpush1.msra.mxu0 0.0
    %449 = vmatprep.subr.mxu0 0.0
    %450 = vmatpush1.msra.mxu0 0.0
    %451 = vmatprep.subr.mxu0 0.0
    %452 = vmatpush1.msra.mxu0 0.0
    %453 = vmatprep.subr.mxu0 0.0
    %454 = vmatpush1.msra.mxu0 0.0
    %455 = vmatprep.subr.mxu0 0.0
    %456 = vmatpush1.msra.mxu0 0.0
    %457 = vmatprep.subr.mxu0 0.0
    %458 = vmatpush1.msra.mxu0 0.0
    %459 = vmatprep.subr.mxu0 0.0
    %460 = vmatpush1.msra.mxu0 0.0
    %461 = vmatprep.subr.mxu0 0.0
    %462 = vmatpush1.msra.mxu0 0.0
    %463 = vmatprep.subr.mxu0 0.0
    %464 = vmatpush1.msra.mxu0 0.0
    %465 = vmatprep.subr.mxu0 0.0
    %466 = vmatpush1.msra.mxu0 0.0
    %467 = vmatprep.subr.mxu0 0.0
    %468 = vmatpush1.msra.mxu0 0.0
    %469 = vmatprep.subr.mxu0 0.0
    %470 = vmatpush1.msra.mxu0 0.0
    %471 = vmatprep.subr.mxu0 0.0
    %472 = vmatpush1.msra.mxu0 0.0
    %473 = vmatprep.subr.mxu0 0.0
    %474 = vmatpush1.msra.mxu0 0.0
    %475 = vmatprep.subr.mxu0 0.0
    %476 = vmatpush1.msra.mxu0 0.0
    %477 = vmatprep.subr.mxu0 0.0
    %478 = vmatpush1.msra.mxu0 0.0
    %479 = vmatprep.subr.mxu0 0.0
    %480 = vmatpush1.msra.mxu0 0.0
    %481 = vmatprep.subr.mxu0 0.0
    %482 = vmatpush1.msra.mxu0 0.0
    %483 = vmatprep.subr.mxu0 0.0
    %484 = vmatpush1.msra.mxu0 0.0
    %485 = vmatprep.subr.mxu0 0.0
    %486 = vmatpush1.msra.mxu0 0.0
    %487 = vmatprep.subr.mxu0 0.0
    %488 = vmatpush1.msra.mxu0 0.0
    %489 = vmatprep.subr.mxu0 0.0
    %490 = vmatpush1.msra.mxu0 0.0
    %491 = vmatprep.subr.mxu0 0.0
    %492 = vmatpush1.msra.mxu0 0.0
    %493 = vmatprep.subr.mxu0 0.0
    %494 = vmatpush1.msra.mxu0 0.0
    %495 = vmatprep.subr.mxu0 0.0
    %496 = vmatpush1.msra.mxu0 0.0
    %497 = vmatprep.subr.mxu0 0.0
    %498 = vmatpush1.msra.mxu0 0.0
    %499 = vmatprep.subr.mxu0 0.0
    %500 = vmatpush1.msra.mxu0 0.0
    %501 = vmatprep.subr.mxu0 0.0
    %502 = vmatpush1.msra.mxu0 0.0
    %503 = vmatprep.mubr.f32.mxu0 0.0
    %504 = vmatmul.mubr.f32.gmra.mrb[0].mxu0 %v437
    %v505 = vpop.f32.mrb[0].mxu0
    %v506 = vadd.f32 0.0, %v505
    %v507 = vpop.f32.mrb[0].mxu0
    %508 = vdwg.mxu0
    %s509 = scalar_lea.vmem [#allocation13], 16
    %v510 = vld [vmem:[%s509] sm:$0xff]
    %511 = vmatprep.subr.mxu0 0.0
    %512 = vmatpush1.msra.mxu0 %v510
    %513 = vmatprep.subr.mxu0 0.0
    %514 = vmatpush1.msra.mxu0 0.0
    %515 = vmatprep.subr.mxu0 0.0
    %516 = vmatpush1.msra.mxu0 0.0
    %517 = vmatprep.subr.mxu0 0.0
    %518 = vmatpush1.msra.mxu0 0.0
    %519 = vmatprep.subr.mxu0 0.0
    %520 = vmatpush1.msra.mxu0 0.0
    %521 = vmatprep.subr.mxu0 0.0
    %522 = vmatpush1.msra.mxu0 0.0
    %523 = vmatprep.subr.mxu0 0.0
    %524 = vmatpush1.msra.mxu0 0.0
    %525 = vmatprep.subr.mxu0 0.0
    %526 = vmatpush1.msra.mxu0 0.0
    %527 = vmatprep.subr.mxu0 0.0
    %528 = vmatpush1.msra.mxu0 0.0
    %529 = vmatprep.subr.mxu0 0.0
    %530 = vmatpush1.msra.mxu0 0.0
    %531 = vmatprep.subr.mxu0 0.0
    %532 = vmatpush1.msra.mxu0 0.0
    %533 = vmatprep.subr.mxu0 0.0
    %534 = vmatpush1.msra.mxu0 0.0
    %535 = vmatprep.subr.mxu0 0.0
    %536 = vmatpush1.msra.mxu0 0.0
    %537 = vmatprep.subr.mxu0 0.0
    %538 = vmatpush1.msra.mxu0 0.0
    %539 = vmatprep.subr.mxu0 0.0
    %540 = vmatpush1.msra.mxu0 0.0
    %541 = vmatprep.subr.mxu0 0.0
    %542 = vmatpush1.msra.mxu0 0.0
    %543 = vmatprep.subr.mxu0 0.0
    %544 = vmatpush1.msra.mxu0 0.0
    %545 = vmatprep.subr.mxu0 0.0
    %546 = vmatpush1.msra.mxu0 0.0
    %547 = vmatprep.subr.mxu0 0.0
    %548 = vmatpush1.msra.mxu0 0.0
    %549 = vmatprep.subr.mxu0 0.0
    %550 = vmatpush1.msra.mxu0 0.0
    %551 = vmatprep.subr.mxu0 0.0
    %552 = vmatpush1.msra.mxu0 0.0
    %553 = vmatprep.subr.mxu0 0.0
    %554 = vmatpush1.msra.mxu0 0.0
    %555 = vmatprep.subr.mxu0 0.0
    %556 = vmatpush1.msra.mxu0 0.0
    %557 = vmatprep.subr.mxu0 0.0
    %558 = vmatpush1.msra.mxu0 0.0
    %559 = vmatprep.subr.mxu0 0.0
    %560 = vmatpush1.msra.mxu0 0.0
    %561 = vmatprep.subr.mxu0 0.0
    %562 = vmatpush1.msra.mxu0 0.0
    %563 = vmatprep.subr.mxu0 0.0
    %564 = vmatpush1.msra.mxu0 0.0
    %565 = vmatprep.subr.mxu0 0.0
    %566 = vmatpush1.msra.mxu0 0.0
    %567 = vmatprep.subr.mxu0 0.0
    %568 = vmatpush1.msra.mxu0 0.0
    %569 = vmatprep.subr.mxu0 0.0
    %570 = vmatpush1.msra.mxu0 0.0
    %571 = vmatprep.subr.mxu0 0.0
    %572 = vmatpush1.msra.mxu0 0.0
    %573 = vmatprep.subr.mxu0 0.0
    %574 = vmatpush1.msra.mxu0 0.0
    %575 = vmatprep.mubr.f32.mxu0 0.0
    %576 = vmatmul.mubr.f32.gmra.mrb[0].mxu0 %v197
    %v577 = vpop.f32.mrb[0].mxu0
    %v578 = vadd.f32 0.0, %v577
    %v579 = vpop.f32.mrb[0].mxu0
    %580 = vdwg.mxu0
    %s581 = scalar_lea.vmem [#allocation2], 16
    %582 = vst [vmem:[%s581] sm:$0xff] %v506
    %v583 = vmul.f32 %v506, %v578
    %s584 = scalar_lea.vmem [#allocation3], 16
    %585 = vst [vmem:[%s584] sm:$0xff] %v583
    %s586 = scalar_lea.vmem [#allocation5], 24
    %v587 = vld [vmem:[%s586] sm:$0xff]
    %s588 = scalar_lea.vmem [#allocation10], 96
    %v589 = vld [vmem:[%s588] sm:$0xff]
    %v590 = vld [vmem:[%s588 + $0x8] sm:$0xff]
    %v591 = vld [vmem:[%s588 + $0x10] sm:$0xff]
    %v592 = vld [vmem:[%s588 + $0x18] sm:$0xff]
    %v594 = vsel %vm120, %v587, 0
    %596 = vmatprep.subr.mxu0 0.0
    %597 = vmatpush1.msra.mxu0 %v589
    %598 = vmatprep.subr.mxu0 0.0
    %599 = vmatpush1.msra.mxu0 %v590
    %600 = vmatprep.subr.mxu0 0.0
    %601 = vmatpush1.msra.mxu0 %v591
    %602 = vmatprep.subr.mxu0 0.0
    %603 = vmatpush1.msra.mxu0 %v592
    %604 = vmatprep.subr.mxu0 0.0
    %605 = vmatpush1.msra.mxu0 0.0
    %606 = vmatprep.subr.mxu0 0.0
    %607 = vmatpush1.msra.mxu0 0.0
    %608 = vmatprep.subr.mxu0 0.0
    %609 = vmatpush1.msra.mxu0 0.0
    %610 = vmatprep.subr.mxu0 0.0
    %611 = vmatpush1.msra.mxu0 0.0
    %612 = vmatprep.subr.mxu0 0.0
    %613 = vmatpush1.msra.mxu0 0.0
    %614 = vmatprep.subr.mxu0 0.0
    %615 = vmatpush1.msra.mxu0 0.0
    %616 = vmatprep.subr.mxu0 0.0
    %617 = vmatpush1.msra.mxu0 0.0
    %618 = vmatprep.subr.mxu0 0.0
    %619 = vmatpush1.msra.mxu0 0.0
    %620 = vmatprep.subr.mxu0 0.0
    %621 = vmatpush1.msra.mxu0 0.0
    %622 = vmatprep.subr.mxu0 0.0
    %623 = vmatpush1.msra.mxu0 0.0
    %624 = vmatprep.subr.mxu0 0.0
    %625 = vmatpush1.msra.mxu0 0.0
    %626 = vmatprep.subr.mxu0 0.0
    %627 = vmatpush1.msra.mxu0 0.0
    %628 = vmatprep.subr.mxu0 0.0
    %629 = vmatpush1.msra.mxu0 0.0
    %630 = vmatprep.subr.mxu0 0.0
    %631 = vmatpush1.msra.mxu0 0.0
    %632 = vmatprep.subr.mxu0 0.0
    %633 = vmatpush1.msra.mxu0 0.0
    %634 = vmatprep.subr.mxu0 0.0
    %635 = vmatpush1.msra.mxu0 0.0
    %636 = vmatprep.subr.mxu0 0.0
    %637 = vmatpush1.msra.mxu0 0.0
    %638 = vmatprep.subr.mxu0 0.0
    %639 = vmatpush1.msra.mxu0 0.0
    %640 = vmatprep.subr.mxu0 0.0
    %641 = vmatpush1.msra.mxu0 0.0
    %642 = vmatprep.subr.mxu0 0.0
    %643 = vmatpush1.msra.mxu0 0.0
    %644 = vmatprep.subr.mxu0 0.0
    %645 = vmatpush1.msra.mxu0 0.0
    %646 = vmatprep.subr.mxu0 0.0
    %647 = vmatpush1.msra.mxu0 0.0
    %648 = vmatprep.subr.mxu0 0.0
    %649 = vmatpush1.msra.mxu0 0.0
    %650 = vmatprep.subr.mxu0 0.0
    %651 = vmatpush1.msra.mxu0 0.0
    %652 = vmatprep.subr.mxu0 0.0
    %653 = vmatpush1.msra.mxu0 0.0
    %654 = vmatprep.subr.mxu0 0.0
    %655 = vmatpush1.msra.mxu0 0.0
    %656 = vmatprep.subr.mxu0 0.0
    %657 = vmatpush1.msra.mxu0 0.0
    %658 = vmatprep.subr.mxu0 0.0
    %659 = vmatpush1.msra.mxu0 0.0
    %660 = vmatprep.mubr.f32.mxu0 0.0
    %661 = vmatmul.mubr.f32.gmra.mrb[0].mxu0 %v594
    %v662 = vpop.f32.mrb[0].mxu0
    %v663 = vadd.f32 0.0, %v662
    %v664 = vpop.f32.mrb[0].mxu0
    %665 = vdwg.mxu0
    %s666 = scalar_lea.vmem [#allocation13], 24
    %v667 = vld [vmem:[%s666] sm:$0xff]
    %668 = vmatprep.subr.mxu0 0.0
    %669 = vmatpush1.msra.mxu0 %v667
    %670 = vmatprep.subr.mxu0 0.0
    %671 = vmatpush1.msra.mxu0 0.0
    %672 = vmatprep.subr.mxu0 0.0
    %673 = vmatpush1.msra.mxu0 0.0
    %674 = vmatprep.subr.mxu0 0.0
    %675 = vmatpush1.msra.mxu0 0.0
    %676 = vmatprep.subr.mxu0 0.0
    %677 = vmatpush1.msra.mxu0 0.0
    %678 = vmatprep.subr.mxu0 0.0
    %679 = vmatpush1.msra.mxu0 0.0
    %680 = vmatprep.subr.mxu0 0.0
    %681 = vmatpush1.msra.mxu0 0.0
    %682 = vmatprep.subr.mxu0 0.0
    %683 = vmatpush1.msra.mxu0 0.0
    %684 = vmatprep.subr.mxu0 0.0
    %685 = vmatpush1.msra.mxu0 0.0
    %686 = vmatprep.subr.mxu0 0.0
    %687 = vmatpush1.msra.mxu0 0.0
    %688 = vmatprep.subr.mxu0 0.0
    %689 = vmatpush1.msra.mxu0 0.0
    %690 = vmatprep.subr.mxu0 0.0
    %691 = vmatpush1.msra.mxu0 0.0
    %692 = vmatprep.subr.mxu0 0.0
    %693 = vmatpush1.msra.mxu0 0.0
    %694 = vmatprep.subr.mxu0 0.0
    %695 = vmatpush1.msra.mxu0 0.0
    %696 = vmatprep.subr.mxu0 0.0
    %697 = vmatpush1.msra.mxu0 0.0
    %698 = vmatprep.subr.mxu0 0.0
    %699 = vmatpush1.msra.mxu0 0.0
    %700 = vmatprep.subr.mxu0 0.0
    %701 = vmatpush1.msra.mxu0 0.0
    %702 = vmatprep.subr.mxu0 0.0
    %703 = vmatpush1.msra.mxu0 0.0
    %704 = vmatprep.subr.mxu0 0.0
    %705 = vmatpush1.msra.mxu0 0.0
    %706 = vmatprep.subr.mxu0 0.0
    %707 = vmatpush1.msra.mxu0 0.0
    %708 = vmatprep.subr.mxu0 0.0
    %709 = vmatpush1.msra.mxu0 0.0
    %710 = vmatprep.subr.mxu0 0.0
    %711 = vmatpush1.msra.mxu0 0.0
    %712 = vmatprep.subr.mxu0 0.0
    %713 = vmatpush1.msra.mxu0 0.0
    %714 = vmatprep.subr.mxu0 0.0
    %715 = vmatpush1.msra.mxu0 0.0
    %716 = vmatprep.subr.mxu0 0.0
    %717 = vmatpush1.msra.mxu0 0.0
    %718 = vmatprep.subr.mxu0 0.0
    %719 = vmatpush1.msra.mxu0 0.0
    %720 = vmatprep.subr.mxu0 0.0
    %721 = vmatpush1.msra.mxu0 0.0
    %722 = vmatprep.subr.mxu0 0.0
    %723 = vmatpush1.msra.mxu0 0.0
    %724 = vmatprep.subr.mxu0 0.0
    %725 = vmatpush1.msra.mxu0 0.0
    %726 = vmatprep.subr.mxu0 0.0
    %727 = vmatpush1.msra.mxu0 0.0
    %728 = vmatprep.subr.mxu0 0.0
    %729 = vmatpush1.msra.mxu0 0.0
    %730 = vmatprep.subr.mxu0 0.0
    %731 = vmatpush1.msra.mxu0 0.0
    %732 = vmatprep.mubr.f32.mxu0 0.0
    %733 = vmatmul.mubr.f32.gmra.mrb[0].mxu0 %v197
    %v734 = vpop.f32.mrb[0].mxu0
    %v735 = vadd.f32 0.0, %v734
    %v736 = vpop.f32.mrb[0].mxu0
    %737 = vdwg.mxu0
    %s738 = scalar_lea.vmem [#allocation2], 24
    %739 = vst [vmem:[%s738] sm:$0xff] %v663
    %v740 = vmul.f32 %v663, %v735
    %s741 = scalar_lea.vmem [#allocation3], 24
    %742 = vst [vmem:[%s741] sm:$0xff] %v740
    %s743 = scalar_lea.vmem [#allocation5], 32
    %v744 = vld [vmem:[%s743] sm:$0xff]
    %s745 = scalar_lea.vmem [#allocation10], 128
    %v746 = vld [vmem:[%s745] sm:$0xff]
    %v747 = vld [vmem:[%s745 + $0x8] sm:$0xff]
    %v748 = vld [vmem:[%s745 + $0x10] sm:$0xff]
    %v749 = vld [vmem:[%s745 + $0x18] sm:$0xff]
    %v751 = vsel %vm120, %v744, 0
    %753 = vmatprep.subr.mxu0 0.0
    %754 = vmatpush1.msra.mxu0 %v746
    %755 = vmatprep.subr.mxu0 0.0
    %756 = vmatpush1.msra.mxu0 %v747
    %757 = vmatprep.subr.mxu0 0.0
    %758 = vmatpush1.msra.mxu0 %v748
    %759 = vmatprep.subr.mxu0 0.0
    %760 = vmatpush1.msra.mxu0 %v749
    %761 = vmatprep.subr.mxu0 0.0
    %762 = vmatpush1.msra.mxu0 0.0
    %763 = vmatprep.subr.mxu0 0.0
    %764 = vmatpush1.msra.mxu0 0.0
    %765 = vmatprep.subr.mxu0 0.0
    %766 = vmatpush1.msra.mxu0 0.0
    %767 = vmatprep.subr.mxu0 0.0
    %768 = vmatpush1.msra.mxu0 0.0
    %769 = vmatprep.subr.mxu0 0.0
    %770 = vmatpush1.msra.mxu0 0.0
    %771 = vmatprep.subr.mxu0 0.0
    %772 = vmatpush1.msra.mxu0 0.0
    %773 = vmatprep.subr.mxu0 0.0
    %774 = vmatpush1.msra.mxu0 0.0
    %775 = vmatprep.subr.mxu0 0.0
    %776 = vmatpush1.msra.mxu0 0.0
    %777 = vmatprep.subr.mxu0 0.0
    %778 = vmatpush1.msra.mxu0 0.0
    %779 = vmatprep.subr.mxu0 0.0
    %780 = vmatpush1.msra.mxu0 0.0
    %781 = vmatprep.subr.mxu0 0.0
    %782 = vmatpush1.msra.mxu0 0.0
    %783 = vmatprep.subr.mxu0 0.0
    %784 = vmatpush1.msra.mxu0 0.0
    %785 = vmatprep.subr.mxu0 0.0
    %786 = vmatpush1.msra.mxu0 0.0
    %787 = vmatprep.subr.mxu0 0.0
    %788 = vmatpush1.msra.mxu0 0.0
    %789 = vmatprep.subr.mxu0 0.0
    %790 = vmatpush1.msra.mxu0 0.0
    %791 = vmatprep.subr.mxu0 0.0
    %792 = vmatpush1.msra.mxu0 0.0
    %793 = vmatprep.subr.mxu0 0.0
    %794 = vmatpush1.msra.mxu0 0.0
    %795 = vmatprep.subr.mxu0 0.0
    %796 = vmatpush1.msra.mxu0 0.0
    %797 = vmatprep.subr.mxu0 0.0
    %798 = vmatpush1.msra.mxu0 0.0
    %799 = vmatprep.subr.mxu0 0.0
    %800 = vmatpush1.msra.mxu0 0.0
    %801 = vmatprep.subr.mxu0 0.0
    %802 = vmatpush1.msra.mxu0 0.0
    %803 = vmatprep.subr.mxu0 0.0
    %804 = vmatpush1.msra.mxu0 0.0
    %805 = vmatprep.subr.mxu0 0.0
    %806 = vmatpush1.msra.mxu0 0.0
    %807 = vmatprep.subr.mxu0 0.0
    %808 = vmatpush1.msra.mxu0 0.0
    %809 = vmatprep.subr.mxu0 0.0
    %810 = vmatpush1.msra.mxu0 0.0
    %811 = vmatprep.subr.mxu0 0.0
    %812 = vmatpush1.msra.mxu0 0.0
    %813 = vmatprep.subr.mxu0 0.0
    %814 = vmatpush1.msra.mxu0 0.0
    %815 = vmatprep.subr.mxu0 0.0
    %816 = vmatpush1.msra.mxu0 0.0
    %817 = vmatprep.mubr.f32.mxu0 0.0
    %818 = vmatmul.mubr.f32.gmra.mrb[0].mxu0 %v751
    %v819 = vpop.f32.mrb[0].mxu0
    %v820 = vadd.f32 0.0, %v819
    %v821 = vpop.f32.mrb[0].mxu0
    %822 = vdwg.mxu0
    %s823 = scalar_lea.vmem [#allocation13], 32
    %v824 = vld [vmem:[%s823] sm:$0xff]
    %825 = vmatprep.subr.mxu0 0.0
    %826 = vmatpush1.msra.mxu0 %v824
    %827 = vmatprep.subr.mxu0 0.0
    %828 = vmatpush1.msra.mxu0 0.0
    %829 = vmatprep.subr.mxu0 0.0
    %830 = vmatpush1.msra.mxu0 0.0
    %831 = vmatprep.subr.mxu0 0.0
    %832 = vmatpush1.msra.mxu0 0.0
    %833 = vmatprep.subr.mxu0 0.0
    %834 = vmatpush1.msra.mxu0 0.0
    %835 = vmatprep.subr.mxu0 0.0
    %836 = vmatpush1.msra.mxu0 0.0
    %837 = vmatprep.subr.mxu0 0.0
    %838 = vmatpush1.msra.mxu0 0.0
    %839 = vmatprep.subr.mxu0 0.0
    %840 = vmatpush1.msra.mxu0 0.0
    %841 = vmatprep.subr.mxu0 0.0
    %842 = vmatpush1.msra.mxu0 0.0
    %843 = vmatprep.subr.mxu0 0.0
    %844 = vmatpush1.msra.mxu0 0.0
    %845 = vmatprep.subr.mxu0 0.0
    %846 = vmatpush1.msra.mxu0 0.0
    %847 = vmatprep.subr.mxu0 0.0
    %848 = vmatpush1.msra.mxu0 0.0
    %849 = vmatprep.subr.mxu0 0.0
    %850 = vmatpush1.msra.mxu0 0.0
    %851 = vmatprep.subr.mxu0 0.0
    %852 = vmatpush1.msra.mxu0 0.0
    %853 = vmatprep.subr.mxu0 0.0
    %854 = vmatpush1.msra.mxu0 0.0
    %855 = vmatprep.subr.mxu0 0.0
    %856 = vmatpush1.msra.mxu0 0.0
    %857 = vmatprep.subr.mxu0 0.0
    %858 = vmatpush1.msra.mxu0 0.0
    %859 = vmatprep.subr.mxu0 0.0
    %860 = vmatpush1.msra.mxu0 0.0
    %861 = vmatprep.subr.mxu0 0.0
    %862 = vmatpush1.msra.mxu0 0.0
    %863 = vmatprep.subr.mxu0 0.0
    %864 = vmatpush1.msra.mxu0 0.0
    %865 = vmatprep.subr.mxu0 0.0
    %866 = vmatpush1.msra.mxu0 0.0
    %867 = vmatprep.subr.mxu0 0.0
    %868 = vmatpush1.msra.mxu0 0.0
    %869 = vmatprep.subr.mxu0 0.0
    %870 = vmatpush1.msra.mxu0 0.0
    %871 = vmatprep.subr.mxu0 0.0
    %872 = vmatpush1.msra.mxu0 0.0
    %873 = vmatprep.subr.mxu0 0.0
    %874 = vmatpush1.msra.mxu0 0.0
    %875 = vmatprep.subr.mxu0 0.0
    %876 = vmatpush1.msra.mxu0 0.0
    %877 = vmatprep.subr.mxu0 0.0
    %878 = vmatpush1.msra.mxu0 0.0
    %879 = vmatprep.subr.mxu0 0.0
    %880 = vmatpush1.msra.mxu0 0.0
    %881 = vmatprep.subr.mxu0 0.0
    %882 = vmatpush1.msra.mxu0 0.0
    %883 = vmatprep.subr.mxu0 0.0
    %884 = vmatpush1.msra.mxu0 0.0
    %885 = vmatprep.subr.mxu0 0.0
    %886 = vmatpush1.msra.mxu0 0.0
    %887 = vmatprep.subr.mxu0 0.0
    %888 = vmatpush1.msra.mxu0 0.0
    %889 = vmatprep.mubr.f32.mxu0 0.0
    %890 = vmatmul.mubr.f32.gmra.mrb[0].mxu0 %v197
    %v891 = vpop.f32.mrb[0].mxu0
    %v892 = vadd.f32 0.0, %v891
    %v893 = vpop.f32.mrb[0].mxu0
    %894 = vdwg.mxu0
    %s895 = scalar_lea.vmem [#allocation2], 32
    %896 = vst [vmem:[%s895] sm:$0xff] %v820
    %v897 = vmul.f32 %v820, %v892
    %s898 = scalar_lea.vmem [#allocation3], 32
    %899 = vst [vmem:[%s898] sm:$0xff] %v897
    %s900 = scalar_lea.vmem [#allocation5], 40
    %v901 = vld [vmem:[%s900] sm:$0xff]
    %s902 = scalar_lea.vmem [#allocation10], 160
    %v903 = vld [vmem:[%s902] sm:$0xff]
    %v904 = vld [vmem:[%s902 + $0x8] sm:$0xff]
    %v905 = vld [vmem:[%s902 + $0x10] sm:$0xff]
    %v906 = vld [vmem:[%s902 + $0x18] sm:$0xff]
    %v908 = vsel %vm120, %v901, 0
    %910 = vmatprep.subr.mxu0 0.0
    %911 = vmatpush1.msra.mxu0 %v903
    %912 = vmatprep.subr.mxu0 0.0
    %913 = vmatpush1.msra.mxu0 %v904
    %914 = vmatprep.subr.mxu0 0.0
    %915 = vmatpush1.msra.mxu0 %v905
    %916 = vmatprep.subr.mxu0 0.0
    %917 = vmatpush1.msra.mxu0 %v906
    %918 = vmatprep.subr.mxu0 0.0
    %919 = vmatpush1.msra.mxu0 0.0
    %920 = vmatprep.subr.mxu0 0.0
    %921 = vmatpush1.msra.mxu0 0.0
    %922 = vmatprep.subr.mxu0 0.0
    %923 = vmatpush1.msra.mxu0 0.0
    %924 = vmatprep.subr.mxu0 0.0
    %925 = vmatpush1.msra.mxu0 0.0
    %926 = vmatprep.subr.mxu0 0.0
    %927 = vmatpush1.msra.mxu0 0.0
    %928 = vmatprep.subr.mxu0 0.0
    %929 = vmatpush1.msra.mxu0 0.0
    %930 = vmatprep.subr.mxu0 0.0
    %931 = vmatpush1.msra.mxu0 0.0
    %932 = vmatprep.subr.mxu0 0.0
    %933 = vmatpush1.msra.mxu0 0.0
    %934 = vmatprep.subr.mxu0 0.0
    %935 = vmatpush1.msra.mxu0 0.0
    %936 = vmatprep.subr.mxu0 0.0
    %937 = vmatpush1.msra.mxu0 0.0
    %938 = vmatprep.subr.mxu0 0.0
    %939 = vmatpush1.msra.mxu0 0.0
    %940 = vmatprep.subr.mxu0 0.0
    %941 = vmatpush1.msra.mxu0 0.0
    %942 = vmatprep.subr.mxu0 0.0
    %943 = vmatpush1.msra.mxu0 0.0
    %944 = vmatprep.subr.mxu0 0.0
    %945 = vmatpush1.msra.mxu0 0.0
    %946 = vmatprep.subr.mxu0 0.0
    %947 = vmatpush1.msra.mxu0 0.0
    %948 = vmatprep.subr.mxu0 0.0
    %949 = vmatpush1.msra.mxu0 0.0
    %950 = vmatprep.subr.mxu0 0.0
    %951 = vmatpush1.msra.mxu0 0.0
    %952 = vmatprep.subr.mxu0 0.0
    %953 = vmatpush1.msra.mxu0 0.0
    %954 = vmatprep.subr.mxu0 0.0
    %955 = vmatpush1.msra.mxu0 0.0
    %956 = vmatprep.subr.mxu0 0.0
    %957 = vmatpush1.msra.mxu0 0.0
    %958 = vmatprep.subr.mxu0 0.0
    %959 = vmatpush1.msra.mxu0 0.0
    %960 = vmatprep.subr.mxu0 0.0
    %961 = vmatpush1.msra.mxu0 0.0
    %962 = vmatprep.subr.mxu0 0.0
    %963 = vmatpush1.msra.mxu0 0.0
    %964 = vmatprep.subr.mxu0 0.0
    %965 = vmatpush1.msra.mxu0 0.0
    %966 = vmatprep.subr.mxu0 0.0
    %967 = vmatpush1.msra.mxu0 0.0
    %968 = vmatprep.subr.mxu0 0.0
    %969 = vmatpush1.msra.mxu0 0.0
    %970 = vmatprep.subr.mxu0 0.0
    %971 = vmatpush1.msra.mxu0 0.0
    %972 = vmatprep.subr.mxu0 0.0
    %973 = vmatpush1.msra.mxu0 0.0
    %974 = vmatprep.mubr.f32.mxu0 0.0
    %975 = vmatmul.mubr.f32.gmra.mrb[0].mxu0 %v908
    %v976 = vpop.f32.mrb[0].mxu0
    %v977 = vadd.f32 0.0, %v976
    %v978 = vpop.f32.mrb[0].mxu0
    %979 = vdwg.mxu0
    %s980 = scalar_lea.vmem [#allocation13], 40
    %v981 = vld [vmem:[%s980] sm:$0xff]
    %982 = vmatprep.subr.mxu0 0.0
    %983 = vmatpush1.msra.mxu0 %v981
    %984 = vmatprep.subr.mxu0 0.0
    %985 = vmatpush1.msra.mxu0 0.0
    %986 = vmatprep.subr.mxu0 0.0
    %987 = vmatpush1.msra.mxu0 0.0
    %988 = vmatprep.subr.mxu0 0.0
    %989 = vmatpush1.msra.mxu0 0.0
    %990 = vmatprep.subr.mxu0 0.0
    %991 = vmatpush1.msra.mxu0 0.0
    %992 = vmatprep.subr.mxu0 0.0
    %993 = vmatpush1.msra.mxu0 0.0
    %994 = vmatprep.subr.mxu0 0.0
    %995 = vmatpush1.msra.mxu0 0.0
    %996 = vmatprep.subr.mxu0 0.0
    %997 = vmatpush1.msra.mxu0 0.0
    %998 = vmatprep.subr.mxu0 0.0
    %999 = vmatpush1.msra.mxu0 0.0
    %1000 = vmatprep.subr.mxu0 0.0
    %1001 = vmatpush1.msra.mxu0 0.0
    %1002 = vmatprep.subr.mxu0 0.0
    %1003 = vmatpush1.msra.mxu0 0.0
    %1004 = vmatprep.subr.mxu0 0.0
    %1005 = vmatpush1.msra.mxu0 0.0
    %1006 = vmatprep.subr.mxu0 0.0
    %1007 = vmatpush1.msra.mxu0 0.0
    %1008 = vmatprep.subr.mxu0 0.0
    %1009 = vmatpush1.msra.mxu0 0.0
    %1010 = vmatprep.subr.mxu0 0.0
    %1011 = vmatpush1.msra.mxu0 0.0
    %1012 = vmatprep.subr.mxu0 0.0
    %1013 = vmatpush1.msra.mxu0 0.0
    %1014 = vmatprep.subr.mxu0 0.0
    %1015 = vmatpush1.msra.mxu0 0.0
    %1016 = vmatprep.subr.mxu0 0.0
    %1017 = vmatpush1.msra.mxu0 0.0
    %1018 = vmatprep.subr.mxu0 0.0
    %1019 = vmatpush1.msra.mxu0 0.0
    %1020 = vmatprep.subr.mxu0 0.0
    %1021 = vmatpush1.msra.mxu0 0.0
    %1022 = vmatprep.subr.mxu0 0.0
    %1023 = vmatpush1.msra.mxu0 0.0
    %1024 = vmatprep.subr.mxu0 0.0
    %1025 = vmatpush1.msra.mxu0 0.0
    %1026 = vmatprep.subr.mxu0 0.0
    %1027 = vmatpush1.msra.mxu0 0.0
    %1028 = vmatprep.subr.mxu0 0.0
    %1029 = vmatpush1.msra.mxu0 0.0
    %1030 = vmatprep.subr.mxu0 0.0
    %1031 = vmatpush1.msra.mxu0 0.0
    %1032 = vmatprep.subr.mxu0 0.0
    %1033 = vmatpush1.msra.mxu0 0.0
    %1034 = vmatprep.subr.mxu0 0.0
    %1035 = vmatpush1.msra.mxu0 0.0
    %1036 = vmatprep.subr.mxu0 0.0
    %1037 = vmatpush1.msra.mxu0 0.0
    %1038 = vmatprep.subr.mxu0 0.0
    %1039 = vmatpush1.msra.mxu0 0.0
    %1040 = vmatprep.subr.mxu0 0.0
    %1041 = vmatpush1.msra.mxu0 0.0
    %1042 = vmatprep.subr.mxu0 0.0
    %1043 = vmatpush1.msra.mxu0 0.0
    %1044 = vmatprep.subr.mxu0 0.0
    %1045 = vmatpush1.msra.mxu0 0.0
    %1046 = vmatprep.mubr.f32.mxu0 0.0
    %1047 = vmatmul.mubr.f32.gmra.mrb[0].mxu0 %v197
    %v1048 = vpop.f32.mrb[0].mxu0
    %v1049 = vadd.f32 0.0, %v1048
    %v1050 = vpop.f32.mrb[0].mxu0
    %1051 = vdwg.mxu0
    %s1052 = scalar_lea.vmem [#allocation2], 40
    %1053 = vst [vmem:[%s1052] sm:$0xff] %v977
    %v1054 = vmul.f32 %v977, %v1049
    %s1055 = scalar_lea.vmem [#allocation3], 40
    %1056 = vst [vmem:[%s1055] sm:$0xff] %v1054
    %s1057 = scalar_lea.vmem [#allocation5], 48
    %v1058 = vld [vmem:[%s1057] sm:$0xff]
    %s1059 = scalar_lea.vmem [#allocation10], 192
    %v1060 = vld [vmem:[%s1059] sm:$0xff]
    %v1061 = vld [vmem:[%s1059 + $0x8] sm:$0xff]
    %v1062 = vld [vmem:[%s1059 + $0x10] sm:$0xff]
    %v1063 = vld [vmem:[%s1059 + $0x18] sm:$0xff]
    %v1065 = vsel %vm120, %v1058, 0
    %1067 = vmatprep.subr.mxu0 0.0
    %1068 = vmatpush1.msra.mxu0 %v1060
    %1069 = vmatprep.subr.mxu0 0.0
    %1070 = vmatpush1.msra.mxu0 %v1061
    %1071 = vmatprep.subr.mxu0 0.0
    %1072 = vmatpush1.msra.mxu0 %v1062
    %1073 = vmatprep.subr.mxu0 0.0
    %1074 = vmatpush1.msra.mxu0 %v1063
    %1075 = vmatprep.subr.mxu0 0.0
    %1076 = vmatpush1.msra.mxu0 0.0
    %1077 = vmatprep.subr.mxu0 0.0
    %1078 = vmatpush1.msra.mxu0 0.0
    %1079 = vmatprep.subr.mxu0 0.0
    %1080 = vmatpush1.msra.mxu0 0.0
    %1081 = vmatprep.subr.mxu0 0.0
    %1082 = vmatpush1.msra.mxu0 0.0
    %1083 = vmatprep.subr.mxu0 0.0
    %1084 = vmatpush1.msra.mxu0 0.0
    %1085 = vmatprep.subr.mxu0 0.0
    %1086 = vmatpush1.msra.mxu0 0.0
    %1087 = vmatprep.subr.mxu0 0.0
    %1088 = vmatpush1.msra.mxu0 0.0
    %1089 = vmatprep.subr.mxu0 0.0
    %1090 = vmatpush1.msra.mxu0 0.0
    %1091 = vmatprep.subr.mxu0 0.0
    %1092 = vmatpush1.msra.mxu0 0.0
    %1093 = vmatprep.subr.mxu0 0.0
    %1094 = vmatpush1.msra.mxu0 0.0
    %1095 = vmatprep.subr.mxu0 0.0
    %1096 = vmatpush1.msra.mxu0 0.0
    %1097 = vmatprep.subr.mxu0 0.0
    %1098 = vmatpush1.msra.mxu0 0.0
    %1099 = vmatprep.subr.mxu0 0.0
    %1100 = vmatpush1.msra.mxu0 0.0
    %1101 = vmatprep.subr.mxu0 0.0
    %1102 = vmatpush1.msra.mxu0 0.0
    %1103 = vmatprep.subr.mxu0 0.0
    %1104 = vmatpush1.msra.mxu0 0.0
    %1105 = vmatprep.subr.mxu0 0.0
    %1106 = vmatpush1.msra.mxu0 0.0
    %1107 = vmatprep.subr.mxu0 0.0
    %1108 = vmatpush1.msra.mxu0 0.0
    %1109 = vmatprep.subr.mxu0 0.0
    %1110 = vmatpush1.msra.mxu0 0.0
    %1111 = vmatprep.subr.mxu0 0.0
    %1112 = vmatpush1.msra.mxu0 0.0
    %1113 = vmatprep.subr.mxu0 0.0
    %1114 = vmatpush1.msra.mxu0 0.0
    %1115 = vmatprep.subr.mxu0 0.0
    %1116 = vmatpush1.msra.mxu0 0.0
    %1117 = vmatprep.subr.mxu0 0.0
    %1118 = vmatpush1.msra.mxu0 0.0
    %1119 = vmatprep.subr.mxu0 0.0
    %1120 = vmatpush1.msra.mxu0 0.0
    %1121 = vmatprep.subr.mxu0 0.0
    %1122 = vmatpush1.msra.mxu0 0.0
    %1123 = vmatprep.subr.mxu0 0.0
    %1124 = vmatpush1.msra.mxu0 0.0
    %1125 = vmatprep.subr.mxu0 0.0
    %1126 = vmatpush1.msra.mxu0 0.0
    %1127 = vmatprep.subr.mxu0 0.0
    %1128 = vmatpush1.msra.mxu0 0.0
    %1129 = vmatprep.subr.mxu0 0.0
    %1130 = vmatpush1.msra.mxu0 0.0
    %1131 = vmatprep.mubr.f32.mxu0 0.0
    %1132 = vmatmul.mubr.f32.gmra.mrb[0].mxu0 %v1065
    %v1133 = vpop.f32.mrb[0].mxu0
    %v1134 = vadd.f32 0.0, %v1133
    %v1135 = vpop.f32.mrb[0].mxu0
    %1136 = vdwg.mxu0
    %s1137 = scalar_lea.vmem [#allocation13], 48
    %v1138 = vld [vmem:[%s1137] sm:$0xff]
    %1139 = vmatprep.subr.mxu0 0.0
    %1140 = vmatpush1.msra.mxu0 %v1138
    %1141 = vmatprep.subr.mxu0 0.0
    %1142 = vmatpush1.msra.mxu0 0.0
    %1143 = vmatprep.subr.mxu0 0.0
    %1144 = vmatpush1.msra.mxu0 0.0
    %1145 = vmatprep.subr.mxu0 0.0
    %1146 = vmatpush1.msra.mxu0 0.0
    %1147 = vmatprep.subr.mxu0 0.0
    %1148 = vmatpush1.msra.mxu0 0.0
    %1149 = vmatprep.subr.mxu0 0.0
    %1150 = vmatpush1.msra.mxu0 0.0
    %1151 = vmatprep.subr.mxu0 0.0
    %1152 = vmatpush1.msra.mxu0 0.0
    %1153 = vmatprep.subr.mxu0 0.0
    %1154 = vmatpush1.msra.mxu0 0.0
    %1155 = vmatprep.subr.mxu0 0.0
    %1156 = vmatpush1.msra.mxu0 0.0
    %1157 = vmatprep.subr.mxu0 0.0
    %1158 = vmatpush1.msra.mxu0 0.0
    %1159 = vmatprep.subr.mxu0 0.0
    %1160 = vmatpush1.msra.mxu0 0.0
    %1161 = vmatprep.subr.mxu0 0.0
    %1162 = vmatpush1.msra.mxu0 0.0
    %1163 = vmatprep.subr.mxu0 0.0
    %1164 = vmatpush1.msra.mxu0 0.0
    %1165 = vmatprep.subr.mxu0 0.0
    %1166 = vmatpush1.msra.mxu0 0.0
    %1167 = vmatprep.subr.mxu0 0.0
    %1168 = vmatpush1.msra.mxu0 0.0
    %1169 = vmatprep.subr.mxu0 0.0
    %1170 = vmatpush1.msra.mxu0 0.0
    %1171 = vmatprep.subr.mxu0 0.0
    %1172 = vmatpush1.msra.mxu0 0.0
    %1173 = vmatprep.subr.mxu0 0.0
    %1174 = vmatpush1.msra.mxu0 0.0
    %1175 = vmatprep.subr.mxu0 0.0
    %1176 = vmatpush1.msra.mxu0 0.0
    %1177 = vmatprep.subr.mxu0 0.0
    %1178 = vmatpush1.msra.mxu0 0.0
    %1179 = vmatprep.subr.mxu0 0.0
    %1180 = vmatpush1.msra.mxu0 0.0
    %1181 = vmatprep.subr.mxu0 0.0
    %1182 = vmatpush1.msra.mxu0 0.0
    %1183 = vmatprep.subr.mxu0 0.0
    %1184 = vmatpush1.msra.mxu0 0.0
    %1185 = vmatprep.subr.mxu0 0.0
    %1186 = vmatpush1.msra.mxu0 0.0
    %1187 = vmatprep.subr.mxu0 0.0
    %1188 = vmatpush1.msra.mxu0 0.0
    %1189 = vmatprep.subr.mxu0 0.0
    %1190 = vmatpush1.msra.mxu0 0.0
    %1191 = vmatprep.subr.mxu0 0.0
    %1192 = vmatpush1.msra.mxu0 0.0
    %1193 = vmatprep.subr.mxu0 0.0
    %1194 = vmatpush1.msra.mxu0 0.0
    %1195 = vmatprep.subr.mxu0 0.0
    %1196 = vmatpush1.msra.mxu0 0.0
    %1197 = vmatprep.subr.mxu0 0.0
    %1198 = vmatpush1.msra.mxu0 0.0
    %1199 = vmatprep.subr.mxu0 0.0
    %1200 = vmatpush1.msra.mxu0 0.0
    %1201 = vmatprep.subr.mxu0 0.0
    %1202 = vmatpush1.msra.mxu0 0.0
    %1203 = vmatprep.mubr.f32.mxu0 0.0
    %1204 = vmatmul.mubr.f32.gmra.mrb[0].mxu0 %v197
    %v1205 = vpop.f32.mrb[0].mxu0
    %v1206 = vadd.f32 0.0, %v1205
    %v1207 = vpop.f32.mrb[0].mxu0
    %1208 = vdwg.mxu0
    %s1209 = scalar_lea.vmem [#allocation2], 48
    %1210 = vst [vmem:[%s1209] sm:$0xff] %v1134
    %v1211 = vmul.f32 %v1134, %v1206
    %s1212 = scalar_lea.vmem [#allocation3], 48
    %1213 = vst [vmem:[%s1212] sm:$0xff] %v1211
    %s1214 = scalar_lea.vmem [#allocation5], 56
    %v1215 = vld [vmem:[%s1214] sm:$0xff]
    %s1216 = scalar_lea.vmem [#allocation10], 224
    %v1217 = vld [vmem:[%s1216] sm:$0xff]
    %v1218 = vld [vmem:[%s1216 + $0x8] sm:$0xff]
    %v1219 = vld [vmem:[%s1216 + $0x10] sm:$0xff]
    %v1220 = vld [vmem:[%s1216 + $0x18] sm:$0xff]
    %v1222 = vsel %vm120, %v1215, 0
    %1224 = vmatprep.subr.mxu0 0.0
    %1225 = vmatpush1.msra.mxu0 %v1217
    %1226 = vmatprep.subr.mxu0 0.0
    %1227 = vmatpush1.msra.mxu0 %v1218
    %1228 = vmatprep.subr.mxu0 0.0
    %1229 = vmatpush1.msra.mxu0 %v1219
    %1230 = vmatprep.subr.mxu0 0.0
    %1231 = vmatpush1.msra.mxu0 %v1220
    %1232 = vmatprep.subr.mxu0 0.0
    %1233 = vmatpush1.msra.mxu0 0.0
    %1234 = vmatprep.subr.mxu0 0.0
    %1235 = vmatpush1.msra.mxu0 0.0
    %1236 = vmatprep.subr.mxu0 0.0
    %1237 = vmatpush1.msra.mxu0 0.0
    %1238 = vmatprep.subr.mxu0 0.0
    %1239 = vmatpush1.msra.mxu0 0.0
    %1240 = vmatprep.subr.mxu0 0.0
    %1241 = vmatpush1.msra.mxu0 0.0
    %1242 = vmatprep.subr.mxu0 0.0
    %1243 = vmatpush1.msra.mxu0 0.0
    %1244 = vmatprep.subr.mxu0 0.0
    %1245 = vmatpush1.msra.mxu0 0.0
    %1246 = vmatprep.subr.mxu0 0.0
    %1247 = vmatpush1.msra.mxu0 0.0
    %1248 = vmatprep.subr.mxu0 0.0
    %1249 = vmatpush1.msra.mxu0 0.0
    %1250 = vmatprep.subr.mxu0 0.0
    %1251 = vmatpush1.msra.mxu0 0.0
    %1252 = vmatprep.subr.mxu0 0.0
    %1253 = vmatpush1.msra.mxu0 0.0
    %1254 = vmatprep.subr.mxu0 0.0
    %1255 = vmatpush1.msra.mxu0 0.0
    %1256 = vmatprep.subr.mxu0 0.0
    %1257 = vmatpush1.msra.mxu0 0.0
    %1258 = vmatprep.subr.mxu0 0.0
    %1259 = vmatpush1.msra.mxu0 0.0
    %1260 = vmatprep.subr.mxu0 0.0
    %1261 = vmatpush1.msra.mxu0 0.0
    %1262 = vmatprep.subr.mxu0 0.0
    %1263 = vmatpush1.msra.mxu0 0.0
    %1264 = vmatprep.subr.mxu0 0.0
    %1265 = vmatpush1.msra.mxu0 0.0
    %1266 = vmatprep.subr.mxu0 0.0
    %1267 = vmatpush1.msra.mxu0 0.0
    %1268 = vmatprep.subr.mxu0 0.0
    %1269 = vmatpush1.msra.mxu0 0.0
    %1270 = vmatprep.subr.mxu0 0.0
    %1271 = vmatpush1.msra.mxu0 0.0
    %1272 = vmatprep.subr.mxu0 0.0
    %1273 = vmatpush1.msra.mxu0 0.0
    %1274 = vmatprep.subr.mxu0 0.0
    %1275 = vmatpush1.msra.mxu0 0.0
    %1276 = vmatprep.subr.mxu0 0.0
    %1277 = vmatpush1.msra.mxu0 0.0
    %1278 = vmatprep.subr.mxu0 0.0
    %1279 = vmatpush1.msra.mxu0 0.0
    %1280 = vmatprep.subr.mxu0 0.0
    %1281 = vmatpush1.msra.mxu0 0.0
    %1282 = vmatprep.subr.mxu0 0.0
    %1283 = vmatpush1.msra.mxu0 0.0
    %1284 = vmatprep.subr.mxu0 0.0
    %1285 = vmatpush1.msra.mxu0 0.0
    %1286 = vmatprep.subr.mxu0 0.0
    %1287 = vmatpush1.msra.mxu0 0.0
    %1288 = vmatprep.mubr.f32.mxu0 0.0
    %1289 = vmatmul.mubr.f32.gmra.mrb[0].mxu0 %v1222
    %v1290 = vpop.f32.mrb[0].mxu0
    %v1291 = vadd.f32 0.0, %v1290
    %v1292 = vpop.f32.mrb[0].mxu0
    %1293 = vdwg.mxu0
    %s1294 = scalar_lea.vmem [#allocation13], 56
    %v1295 = vld [vmem:[%s1294] sm:$0xff]
    %1296 = vmatprep.subr.mxu0 0.0
    %1297 = vmatpush1.msra.mxu0 %v1295
    %1298 = vmatprep.subr.mxu0 0.0
    %1299 = vmatpush1.msra.mxu0 0.0
    %1300 = vmatprep.subr.mxu0 0.0
    %1301 = vmatpush1.msra.mxu0 0.0
    %1302 = vmatprep.subr.mxu0 0.0
    %1303 = vmatpush1.msra.mxu0 0.0
    %1304 = vmatprep.subr.mxu0 0.0
    %1305 = vmatpush1.msra.mxu0 0.0
    %1306 = vmatprep.subr.mxu0 0.0
    %1307 = vmatpush1.msra.mxu0 0.0
    %1308 = vmatprep.subr.mxu0 0.0
    %1309 = vmatpush1.msra.mxu0 0.0
    %1310 = vmatprep.subr.mxu0 0.0
    %1311 = vmatpush1.msra.mxu0 0.0
    %1312 = vmatprep.subr.mxu0 0.0
    %1313 = vmatpush1.msra.mxu0 0.0
    %1314 = vmatprep.subr.mxu0 0.0
    %1315 = vmatpush1.msra.mxu0 0.0
    %1316 = vmatprep.subr.mxu0 0.0
    %1317 = vmatpush1.msra.mxu0 0.0
    %1318 = vmatprep.subr.mxu0 0.0
    %1319 = vmatpush1.msra.mxu0 0.0
    %1320 = vmatprep.subr.mxu0 0.0
    %1321 = vmatpush1.msra.mxu0 0.0
    %1322 = vmatprep.subr.mxu0 0.0
    %1323 = vmatpush1.msra.mxu0 0.0
    %1324 = vmatprep.subr.mxu0 0.0
    %1325 = vmatpush1.msra.mxu0 0.0
    %1326 = vmatprep.subr.mxu0 0.0
    %1327 = vmatpush1.msra.mxu0 0.0
    %1328 = vmatprep.subr.mxu0 0.0
    %1329 = vmatpush1.msra.mxu0 0.0
    %1330 = vmatprep.subr.mxu0 0.0
    %1331 = vmatpush1.msra.mxu0 0.0
    %1332 = vmatprep.subr.mxu0 0.0
    %1333 = vmatpush1.msra.mxu0 0.0
    %1334 = vmatprep.subr.mxu0 0.0
    %1335 = vmatpush1.msra.mxu0 0.0
    %1336 = vmatprep.subr.mxu0 0.0
    %1337 = vmatpush1.msra.mxu0 0.0
    %1338 = vmatprep.subr.mxu0 0.0
    %1339 = vmatpush1.msra.mxu0 0.0
    %1340 = vmatprep.subr.mxu0 0.0
    %1341 = vmatpush1.msra.mxu0 0.0
    %1342 = vmatprep.subr.mxu0 0.0
    %1343 = vmatpush1.msra.mxu0 0.0
    %1344 = vmatprep.subr.mxu0 0.0
    %1345 = vmatpush1.msra.mxu0 0.0
    %1346 = vmatprep.subr.mxu0 0.0
    %1347 = vmatpush1.msra.mxu0 0.0
    %1348 = vmatprep.subr.mxu0 0.0
    %1349 = vmatpush1.msra.mxu0 0.0
    %1350 = vmatprep.subr.mxu0 0.0
    %1351 = vmatpush1.msra.mxu0 0.0
    %1352 = vmatprep.subr.mxu0 0.0
    %1353 = vmatpush1.msra.mxu0 0.0
    %1354 = vmatprep.subr.mxu0 0.0
    %1355 = vmatpush1.msra.mxu0 0.0
    %1356 = vmatprep.subr.mxu0 0.0
    %1357 = vmatpush1.msra.mxu0 0.0
    %1358 = vmatprep.subr.mxu0 0.0
    %1359 = vmatpush1.msra.mxu0 0.0
    %1360 = vmatprep.mubr.f32.mxu0 0.0
    %1361 = vmatmul.mubr.f32.gmra.mrb[0].mxu0 %v197
    %v1362 = vpop.f32.mrb[0].mxu0
    %v1363 = vadd.f32 0.0, %v1362
    %v1364 = vpop.f32.mrb[0].mxu0
    %1365 = vdwg.mxu0
    %s1366 = scalar_lea.vmem [#allocation2], 56
    %1367 = vst [vmem:[%s1366] sm:$0xff] %v1291
    %v1368 = vmul.f32 %v1291, %v1363
    %s1369 = scalar_lea.vmem [#allocation3], 56
    %1370 = vst [vmem:[%s1369] sm:$0xff] %v1368
    %v1371 = vld [vmem:[#allocation4] sm:$0xff]
    %s1372 = scalar_lea.vmem [#allocation4], 8
    %v1373 = vld [vmem:[%s1372] sm:$0xff]
    %v1374 = vmax.f32 %v1371, %v1373
    %s1375 = scalar_lea.vmem [#allocation4], 16
    %v1376 = vld [vmem:[%s1375] sm:$0xff]
    %v1377 = vmax.f32 %v1374, %v1376
    %s1378 = scalar_lea.vmem [#allocation4], 24
    %v1379 = vld [vmem:[%s1378] sm:$0xff]
    %v1380 = vmax.f32 %v1377, %v1379
    %s1381 = scalar_lea.vmem [#allocation4], 32
    %v1382 = vld [vmem:[%s1381] sm:$0xff]
    %v1383 = vmax.f32 %v1380, %v1382
    %s1384 = scalar_lea.vmem [#allocation4], 40
    %v1385 = vld [vmem:[%s1384] sm:$0xff]
    %v1386 = vmax.f32 %v1383, %v1385
    %s1387 = scalar_lea.vmem [#allocation4], 48
    %v1388 = vld [vmem:[%s1387] sm:$0xff]
    %v1389 = vmax.f32 %v1386, %v1388
    %s1390 = scalar_lea.vmem [#allocation4], 56
    %v1391 = vld [vmem:[%s1390] sm:$0xff]
    %v1392 = vmax.f32 %v1389, %v1391
    %v1393 = vsub.f32 %v1371, %v1392
    %v1394 = vmul.f32 %v1393, 1.442695
    %v1395 = vpow.pop %v1394
    %v1396 = vadd.f32 %v1395, 0.0
    %v1397 = vld [vmem:[#allocation3] sm:$0xff]
    %v1398 = vmul.f32 %v1395, %v1397
    %v1399 = vadd.f32 %v1398, 0.0
    %v1400 = vsub.f32 %v1373, %v1392
    %v1401 = vmul.f32 %v1400, 1.442695
    %v1402 = vpow.pop %v1401
    %v1403 = vadd.f32 %v1396, %v1402
    %v1404 = vld [vmem:[%s427] sm:$0xff]
    %v1405 = vmul.f32 %v1402, %v1404
    %v1406 = vadd.f32 %v1399, %v1405
    %v1407 = vsub.f32 %v1376, %v1392
    %v1408 = vmul.f32 %v1407, 1.442695
    %v1409 = vpow.pop %v1408
    %v1410 = vadd.f32 %v1403, %v1409
    %v1411 = vld [vmem:[%s584] sm:$0xff]
    %v1412 = vmul.f32 %v1409, %v1411
    %v1413 = vadd.f32 %v1406, %v1412
    %v1414 = vsub.f32 %v1379, %v1392
    %v1415 = vmul.f32 %v1414, 1.442695
    %v1416 = vpow.pop %v1415
    %v1417 = vadd.f32 %v1410, %v1416
    %v1418 = vld [vmem:[%s741] sm:$0xff]
    %v1419 = vmul.f32 %v1416, %v1418
    %v1420 = vadd.f32 %v1413, %v1419
    %v1421 = vsub.f32 %v1382, %v1392
    %v1422 = vmul.f32 %v1421, 1.442695
    %v1423 = vpow.pop %v1422
    %v1424 = vadd.f32 %v1417, %v1423
    %v1425 = vld [vmem:[%s898] sm:$0xff]
    %v1426 = vmul.f32 %v1423, %v1425
    %v1427 = vadd.f32 %v1420, %v1426
    %v1428 = vsub.f32 %v1385, %v1392
    %v1429 = vmul.f32 %v1428, 1.442695
    %v1430 = vpow.pop %v1429
    %v1431 = vadd.f32 %v1424, %v1430
    %v1432 = vld [vmem:[%s1055] sm:$0xff]
    %v1433 = vmul.f32 %v1430, %v1432
    %v1434 = vadd.f32 %v1427, %v1433
    %v1435 = vsub.f32 %v1388, %v1392
    %v1436 = vmul.f32 %v1435, 1.442695
    %v1437 = vpow.pop %v1436
    %v1438 = vadd.f32 %v1431, %v1437
    %v1439 = vld [vmem:[%s1212] sm:$0xff]
    %v1440 = vmul.f32 %v1437, %v1439
    %v1441 = vadd.f32 %v1434, %v1440
    %v1442 = vsub.f32 %v1391, %v1392
    %v1443 = vmul.f32 %v1442, 1.442695
    %v1444 = vpow.pop %v1443
    %v1445 = vadd.f32 %v1438, %v1444
    %v1446 = vld [vmem:[%s1369] sm:$0xff]
    %v1447 = vmul.f32 %v1444, %v1446
    %v1448 = vadd.f32 %v1441, %v1447
    %v1449 = vrcp.pop %v1445
    %v1450 = vmul.f32 %v1448, %v1449
    %v1451 = vmul.f32 %v1450, %v1450
    %1452 = vmatprep.subr.mxu0 0.0
    %1453 = vmatpush1.msra.mxu0 %v91
    %1454 = vmatprep.subr.mxu0 0.0
    %1455 = vmatpush1.msra.mxu0 %v92
    %1456 = vmatprep.subr.mxu0 0.0
    %1457 = vmatpush1.msra.mxu0 %v93
    %1458 = vmatprep.subr.mxu0 0.0
    %1459 = vmatpush1.msra.mxu0 %v94
    %1460 = vmatprep.subr.mxu0 0.0
    %1461 = vmatpush1.msra.mxu0 %v95
    %1462 = vmatprep.subr.mxu0 0.0
    %1463 = vmatpush1.msra.mxu0 %v96
    %1464 = vmatprep.subr.mxu0 0.0
    %1465 = vmatpush1.msra.mxu0 %v97
    %1466 = vmatprep.subr.mxu0 0.0
    %1467 = vmatpush1.msra.mxu0 %v98
    %1468 = vmatprep.subr.mxu0 0.0
    %1469 = vmatpush1.msra.mxu0 %v99
    %1470 = vmatprep.subr.mxu0 0.0
    %1471 = vmatpush1.msra.mxu0 %v100
    %1472 = vmatprep.subr.mxu0 0.0
    %1473 = vmatpush1.msra.mxu0 %v101
    %1474 = vmatprep.subr.mxu0 0.0
    %1475 = vmatpush1.msra.mxu0 %v102
    %1476 = vmatprep.subr.mxu0 0.0
    %1477 = vmatpush1.msra.mxu0 %v103
    %1478 = vmatprep.subr.mxu0 0.0
    %1479 = vmatpush1.msra.mxu0 %v104
    %1480 = vmatprep.subr.mxu0 0.0
    %1481 = vmatpush1.msra.mxu0 %v105
    %1482 = vmatprep.subr.mxu0 0.0
    %1483 = vmatpush1.msra.mxu0 %v106
    %1484 = vmatprep.subr.mxu0 0.0
    %1485 = vmatpush1.msra.mxu0 0.0
    %1486 = vmatprep.subr.mxu0 0.0
    %1487 = vmatpush1.msra.mxu0 0.0
    %1488 = vmatprep.subr.mxu0 0.0
    %1489 = vmatpush1.msra.mxu0 0.0
    %1490 = vmatprep.subr.mxu0 0.0
    %1491 = vmatpush1.msra.mxu0 0.0
    %1492 = vmatprep.subr.mxu0 0.0
    %1493 = vmatpush1.msra.mxu0 0.0
    %1494 = vmatprep.subr.mxu0 0.0
    %1495 = vmatpush1.msra.mxu0 0.0
    %1496 = vmatprep.subr.mxu0 0.0
    %1497 = vmatpush1.msra.mxu0 0.0
    %1498 = vmatprep.subr.mxu0 0.0
    %1499 = vmatpush1.msra.mxu0 0.0
    %1500 = vmatprep.subr.mxu0 0.0
    %1501 = vmatpush1.msra.mxu0 0.0
    %1502 = vmatprep.subr.mxu0 0.0
    %1503 = vmatpush1.msra.mxu0 0.0
    %1504 = vmatprep.subr.mxu0 0.0
    %1505 = vmatpush1.msra.mxu0 0.0
    %1506 = vmatprep.subr.mxu0 0.0
    %1507 = vmatpush1.msra.mxu0 0.0
    %1508 = vmatprep.subr.mxu0 0.0
    %1509 = vmatpush1.msra.mxu0 0.0
    %1510 = vmatprep.subr.mxu0 0.0
    %1511 = vmatpush1.msra.mxu0 0.0
    %1512 = vmatprep.subr.mxu0 0.0
    %1513 = vmatpush1.msra.mxu0 0.0
    %1514 = vmatprep.subr.mxu0 0.0
    %1515 = vmatpush1.msra.mxu0 0.0
    %1516 = vmatprep.mubr.f32.mxu0 0.0
    %1517 = vmatmul.mubr.f32.gmra.mrb[0].mxu0 %v1451
    %v1518 = vpop.f32.mrb[0].mxu0
    %v1519 = vadd.f32 0.0, %v1518
    %v1520 = vpop.f32.mrb[0].mxu0
    %1521 = vdwg.mxu0
    %v1522 = vadd.f32 %v1519, 1e-09
    %v1523 = vrsqrt.pop %v1522
    %v1524 = vmul.f32 %v1519, %v1523
    %v1525 = vadd.f32 %v1519, 1.0
    %v1526 = vrcp.pop %v1525
    %v1527 = vmul.f32 %v1524, %v1526
    %v1528 = vmul.f32 %v1450, %v1527
    %v1529 = vld [vmem:[#allocation2] sm:$0xff]
    %v1530 = vmul.f32 %v1529, %v1528
    %1531 = vmatprep.subr.mxu0 0.0
    %1532 = vmatpush1.msra.mxu0 %v91
    %1533 = vmatprep.subr.mxu0 0.0
    %1534 = vmatpush1.msra.mxu0 %v92
    %1535 = vmatprep.subr.mxu0 0.0
    %1536 = vmatpush1.msra.mxu0 %v93
    %1537 = vmatprep.subr.mxu0 0.0
    %1538 = vmatpush1.msra.mxu0 %v94
    %1539 = vmatprep.subr.mxu0 0.0
    %1540 = vmatpush1.msra.mxu0 %v95
    %1541 = vmatprep.subr.mxu0 0.0
    %1542 = vmatpush1.msra.mxu0 %v96
    %1543 = vmatprep.subr.mxu0 0.0
    %1544 = vmatpush1.msra.mxu0 %v97
    %1545 = vmatprep.subr.mxu0 0.0
    %1546 = vmatpush1.msra.mxu0 %v98
    %1547 = vmatprep.subr.mxu0 0.0
    %1548 = vmatpush1.msra.mxu0 %v99
    %1549 = vmatprep.subr.mxu0 0.0
    %1550 = vmatpush1.msra.mxu0 %v100
    %1551 = vmatprep.subr.mxu0 0.0
    %1552 = vmatpush1.msra.mxu0 %v101
    %1553 = vmatprep.subr.mxu0 0.0
    %1554 = vmatpush1.msra.mxu0 %v102
    %1555 = vmatprep.subr.mxu0 0.0
    %1556 = vmatpush1.msra.mxu0 %v103
    %1557 = vmatprep.subr.mxu0 0.0
    %1558 = vmatpush1.msra.mxu0 %v104
    %1559 = vmatprep.subr.mxu0 0.0
    %1560 = vmatpush1.msra.mxu0 %v105
    %1561 = vmatprep.subr.mxu0 0.0
    %1562 = vmatpush1.msra.mxu0 %v106
    %1563 = vmatprep.subr.mxu0 0.0
    %1564 = vmatpush1.msra.mxu0 0.0
    %1565 = vmatprep.subr.mxu0 0.0
    %1566 = vmatpush1.msra.mxu0 0.0
    %1567 = vmatprep.subr.mxu0 0.0
    %1568 = vmatpush1.msra.mxu0 0.0
    %1569 = vmatprep.subr.mxu0 0.0
    %1570 = vmatpush1.msra.mxu0 0.0
    %1571 = vmatprep.subr.mxu0 0.0
    %1572 = vmatpush1.msra.mxu0 0.0
    %1573 = vmatprep.subr.mxu0 0.0
    %1574 = vmatpush1.msra.mxu0 0.0
    %1575 = vmatprep.subr.mxu0 0.0
    %1576 = vmatpush1.msra.mxu0 0.0
    %1577 = vmatprep.subr.mxu0 0.0
    %1578 = vmatpush1.msra.mxu0 0.0
    %1579 = vmatprep.subr.mxu0 0.0
    %1580 = vmatpush1.msra.mxu0 0.0
    %1581 = vmatprep.subr.mxu0 0.0
    %1582 = vmatpush1.msra.mxu0 0.0
    %1583 = vmatprep.subr.mxu0 0.0
    %1584 = vmatpush1.msra.mxu0 0.0
    %1585 = vmatprep.subr.mxu0 0.0
    %1586 = vmatpush1.msra.mxu0 0.0
    %1587 = vmatprep.subr.mxu0 0.0
    %1588 = vmatpush1.msra.mxu0 0.0
    %1589 = vmatprep.subr.mxu0 0.0
    %1590 = vmatpush1.msra.mxu0 0.0
    %1591 = vmatprep.subr.mxu0 0.0
    %1592 = vmatpush1.msra.mxu0 0.0
    %1593 = vmatprep.subr.mxu0 0.0
    %1594 = vmatpush1.msra.mxu0 0.0
    %1595 = vmatprep.mubr.f32.mxu0 0.0
    %1596 = vmatmul.mubr.f32.gmra.mrb[0].mxu0 %v1530
    %v1597 = vpop.f32.mrb[0].mxu0
    %v1598 = vadd.f32 0.0, %v1597
    %v1599 = vpop.f32.mrb[0].mxu0
    %1600 = vdwg.mxu0
    %v1601 = vadd.f32 %v1371, %v1598
    %1602 = vst [vmem:[#allocation4] sm:$0xff] %v1601
    %v1603 = vld [vmem:[%s424] sm:$0xff]
    %v1604 = vmul.f32 %v1603, %v1528
    %1605 = vmatprep.subr.mxu0 0.0
    %1606 = vmatpush1.msra.mxu0 %v91
    %1607 = vmatprep.subr.mxu0 0.0
    %1608 = vmatpush1.msra.mxu0 %v92
    %1609 = vmatprep.subr.mxu0 0.0
    %1610 = vmatpush1.msra.mxu0 %v93
    %1611 = vmatprep.subr.mxu0 0.0
    %1612 = vmatpush1.msra.mxu0 %v94
    %1613 = vmatprep.subr.mxu0 0.0
    %1614 = vmatpush1.msra.mxu0 %v95
    %1615 = vmatprep.subr.mxu0 0.0
    %1616 = vmatpush1.msra.mxu0 %v96
    %1617 = vmatprep.subr.mxu0 0.0
    %1618 = vmatpush1.msra.mxu0 %v97
    %1619 = vmatprep.subr.mxu0 0.0
    %1620 = vmatpush1.msra.mxu0 %v98
    %1621 = vmatprep.subr.mxu0 0.0
    %1622 = vmatpush1.msra.mxu0 %v99
    %1623 = vmatprep.subr.mxu0 0.0
    %1624 = vmatpush1.msra.mxu0 %v100
    %1625 = vmatprep.subr.mxu0 0.0
    %1626 = vmatpush1.msra.mxu0 %v101
    %1627 = vmatprep.subr.mxu0 0.0
    %1628 = vmatpush1.msra.mxu0 %v102
    %1629 = vmatprep.subr.mxu0 0.0
    %1630 = vmatpush1.msra.mxu0 %v103
    %1631 = vmatprep.subr.mxu0 0.0
    %1632 = vmatpush1.msra.mxu0 %v104
    %1633 = vmatprep.subr.mxu0 0.0
    %1634 = vmatpush1.msra.mxu0 %v105
    %1635 = vmatprep.subr.mxu0 0.0
    %1636 = vmatpush1.msra.mxu0 %v106
    %1637 = vmatprep.subr.mxu0 0.0
    %1638 = vmatpush1.msra.mxu0 0.0
    %1639 = vmatprep.subr.mxu0 0.0
    %1640 = vmatpush1.msra.mxu0 0.0
    %1641 = vmatprep.subr.mxu0 0.0
    %1642 = vmatpush1.msra.mxu0 0.0
    %1643 = vmatprep.subr.mxu0 0.0
    %1644 = vmatpush1.msra.mxu0 0.0
    %1645 = vmatprep.subr.mxu0 0.0
    %1646 = vmatpush1.msra.mxu0 0.0
    %1647 = vmatprep.subr.mxu0 0.0
    %1648 = vmatpush1.msra.mxu0 0.0
    %1649 = vmatprep.subr.mxu0 0.0
    %1650 = vmatpush1.msra.mxu0 0.0
    %1651 = vmatprep.subr.mxu0 0.0
    %1652 = vmatpush1.msra.mxu0 0.0
    %1653 = vmatprep.subr.mxu0 0.0
    %1654 = vmatpush1.msra.mxu0 0.0
    %1655 = vmatprep.subr.mxu0 0.0
    %1656 = vmatpush1.msra.mxu0 0.0
    %1657 = vmatprep.subr.mxu0 0.0
    %1658 = vmatpush1.msra.mxu0 0.0
    %1659 = vmatprep.subr.mxu0 0.0
    %1660 = vmatpush1.msra.mxu0 0.0
    %1661 = vmatprep.subr.mxu0 0.0
    %1662 = vmatpush1.msra.mxu0 0.0
    %1663 = vmatprep.subr.mxu0 0.0
    %1664 = vmatpush1.msra.mxu0 0.0
    %1665 = vmatprep.subr.mxu0 0.0
    %1666 = vmatpush1.msra.mxu0 0.0
    %1667 = vmatprep.subr.mxu0 0.0
    %1668 = vmatpush1.msra.mxu0 0.0
    %1669 = vmatprep.mubr.f32.mxu0 0.0
    %1670 = vmatmul.mubr.f32.gmra.mrb[0].mxu0 %v1604
    %v1671 = vpop.f32.mrb[0].mxu0
    %v1672 = vadd.f32 0.0, %v1671
    %v1673 = vpop.f32.mrb[0].mxu0
    %1674 = vdwg.mxu0
    %v1675 = vld [vmem:[%s1372] sm:$0xff]
    %v1676 = vadd.f32 %v1675, %v1672
    %1677 = vst [vmem:[%s1372] sm:$0xff] %v1676
    %v1678 = vld [vmem:[%s581] sm:$0xff]
    %v1679 = vmul.f32 %v1678, %v1528
    %1680 = vmatprep.subr.mxu0 0.0
    %1681 = vmatpush1.msra.mxu0 %v91
    %1682 = vmatprep.subr.mxu0 0.0
    %1683 = vmatpush1.msra.mxu0 %v92
    %1684 = vmatprep.subr.mxu0 0.0
    %1685 = vmatpush1.msra.mxu0 %v93
    %1686 = vmatprep.subr.mxu0 0.0
    %1687 = vmatpush1.msra.mxu0 %v94
    %1688 = vmatprep.subr.mxu0 0.0
    %1689 = vmatpush1.msra.mxu0 %v95
    %1690 = vmatprep.subr.mxu0 0.0
    %1691 = vmatpush1.msra.mxu0 %v96
    %1692 = vmatprep.subr.mxu0 0.0
    %1693 = vmatpush1.msra.mxu0 %v97
    %1694 = vmatprep.subr.mxu0 0.0
    %1695 = vmatpush1.msra.mxu0 %v98
    %1696 = vmatprep.subr.mxu0 0.0
    %1697 = vmatpush1.msra.mxu0 %v99
    %1698 = vmatprep.subr.mxu0 0.0
    %1699 = vmatpush1.msra.mxu0 %v100
    %1700 = vmatprep.subr.mxu0 0.0
    %1701 = vmatpush1.msra.mxu0 %v101
    %1702 = vmatprep.subr.mxu0 0.0
    %1703 = vmatpush1.msra.mxu0 %v102
    %1704 = vmatprep.subr.mxu0 0.0
    %1705 = vmatpush1.msra.mxu0 %v103
    %1706 = vmatprep.subr.mxu0 0.0
    %1707 = vmatpush1.msra.mxu0 %v104
    %1708 = vmatprep.subr.mxu0 0.0
    %1709 = vmatpush1.msra.mxu0 %v105
    %1710 = vmatprep.subr.mxu0 0.0
    %1711 = vmatpush1.msra.mxu0 %v106
    %1712 = vmatprep.subr.mxu0 0.0
    %1713 = vmatpush1.msra.mxu0 0.0
    %1714 = vmatprep.subr.mxu0 0.0
    %1715 = vmatpush1.msra.mxu0 0.0
    %1716 = vmatprep.subr.mxu0 0.0
    %1717 = vmatpush1.msra.mxu0 0.0
    %1718 = vmatprep.subr.mxu0 0.0
    %1719 = vmatpush1.msra.mxu0 0.0
    %1720 = vmatprep.subr.mxu0 0.0
    %1721 = vmatpush1.msra.mxu0 0.0
    %1722 = vmatprep.subr.mxu0 0.0
    %1723 = vmatpush1.msra.mxu0 0.0
    %1724 = vmatprep.subr.mxu0 0.0
    %1725 = vmatpush1.msra.mxu0 0.0
    %1726 = vmatprep.subr.mxu0 0.0
    %1727 = vmatpush1.msra.mxu0 0.0
    %1728 = vmatprep.subr.mxu0 0.0
    %1729 = vmatpush1.msra.mxu0 0.0
    %1730 = vmatprep.subr.mxu0 0.0
    %1731 = vmatpush1.msra.mxu0 0.0
    %1732 = vmatprep.subr.mxu0 0.0
    %1733 = vmatpush1.msra.mxu0 0.0
    %1734 = vmatprep.subr.mxu0 0.0
    %1735 = vmatpush1.msra.mxu0 0.0
    %1736 = vmatprep.subr.mxu0 0.0
    %1737 = vmatpush1.msra.mxu0 0.0
    %1738 = vmatprep.subr.mxu0 0.0
    %1739 = vmatpush1.msra.mxu0 0.0
    %1740 = vmatprep.subr.mxu0 0.0
    %1741 = vmatpush1.msra.mxu0 0.0
    %1742 = vmatprep.subr.mxu0 0.0
    %1743 = vmatpush1.msra.mxu0 0.0
    %1744 = vmatprep.mubr.f32.mxu0 0.0
    %1745 = vmatmul.mubr.f32.gmra.mrb[0].mxu0 %v1679
    %v1746 = vpop.f32.mrb[0].mxu0
    %v1747 = vadd.f32 0.0, %v1746
    %v1748 = vpop.f32.mrb[0].mxu0
    %1749 = vdwg.mxu0
    %v1750 = vld [vmem:[%s1375] sm:$0xff]
    %v1751 = vadd.f32 %v1750, %v1747
    %1752 = vst [vmem:[%s1375] sm:$0xff] %v1751
    %v1753 = vld [vmem:[%s738] sm:$0xff]
    %v1754 = vmul.f32 %v1753, %v1528
    %1755 = vmatprep.subr.mxu0 0.0
    %1756 = vmatpush1.msra.mxu0 %v91
    %1757 = vmatprep.subr.mxu0 0.0
    %1758 = vmatpush1.msra.mxu0 %v92
    %1759 = vmatprep.subr.mxu0 0.0
    %1760 = vmatpush1.msra.mxu0 %v93
    %1761 = vmatprep.subr.mxu0 0.0
    %1762 = vmatpush1.msra.mxu0 %v94
    %1763 = vmatprep.subr.mxu0 0.0
    %1764 = vmatpush1.msra.mxu0 %v95
    %1765 = vmatprep.subr.mxu0 0.0
    %1766 = vmatpush1.msra.mxu0 %v96
    %1767 = vmatprep.subr.mxu0 0.0
    %1768 = vmatpush1.msra.mxu0 %v97
    %1769 = vmatprep.subr.mxu0 0.0
    %1770 = vmatpush1.msra.mxu0 %v98
    %1771 = vmatprep.subr.mxu0 0.0
    %1772 = vmatpush1.msra.mxu0 %v99
    %1773 = vmatprep.subr.mxu0 0.0
    %1774 = vmatpush1.msra.mxu0 %v100
    %1775 = vmatprep.subr.mxu0 0.0
    %1776 = vmatpush1.msra.mxu0 %v101
    %1777 = vmatprep.subr.mxu0 0.0
    %1778 = vmatpush1.msra.mxu0 %v102
    %1779 = vmatprep.subr.mxu0 0.0
    %1780 = vmatpush1.msra.mxu0 %v103
    %1781 = vmatprep.subr.mxu0 0.0
    %1782 = vmatpush1.msra.mxu0 %v104
    %1783 = vmatprep.subr.mxu0 0.0
    %1784 = vmatpush1.msra.mxu0 %v105
    %1785 = vmatprep.subr.mxu0 0.0
    %1786 = vmatpush1.msra.mxu0 %v106
    %1787 = vmatprep.subr.mxu0 0.0
    %1788 = vmatpush1.msra.mxu0 0.0
    %1789 = vmatprep.subr.mxu0 0.0
    %1790 = vmatpush1.msra.mxu0 0.0
    %1791 = vmatprep.subr.mxu0 0.0
    %1792 = vmatpush1.msra.mxu0 0.0
    %1793 = vmatprep.subr.mxu0 0.0
    %1794 = vmatpush1.msra.mxu0 0.0
    %1795 = vmatprep.subr.mxu0 0.0
    %1796 = vmatpush1.msra.mxu0 0.0
    %1797 = vmatprep.subr.mxu0 0.0
    %1798 = vmatpush1.msra.mxu0 0.0
    %1799 = vmatprep.subr.mxu0 0.0
    %1800 = vmatpush1.msra.mxu0 0.0
    %1801 = vmatprep.subr.mxu0 0.0
    %1802 = vmatpush1.msra.mxu0 0.0
    %1803 = vmatprep.subr.mxu0 0.0
    %1804 = vmatpush1.msra.mxu0 0.0
    %1805 = vmatprep.subr.mxu0 0.0
    %1806 = vmatpush1.msra.mxu0 0.0
    %1807 = vmatprep.subr.mxu0 0.0
    %1808 = vmatpush1.msra.mxu0 0.0
    %1809 = vmatprep.subr.mxu0 0.0
    %1810 = vmatpush1.msra.mxu0 0.0
    %1811 = vmatprep.subr.mxu0 0.0
    %1812 = vmatpush1.msra.mxu0 0.0
    %1813 = vmatprep.subr.mxu0 0.0
    %1814 = vmatpush1.msra.mxu0 0.0
    %1815 = vmatprep.subr.mxu0 0.0
    %1816 = vmatpush1.msra.mxu0 0.0
    %1817 = vmatprep.subr.mxu0 0.0
    %1818 = vmatpush1.msra.mxu0 0.0
    %1819 = vmatprep.mubr.f32.mxu0 0.0
    %1820 = vmatmul.mubr.f32.gmra.mrb[0].mxu0 %v1754
    %v1821 = vpop.f32.mrb[0].mxu0
    %v1822 = vadd.f32 0.0, %v1821
    %v1823 = vpop.f32.mrb[0].mxu0
    %1824 = vdwg.mxu0
    %v1825 = vld [vmem:[%s1378] sm:$0xff]
    %v1826 = vadd.f32 %v1825, %v1822
    %1827 = vst [vmem:[%s1378] sm:$0xff] %v1826
    %v1828 = vld [vmem:[%s895] sm:$0xff]
    %v1829 = vmul.f32 %v1828, %v1528
    %1830 = vmatprep.subr.mxu0 0.0
    %1831 = vmatpush1.msra.mxu0 %v91
    %1832 = vmatprep.subr.mxu0 0.0
    %1833 = vmatpush1.msra.mxu0 %v92
    %1834 = vmatprep.subr.mxu0 0.0
    %1835 = vmatpush1.msra.mxu0 %v93
    %1836 = vmatprep.subr.mxu0 0.0
    %1837 = vmatpush1.msra.mxu0 %v94
    %1838 = vmatprep.subr.mxu0 0.0
    %1839 = vmatpush1.msra.mxu0 %v95
    %1840 = vmatprep.subr.mxu0 0.0
    %1841 = vmatpush1.msra.mxu0 %v96
    %1842 = vmatprep.subr.mxu0 0.0
    %1843 = vmatpush1.msra.mxu0 %v97
    %1844 = vmatprep.subr.mxu0 0.0
    %1845 = vmatpush1.msra.mxu0 %v98
    %1846 = vmatprep.subr.mxu0 0.0
    %1847 = vmatpush1.msra.mxu0 %v99
    %1848 = vmatprep.subr.mxu0 0.0
    %1849 = vmatpush1.msra.mxu0 %v100
    %1850 = vmatprep.subr.mxu0 0.0
    %1851 = vmatpush1.msra.mxu0 %v101
    %1852 = vmatprep.subr.mxu0 0.0
    %1853 = vmatpush1.msra.mxu0 %v102
    %1854 = vmatprep.subr.mxu0 0.0
    %1855 = vmatpush1.msra.mxu0 %v103
    %1856 = vmatprep.subr.mxu0 0.0
    %1857 = vmatpush1.msra.mxu0 %v104
    %1858 = vmatprep.subr.mxu0 0.0
    %1859 = vmatpush1.msra.mxu0 %v105
    %1860 = vmatprep.subr.mxu0 0.0
    %1861 = vmatpush1.msra.mxu0 %v106
    %1862 = vmatprep.subr.mxu0 0.0
    %1863 = vmatpush1.msra.mxu0 0.0
    %1864 = vmatprep.subr.mxu0 0.0
    %1865 = vmatpush1.msra.mxu0 0.0
    %1866 = vmatprep.subr.mxu0 0.0
    %1867 = vmatpush1.msra.mxu0 0.0
    %1868 = vmatprep.subr.mxu0 0.0
    %1869 = vmatpush1.msra.mxu0 0.0
    %1870 = vmatprep.subr.mxu0 0.0
    %1871 = vmatpush1.msra.mxu0 0.0
    %1872 = vmatprep.subr.mxu0 0.0
    %1873 = vmatpush1.msra.mxu0 0.0
    %1874 = vmatprep.subr.mxu0 0.0
    %1875 = vmatpush1.msra.mxu0 0.0
    %1876 = vmatprep.subr.mxu0 0.0
    %1877 = vmatpush1.msra.mxu0 0.0
    %1878 = vmatprep.subr.mxu0 0.0
    %1879 = vmatpush1.msra.mxu0 0.0
    %1880 = vmatprep.subr.mxu0 0.0
    %1881 = vmatpush1.msra.mxu0 0.0
    %1882 = vmatprep.subr.mxu0 0.0
    %1883 = vmatpush1.msra.mxu0 0.0
    %1884 = vmatprep.subr.mxu0 0.0
    %1885 = vmatpush1.msra.mxu0 0.0
    %1886 = vmatprep.subr.mxu0 0.0
    %1887 = vmatpush1.msra.mxu0 0.0
    %1888 = vmatprep.subr.mxu0 0.0
    %1889 = vmatpush1.msra.mxu0 0.0
    %1890 = vmatprep.subr.mxu0 0.0
    %1891 = vmatpush1.msra.mxu0 0.0
    %1892 = vmatprep.subr.mxu0 0.0
    %1893 = vmatpush1.msra.mxu0 0.0
    %1894 = vmatprep.mubr.f32.mxu0 0.0
    %1895 = vmatmul.mubr.f32.gmra.mrb[0].mxu0 %v1829
    %v1896 = vpop.f32.mrb[0].mxu0
    %v1897 = vadd.f32 0.0, %v1896
    %v1898 = vpop.f32.mrb[0].mxu0
    %1899 = vdwg.mxu0
    %v1900 = vld [vmem:[%s1381] sm:$0xff]
    %v1901 = vadd.f32 %v1900, %v1897
    %1902 = vst [vmem:[%s1381] sm:$0xff] %v1901
    %v1903 = vld [vmem:[%s1052] sm:$0xff]
    %v1904 = vmul.f32 %v1903, %v1528
    %1905 = vmatprep.subr.mxu0 0.0
    %1906 = vmatpush1.msra.mxu0 %v91
    %1907 = vmatprep.subr.mxu0 0.0
    %1908 = vmatpush1.msra.mxu0 %v92
    %1909 = vmatprep.subr.mxu0 0.0
    %1910 = vmatpush1.msra.mxu0 %v93
    %1911 = vmatprep.subr.mxu0 0.0
    %1912 = vmatpush1.msra.mxu0 %v94
    %1913 = vmatprep.subr.mxu0 0.0
    %1914 = vmatpush1.msra.mxu0 %v95
    %1915 = vmatprep.subr.mxu0 0.0
    %1916 = vmatpush1.msra.mxu0 %v96
    %1917 = vmatprep.subr.mxu0 0.0
    %1918 = vmatpush1.msra.mxu0 %v97
    %1919 = vmatprep.subr.mxu0 0.0
    %1920 = vmatpush1.msra.mxu0 %v98
    %1921 = vmatprep.subr.mxu0 0.0
    %1922 = vmatpush1.msra.mxu0 %v99
    %1923 = vmatprep.subr.mxu0 0.0
    %1924 = vmatpush1.msra.mxu0 %v100
    %1925 = vmatprep.subr.mxu0 0.0
    %1926 = vmatpush1.msra.mxu0 %v101
    %1927 = vmatprep.subr.mxu0 0.0
    %1928 = vmatpush1.msra.mxu0 %v102
    %1929 = vmatprep.subr.mxu0 0.0
    %1930 = vmatpush1.msra.mxu0 %v103
    %1931 = vmatprep.subr.mxu0 0.0
    %1932 = vmatpush1.msra.mxu0 %v104
    %1933 = vmatprep.subr.mxu0 0.0
    %1934 = vmatpush1.msra.mxu0 %v105
    %1935 = vmatprep.subr.mxu0 0.0
    %1936 = vmatpush1.msra.mxu0 %v106
    %1937 = vmatprep.subr.mxu0 0.0
    %1938 = vmatpush1.msra.mxu0 0.0
    %1939 = vmatprep.subr.mxu0 0.0
    %1940 = vmatpush1.msra.mxu0 0.0
    %1941 = vmatprep.subr.mxu0 0.0
    %1942 = vmatpush1.msra.mxu0 0.0
    %1943 = vmatprep.subr.mxu0 0.0
    %1944 = vmatpush1.msra.mxu0 0.0
    %1945 = vmatprep.subr.mxu0 0.0
    %1946 = vmatpush1.msra.mxu0 0.0
    %1947 = vmatprep.subr.mxu0 0.0
    %1948 = vmatpush1.msra.mxu0 0.0
    %1949 = vmatprep.subr.mxu0 0.0
    %1950 = vmatpush1.msra.mxu0 0.0
    %1951 = vmatprep.subr.mxu0 0.0
    %1952 = vmatpush1.msra.mxu0 0.0
    %1953 = vmatprep.subr.mxu0 0.0
    %1954 = vmatpush1.msra.mxu0 0.0
    %1955 = vmatprep.subr.mxu0 0.0
    %1956 = vmatpush1.msra.mxu0 0.0
    %1957 = vmatprep.subr.mxu0 0.0
    %1958 = vmatpush1.msra.mxu0 0.0
    %1959 = vmatprep.subr.mxu0 0.0
    %1960 = vmatpush1.msra.mxu0 0.0
    %1961 = vmatprep.subr.mxu0 0.0
    %1962 = vmatpush1.msra.mxu0 0.0
    %1963 = vmatprep.subr.mxu0 0.0
    %1964 = vmatpush1.msra.mxu0 0.0
    %1965 = vmatprep.subr.mxu0 0.0
    %1966 = vmatpush1.msra.mxu0 0.0
    %1967 = vmatprep.subr.mxu0 0.0
    %1968 = vmatpush1.msra.mxu0 0.0
    %1969 = vmatprep.mubr.f32.mxu0 0.0
    %1970 = vmatmul.mubr.f32.gmra.mrb[0].mxu0 %v1904
    %v1971 = vpop.f32.mrb[0].mxu0
    %v1972 = vadd.f32 0.0, %v1971
    %v1973 = vpop.f32.mrb[0].mxu0
    %1974 = vdwg.mxu0
    %v1975 = vld [vmem:[%s1384] sm:$0xff]
    %v1976 = vadd.f32 %v1975, %v1972
    %1977 = vst [vmem:[%s1384] sm:$0xff] %v1976
    %v1978 = vld [vmem:[%s1209] sm:$0xff]
    %v1979 = vmul.f32 %v1978, %v1528
    %1980 = vmatprep.subr.mxu0 0.0
    %1981 = vmatpush1.msra.mxu0 %v91
    %1982 = vmatprep.subr.mxu0 0.0
    %1983 = vmatpush1.msra.mxu0 %v92
    %1984 = vmatprep.subr.mxu0 0.0
    %1985 = vmatpush1.msra.mxu0 %v93
    %1986 = vmatprep.subr.mxu0 0.0
    %1987 = vmatpush1.msra.mxu0 %v94
    %1988 = vmatprep.subr.mxu0 0.0
    %1989 = vmatpush1.msra.mxu0 %v95
    %1990 = vmatprep.subr.mxu0 0.0
    %1991 = vmatpush1.msra.mxu0 %v96
    %1992 = vmatprep.subr.mxu0 0.0
    %1993 = vmatpush1.msra.mxu0 %v97
    %1994 = vmatprep.subr.mxu0 0.0
    %1995 = vmatpush1.msra.mxu0 %v98
    %1996 = vmatprep.subr.mxu0 0.0
    %1997 = vmatpush1.msra.mxu0 %v99
    %1998 = vmatprep.subr.mxu0 0.0
    %1999 = vmatpush1.msra.mxu0 %v100
    %2000 = vmatprep.subr.mxu0 0.0
    %2001 = vmatpush1.msra.mxu0 %v101
    %2002 = vmatprep.subr.mxu0 0.0
    %2003 = vmatpush1.msra.mxu0 %v102
    %2004 = vmatprep.subr.mxu0 0.0
    %2005 = vmatpush1.msra.mxu0 %v103
    %2006 = vmatprep.subr.mxu0 0.0
    %2007 = vmatpush1.msra.mxu0 %v104
    %2008 = vmatprep.subr.mxu0 0.0
    %2009 = vmatpush1.msra.mxu0 %v105
    %2010 = vmatprep.subr.mxu0 0.0
    %2011 = vmatpush1.msra.mxu0 %v106
    %2012 = vmatprep.subr.mxu0 0.0
    %2013 = vmatpush1.msra.mxu0 0.0
    %2014 = vmatprep.subr.mxu0 0.0
    %2015 = vmatpush1.msra.mxu0 0.0
    %2016 = vmatprep.subr.mxu0 0.0
    %2017 = vmatpush1.msra.mxu0 0.0
    %2018 = vmatprep.subr.mxu0 0.0
    %2019 = vmatpush1.msra.mxu0 0.0
    %2020 = vmatprep.subr.mxu0 0.0
    %2021 = vmatpush1.msra.mxu0 0.0
    %2022 = vmatprep.subr.mxu0 0.0
    %2023 = vmatpush1.msra.mxu0 0.0
    %2024 = vmatprep.subr.mxu0 0.0
    %2025 = vmatpush1.msra.mxu0 0.0
    %2026 = vmatprep.subr.mxu0 0.0
    %2027 = vmatpush1.msra.mxu0 0.0
    %2028 = vmatprep.subr.mxu0 0.0
    %2029 = vmatpush1.msra.mxu0 0.0
    %2030 = vmatprep.subr.mxu0 0.0
    %2031 = vmatpush1.msra.mxu0 0.0
    %2032 = vmatprep.subr.mxu0 0.0
    %2033 = vmatpush1.msra.mxu0 0.0
    %2034 = vmatprep.subr.mxu0 0.0
    %2035 = vmatpush1.msra.mxu0 0.0
    %2036 = vmatprep.subr.mxu0 0.0
    %2037 = vmatpush1.msra.mxu0 0.0
    %2038 = vmatprep.subr.mxu0 0.0
    %2039 = vmatpush1.msra.mxu0 0.0
    %2040 = vmatprep.subr.mxu0 0.0
    %2041 = vmatpush1.msra.mxu0 0.0
    %2042 = vmatprep.subr.mxu0 0.0
    %2043 = vmatpush1.msra.mxu0 0.0
    %2044 = vmatprep.mubr.f32.mxu0 0.0
    %2045 = vmatmul.mubr.f32.gmra.mrb[0].mxu0 %v1979
    %v2046 = vpop.f32.mrb[0].mxu0
    %v2047 = vadd.f32 0.0, %v2046
    %v2048 = vpop.f32.mrb[0].mxu0
    %2049 = vdwg.mxu0
    %v2050 = vld [vmem:[%s1387] sm:$0xff]
    %v2051 = vadd.f32 %v2050, %v2047
    %2052 = vst [vmem:[%s1387] sm:$0xff] %v2051
    %v2053 = vld [vmem:[%s1366] sm:$0xff]
    %v2054 = vmul.f32 %v2053, %v1528
    %2055 = vmatprep.subr.mxu0 0.0
    %2056 = vmatpush1.msra.mxu0 %v91
    %2057 = vmatprep.subr.mxu0 0.0
    %2058 = vmatpush1.msra.mxu0 %v92
    %2059 = vmatprep.subr.mxu0 0.0
    %2060 = vmatpush1.msra.mxu0 %v93
    %2061 = vmatprep.subr.mxu0 0.0
    %2062 = vmatpush1.msra.mxu0 %v94
    %2063 = vmatprep.subr.mxu0 0.0
    %2064 = vmatpush1.msra.mxu0 %v95
    %2065 = vmatprep.subr.mxu0 0.0
    %2066 = vmatpush1.msra.mxu0 %v96
    %2067 = vmatprep.subr.mxu0 0.0
    %2068 = vmatpush1.msra.mxu0 %v97
    %2069 = vmatprep.subr.mxu0 0.0
    %2070 = vmatpush1.msra.mxu0 %v98
    %2071 = vmatprep.subr.mxu0 0.0
    %2072 = vmatpush1.msra.mxu0 %v99
    %2073 = vmatprep.subr.mxu0 0.0
    %2074 = vmatpush1.msra.mxu0 %v100
    %2075 = vmatprep.subr.mxu0 0.0
    %2076 = vmatpush1.msra.mxu0 %v101
    %2077 = vmatprep.subr.mxu0 0.0
    %2078 = vmatpush1.msra.mxu0 %v102
    %2079 = vmatprep.subr.mxu0 0.0
    %2080 = vmatpush1.msra.mxu0 %v103
    %2081 = vmatprep.subr.mxu0 0.0
    %2082 = vmatpush1.msra.mxu0 %v104
    %2083 = vmatprep.subr.mxu0 0.0
    %2084 = vmatpush1.msra.mxu0 %v105
    %2085 = vmatprep.subr.mxu0 0.0
    %2086 = vmatpush1.msra.mxu0 %v106
    %2087 = vmatprep.subr.mxu0 0.0
    %2088 = vmatpush1.msra.mxu0 0.0
    %2089 = vmatprep.subr.mxu0 0.0
    %2090 = vmatpush1.msra.mxu0 0.0
    %2091 = vmatprep.subr.mxu0 0.0
    %2092 = vmatpush1.msra.mxu0 0.0
    %2093 = vmatprep.subr.mxu0 0.0
    %2094 = vmatpush1.msra.mxu0 0.0
    %2095 = vmatprep.subr.mxu0 0.0
    %2096 = vmatpush1.msra.mxu0 0.0
    %2097 = vmatprep.subr.mxu0 0.0
    %2098 = vmatpush1.msra.mxu0 0.0
    %2099 = vmatprep.subr.mxu0 0.0
    %2100 = vmatpush1.msra.mxu0 0.0
    %2101 = vmatprep.subr.mxu0 0.0
    %2102 = vmatpush1.msra.mxu0 0.0
    %2103 = vmatprep.subr.mxu0 0.0
    %2104 = vmatpush1.msra.mxu0 0.0
    %2105 = vmatprep.subr.mxu0 0.0
    %2106 = vmatpush1.msra.mxu0 0.0
    %2107 = vmatprep.subr.mxu0 0.0
    %2108 = vmatpush1.msra.mxu0 0.0
    %2109 = vmatprep.subr.mxu0 0.0
    %2110 = vmatpush1.msra.mxu0 0.0
    %2111 = vmatprep.subr.mxu0 0.0
    %2112 = vmatpush1.msra.mxu0 0.0
    %2113 = vmatprep.subr.mxu0 0.0
    %2114 = vmatpush1.msra.mxu0 0.0
    %2115 = vmatprep.subr.mxu0 0.0
    %2116 = vmatpush1.msra.mxu0 0.0
    %2117 = vmatprep.subr.mxu0 0.0
    %2118 = vmatpush1.msra.mxu0 0.0
    %2119 = vmatprep.mubr.f32.mxu0 0.0
    %2120 = vmatmul.mubr.f32.gmra.mrb[0].mxu0 %v2054
    %v2121 = vpop.f32.mrb[0].mxu0
    %v2122 = vadd.f32 0.0, %v2121
    %v2123 = vpop.f32.mrb[0].mxu0
    %2124 = vdwg.mxu0
    %v2125 = vld [vmem:[%s1390] sm:$0xff]
    %v2126 = vadd.f32 %v2125, %v2122
    %2127 = vst [vmem:[%s1390] sm:$0xff] %v2126
    %v2128 = vld [vmem:[#allocation4] sm:$0xff]
    %v2129 = vld [vmem:[%s1372] sm:$0xff]
    %v2130 = vmax.f32 %v2128, %v2129
    %v2131 = vld [vmem:[%s1375] sm:$0xff]
    %v2132 = vmax.f32 %v2130, %v2131
    %v2133 = vld [vmem:[%s1378] sm:$0xff]
    %v2134 = vmax.f32 %v2132, %v2133
    %v2135 = vld [vmem:[%s1381] sm:$0xff]
    %v2136 = vmax.f32 %v2134, %v2135
    %v2137 = vld [vmem:[%s1384] sm:$0xff]
    %v2138 = vmax.f32 %v2136, %v2137
    %v2139 = vld [vmem:[%s1387] sm:$0xff]
    %v2140 = vmax.f32 %v2138, %v2139
    %v2141 = vld [vmem:[%s1390] sm:$0xff]
    %v2142 = vmax.f32 %v2140, %v2141
    %v2143 = vsub.f32 %v2128, %v2142
    %v2144 = vmul.f32 %v2143, 1.442695
    %v2145 = vpow.pop %v2144
    %v2146 = vadd.f32 %v2145, 0.0
    %v2147 = vld [vmem:[#allocation3] sm:$0xff]
    %v2148 = vmul.f32 %v2145, %v2147
    %v2149 = vadd.f32 %v2148, 0.0
    %v2150 = vsub.f32 %v2129, %v2142
    %v2151 = vmul.f32 %v2150, 1.442695
    %v2152 = vpow.pop %v2151
    %v2153 = vadd.f32 %v2146, %v2152
    %v2154 = vld [vmem:[%s427] sm:$0xff]
    %v2155 = vmul.f32 %v2152, %v2154
    %v2156 = vadd.f32 %v2149, %v2155
    %v2157 = vsub.f32 %v2131, %v2142
    %v2158 = vmul.f32 %v2157, 1.442695
    %v2159 = vpow.pop %v2158
    %v2160 = vadd.f32 %v2153, %v2159
    %v2161 = vld [vmem:[%s584] sm:$0xff]
    %v2162 = vmul.f32 %v2159, %v2161
    %v2163 = vadd.f32 %v2156, %v2162
    %v2164 = vsub.f32 %v2133, %v2142
    %v2165 = vmul.f32 %v2164, 1.442695
    %v2166 = vpow.pop %v2165
    %v2167 = vadd.f32 %v2160, %v2166
    %v2168 = vld [vmem:[%s741] sm:$0xff]
    %v2169 = vmul.f32 %v2166, %v2168
    %v2170 = vadd.f32 %v2163, %v2169
    %v2171 = vsub.f32 %v2135, %v2142
    %v2172 = vmul.f32 %v2171, 1.442695
    %v2173 = vpow.pop %v2172
    %v2174 = vadd.f32 %v2167, %v2173
    %v2175 = vld [vmem:[%s898] sm:$0xff]
    %v2176 = vmul.f32 %v2173, %v2175
    %v2177 = vadd.f32 %v2170, %v2176
    %v2178 = vsub.f32 %v2137, %v2142
    %v2179 = vmul.f32 %v2178, 1.442695
    %v2180 = vpow.pop %v2179
    %v2181 = vadd.f32 %v2174, %v2180
    %v2182 = vld [vmem:[%s1055] sm:$0xff]
    %v2183 = vmul.f32 %v2180, %v2182
    %v2184 = vadd.f32 %v2177, %v2183
    %v2185 = vsub.f32 %v2139, %v2142
    %v2186 = vmul.f32 %v2185, 1.442695
    %v2187 = vpow.pop %v2186
    %v2188 = vadd.f32 %v2181, %v2187
    %v2189 = vld [vmem:[%s1212] sm:$0xff]
    %v2190 = vmul.f32 %v2187, %v2189
    %v2191 = vadd.f32 %v2184, %v2190
    %v2192 = vsub.f32 %v2141, %v2142
    %v2193 = vmul.f32 %v2192, 1.442695
    %v2194 = vpow.pop %v2193
    %v2195 = vadd.f32 %v2188, %v2194
    %v2196 = vld [vmem:[%s1369] sm:$0xff]
    %v2197 = vmul.f32 %v2194, %v2196
    %v2198 = vadd.f32 %v2191, %v2197
    %v2199 = vrcp.pop %v2195
    %v2200 = vmul.f32 %v2198, %v2199
    %v2201 = vmul.f32 %v2200, %v2200
    %2202 = vmatprep.subr.mxu0 0.0
    %2203 = vmatpush1.msra.mxu0 %v91
    %2204 = vmatprep.subr.mxu0 0.0
    %2205 = vmatpush1.msra.mxu0 %v92
    %2206 = vmatprep.subr.mxu0 0.0
    %2207 = vmatpush1.msra.mxu0 %v93
    %2208 = vmatprep.subr.mxu0 0.0
    %2209 = vmatpush1.msra.mxu0 %v94
    %2210 = vmatprep.subr.mxu0 0.0
    %2211 = vmatpush1.msra.mxu0 %v95
    %2212 = vmatprep.subr.mxu0 0.0
    %2213 = vmatpush1.msra.mxu0 %v96
    %2214 = vmatprep.subr.mxu0 0.0
    %2215 = vmatpush1.msra.mxu0 %v97
    %2216 = vmatprep.subr.mxu0 0.0
    %2217 = vmatpush1.msra.mxu0 %v98
    %2218 = vmatprep.subr.mxu0 0.0
    %2219 = vmatpush1.msra.mxu0 %v99
    %2220 = vmatprep.subr.mxu0 0.0
    %2221 = vmatpush1.msra.mxu0 %v100
    %2222 = vmatprep.subr.mxu0 0.0
    %2223 = vmatpush1.msra.mxu0 %v101
    %2224 = vmatprep.subr.mxu0 0.0
    %2225 = vmatpush1.msra.mxu0 %v102
    %2226 = vmatprep.subr.mxu0 0.0
    %2227 = vmatpush1.msra.mxu0 %v103
    %2228 = vmatprep.subr.mxu0 0.0
    %2229 = vmatpush1.msra.mxu0 %v104
    %2230 = vmatprep.subr.mxu0 0.0
    %2231 = vmatpush1.msra.mxu0 %v105
    %2232 = vmatprep.subr.mxu0 0.0
    %2233 = vmatpush1.msra.mxu0 %v106
    %2234 = vmatprep.subr.mxu0 0.0
    %2235 = vmatpush1.msra.mxu0 0.0
    %2236 = vmatprep.subr.mxu0 0.0
    %2237 = vmatpush1.msra.mxu0 0.0
    %2238 = vmatprep.subr.mxu0 0.0
    %2239 = vmatpush1.msra.mxu0 0.0
    %2240 = vmatprep.subr.mxu0 0.0
    %2241 = vmatpush1.msra.mxu0 0.0
    %2242 = vmatprep.subr.mxu0 0.0
    %2243 = vmatpush1.msra.mxu0 0.0
    %2244 = vmatprep.subr.mxu0 0.0
    %2245 = vmatpush1.msra.mxu0 0.0
    %2246 = vmatprep.subr.mxu0 0.0
    %2247 = vmatpush1.msra.mxu0 0.0
    %2248 = vmatprep.subr.mxu0 0.0
    %2249 = vmatpush1.msra.mxu0 0.0
    %2250 = vmatprep.subr.mxu0 0.0
    %2251 = vmatpush1.msra.mxu0 0.0
    %2252 = vmatprep.subr.mxu0 0.0
    %2253 = vmatpush1.msra.mxu0 0.0
    %2254 = vmatprep.subr.mxu0 0.0
    %2255 = vmatpush1.msra.mxu0 0.0
    %2256 = vmatprep.subr.mxu0 0.0
    %2257 = vmatpush1.msra.mxu0 0.0
    %2258 = vmatprep.subr.mxu0 0.0
    %2259 = vmatpush1.msra.mxu0 0.0
    %2260 = vmatprep.subr.mxu0 0.0
    %2261 = vmatpush1.msra.mxu0 0.0
    %2262 = vmatprep.subr.mxu0 0.0
    %2263 = vmatpush1.msra.mxu0 0.0
    %2264 = vmatprep.subr.mxu0 0.0
    %2265 = vmatpush1.msra.mxu0 0.0
    %2266 = vmatprep.mubr.f32.mxu0 0.0
    %2267 = vmatmul.mubr.f32.gmra.mrb[0].mxu0 %v2201
    %v2268 = vpop.f32.mrb[0].mxu0
    %v2269 = vadd.f32 0.0, %v2268
    %v2270 = vpop.f32.mrb[0].mxu0
    %2271 = vdwg.mxu0
    %v2272 = vadd.f32 %v2269, 1e-09
    %v2273 = vrsqrt.pop %v2272
    %v2274 = vmul.f32 %v2269, %v2273
    %v2275 = vadd.f32 %v2269, 1.0
    %v2276 = vrcp.pop %v2275
    %v2277 = vmul.f32 %v2274, %v2276
    %v2278 = vmul.f32 %v2200, %v2277
    %v2279 = vld [vmem:[#allocation2] sm:$0xff]
    %v2280 = vmul.f32 %v2279, %v2278
    %2281 = vmatprep.subr.mxu0 0.0
    %2282 = vmatpush1.msra.mxu0 %v91
    %2283 = vmatprep.subr.mxu0 0.0
    %2284 = vmatpush1.msra.mxu0 %v92
    %2285 = vmatprep.subr.mxu0 0.0
    %2286 = vmatpush1.msra.mxu0 %v93
    %2287 = vmatprep.subr.mxu0 0.0
    %2288 = vmatpush1.msra.mxu0 %v94
    %2289 = vmatprep.subr.mxu0 0.0
    %2290 = vmatpush1.msra.mxu0 %v95
    %2291 = vmatprep.subr.mxu0 0.0
    %2292 = vmatpush1.msra.mxu0 %v96
    %2293 = vmatprep.subr.mxu0 0.0
    %2294 = vmatpush1.msra.mxu0 %v97
    %2295 = vmatprep.subr.mxu0 0.0
    %2296 = vmatpush1.msra.mxu0 %v98
    %2297 = vmatprep.subr.mxu0 0.0
    %2298 = vmatpush1.msra.mxu0 %v99
    %2299 = vmatprep.subr.mxu0 0.0
    %2300 = vmatpush1.msra.mxu0 %v100
    %2301 = vmatprep.subr.mxu0 0.0
    %2302 = vmatpush1.msra.mxu0 %v101
    %2303 = vmatprep.subr.mxu0 0.0
    %2304 = vmatpush1.msra.mxu0 %v102
    %2305 = vmatprep.subr.mxu0 0.0
    %2306 = vmatpush1.msra.mxu0 %v103
    %2307 = vmatprep.subr.mxu0 0.0
    %2308 = vmatpush1.msra.mxu0 %v104
    %2309 = vmatprep.subr.mxu0 0.0
    %2310 = vmatpush1.msra.mxu0 %v105
    %2311 = vmatprep.subr.mxu0 0.0
    %2312 = vmatpush1.msra.mxu0 %v106
    %2313 = vmatprep.subr.mxu0 0.0
    %2314 = vmatpush1.msra.mxu0 0.0
    %2315 = vmatprep.subr.mxu0 0.0
    %2316 = vmatpush1.msra.mxu0 0.0
    %2317 = vmatprep.subr.mxu0 0.0
    %2318 = vmatpush1.msra.mxu0 0.0
    %2319 = vmatprep.subr.mxu0 0.0
    %2320 = vmatpush1.msra.mxu0 0.0
    %2321 = vmatprep.subr.mxu0 0.0
    %2322 = vmatpush1.msra.mxu0 0.0
    %2323 = vmatprep.subr.mxu0 0.0
    %2324 = vmatpush1.msra.mxu0 0.0
    %2325 = vmatprep.subr.mxu0 0.0
    %2326 = vmatpush1.msra.mxu0 0.0
    %2327 = vmatprep.subr.mxu0 0.0
    %2328 = vmatpush1.msra.mxu0 0.0
    %2329 = vmatprep.subr.mxu0 0.0
    %2330 = vmatpush1.msra.mxu0 0.0
    %2331 = vmatprep.subr.mxu0 0.0
    %2332 = vmatpush1.msra.mxu0 0.0
    %2333 = vmatprep.subr.mxu0 0.0
    %2334 = vmatpush1.msra.mxu0 0.0
    %2335 = vmatprep.subr.mxu0 0.0
    %2336 = vmatpush1.msra.mxu0 0.0
    %2337 = vmatprep.subr.mxu0 0.0
    %2338 = vmatpush1.msra.mxu0 0.0
    %2339 = vmatprep.subr.mxu0 0.0
    %2340 = vmatpush1.msra.mxu0 0.0
    %2341 = vmatprep.subr.mxu0 0.0
    %2342 = vmatpush1.msra.mxu0 0.0
    %2343 = vmatprep.subr.mxu0 0.0
    %2344 = vmatpush1.msra.mxu0 0.0
    %2345 = vmatprep.mubr.f32.mxu0 0.0
    %2346 = vmatmul.mubr.f32.gmra.mrb[0].mxu0 %v2280
    %v2347 = vpop.f32.mrb[0].mxu0
    %v2348 = vadd.f32 0.0, %v2347
    %v2349 = vpop.f32.mrb[0].mxu0
    %2350 = vdwg.mxu0
    %v2351 = vadd.f32 %v2128, %v2348
    %2352 = vst [vmem:[#allocation4] sm:$0xff] %v2351
    %v2353 = vld [vmem:[%s424] sm:$0xff]
    %v2354 = vmul.f32 %v2353, %v2278
    %2355 = vmatprep.subr.mxu0 0.0
    %2356 = vmatpush1.msra.mxu0 %v91
    %2357 = vmatprep.subr.mxu0 0.0
    %2358 = vmatpush1.msra.mxu0 %v92
    %2359 = vmatprep.subr.mxu0 0.0
    %2360 = vmatpush1.msra.mxu0 %v93
    %2361 = vmatprep.subr.mxu0 0.0
    %2362 = vmatpush1.msra.mxu0 %v94
    %2363 = vmatprep.subr.mxu0 0.0
    %2364 = vmatpush1.msra.mxu0 %v95
    %2365 = vmatprep.subr.mxu0 0.0
    %2366 = vmatpush1.msra.mxu0 %v96
    %2367 = vmatprep.subr.mxu0 0.0
    %2368 = vmatpush1.msra.mxu0 %v97
    %2369 = vmatprep.subr.mxu0 0.0
    %2370 = vmatpush1.msra.mxu0 %v98
    %2371 = vmatprep.subr.mxu0 0.0
    %2372 = vmatpush1.msra.mxu0 %v99
    %2373 = vmatprep.subr.mxu0 0.0
    %2374 = vmatpush1.msra.mxu0 %v100
    %2375 = vmatprep.subr.mxu0 0.0
    %2376 = vmatpush1.msra.mxu0 %v101
    %2377 = vmatprep.subr.mxu0 0.0
    %2378 = vmatpush1.msra.mxu0 %v102
    %2379 = vmatprep.subr.mxu0 0.0
    %2380 = vmatpush1.msra.mxu0 %v103
    %2381 = vmatprep.subr.mxu0 0.0
    %2382 = vmatpush1.msra.mxu0 %v104
    %2383 = vmatprep.subr.mxu0 0.0
    %2384 = vmatpush1.msra.mxu0 %v105
    %2385 = vmatprep.subr.mxu0 0.0
    %2386 = vmatpush1.msra.mxu0 %v106
    %2387 = vmatprep.subr.mxu0 0.0
    %2388 = vmatpush1.msra.mxu0 0.0
    %2389 = vmatprep.subr.mxu0 0.0
    %2390 = vmatpush1.msra.mxu0 0.0
    %2391 = vmatprep.subr.mxu0 0.0
    %2392 = vmatpush1.msra.mxu0 0.0
    %2393 = vmatprep.subr.mxu0 0.0
    %2394 = vmatpush1.msra.mxu0 0.0
    %2395 = vmatprep.subr.mxu0 0.0
    %2396 = vmatpush1.msra.mxu0 0.0
    %2397 = vmatprep.subr.mxu0 0.0
    %2398 = vmatpush1.msra.mxu0 0.0
    %2399 = vmatprep.subr.mxu0 0.0
    %2400 = vmatpush1.msra.mxu0 0.0
    %2401 = vmatprep.subr.mxu0 0.0
    %2402 = vmatpush1.msra.mxu0 0.0
    %2403 = vmatprep.subr.mxu0 0.0
    %2404 = vmatpush1.msra.mxu0 0.0
    %2405 = vmatprep.subr.mxu0 0.0
    %2406 = vmatpush1.msra.mxu0 0.0
    %2407 = vmatprep.subr.mxu0 0.0
    %2408 = vmatpush1.msra.mxu0 0.0
    %2409 = vmatprep.subr.mxu0 0.0
    %2410 = vmatpush1.msra.mxu0 0.0
    %2411 = vmatprep.subr.mxu0 0.0
    %2412 = vmatpush1.msra.mxu0 0.0
    %2413 = vmatprep.subr.mxu0 0.0
    %2414 = vmatpush1.msra.mxu0 0.0
    %2415 = vmatprep.subr.mxu0 0.0
    %2416 = vmatpush1.msra.mxu0 0.0
    %2417 = vmatprep.subr.mxu0 0.0
    %2418 = vmatpush1.msra.mxu0 0.0
    %2419 = vmatprep.mubr.f32.mxu0 0.0
    %2420 = vmatmul.mubr.f32.gmra.mrb[0].mxu0 %v2354
    %v2421 = vpop.f32.mrb[0].mxu0
    %v2422 = vadd.f32 0.0, %v2421
    %v2423 = vpop.f32.mrb[0].mxu0
    %2424 = vdwg.mxu0
    %v2425 = vld [vmem:[%s1372] sm:$0xff]
    %v2426 = vadd.f32 %v2425, %v2422
    %2427 = vst [vmem:[%s1372] sm:$0xff] %v2426
    %v2428 = vld [vmem:[%s581] sm:$0xff]
    %v2429 = vmul.f32 %v2428, %v2278
    %2430 = vmatprep.subr.mxu0 0.0
    %2431 = vmatpush1.msra.mxu0 %v91
    %2432 = vmatprep.subr.mxu0 0.0
    %2433 = vmatpush1.msra.mxu0 %v92
    %2434 = vmatprep.subr.mxu0 0.0
    %2435 = vmatpush1.msra.mxu0 %v93
    %2436 = vmatprep.subr.mxu0 0.0
    %2437 = vmatpush1.msra.mxu0 %v94
    %2438 = vmatprep.subr.mxu0 0.0
    %2439 = vmatpush1.msra.mxu0 %v95
    %2440 = vmatprep.subr.mxu0 0.0
    %2441 = vmatpush1.msra.mxu0 %v96
    %2442 = vmatprep.subr.mxu0 0.0
    %2443 = vmatpush1.msra.mxu0 %v97
    %2444 = vmatprep.subr.mxu0 0.0
    %2445 = vmatpush1.msra.mxu0 %v98
    %2446 = vmatprep.subr.mxu0 0.0
    %2447 = vmatpush1.msra.mxu0 %v99
    %2448 = vmatprep.subr.mxu0 0.0
    %2449 = vmatpush1.msra.mxu0 %v100
    %2450 = vmatprep.subr.mxu0 0.0
    %2451 = vmatpush1.msra.mxu0 %v101
    %2452 = vmatprep.subr.mxu0 0.0
    %2453 = vmatpush1.msra.mxu0 %v102
    %2454 = vmatprep.subr.mxu0 0.0
    %2455 = vmatpush1.msra.mxu0 %v103
    %2456 = vmatprep.subr.mxu0 0.0
    %2457 = vmatpush1.msra.mxu0 %v104
    %2458 = vmatprep.subr.mxu0 0.0
    %2459 = vmatpush1.msra.mxu0 %v105
    %2460 = vmatprep.subr.mxu0 0.0
    %2461 = vmatpush1.msra.mxu0 %v106
    %2462 = vmatprep.subr.mxu0 0.0
    %2463 = vmatpush1.msra.mxu0 0.0
    %2464 = vmatprep.subr.mxu0 0.0
    %2465 = vmatpush1.msra.mxu0 0.0
    %2466 = vmatprep.subr.mxu0 0.0
    %2467 = vmatpush1.msra.mxu0 0.0
    %2468 = vmatprep.subr.mxu0 0.0
    %2469 = vmatpush1.msra.mxu0 0.0
    %2470 = vmatprep.subr.mxu0 0.0
    %2471 = vmatpush1.msra.mxu0 0.0
    %2472 = vmatprep.subr.mxu0 0.0
    %2473 = vmatpush1.msra.mxu0 0.0
    %2474 = vmatprep.subr.mxu0 0.0
    %2475 = vmatpush1.msra.mxu0 0.0
    %2476 = vmatprep.subr.mxu0 0.0
    %2477 = vmatpush1.msra.mxu0 0.0
    %2478 = vmatprep.subr.mxu0 0.0
    %2479 = vmatpush1.msra.mxu0 0.0
    %2480 = vmatprep.subr.mxu0 0.0
    %2481 = vmatpush1.msra.mxu0 0.0
    %2482 = vmatprep.subr.mxu0 0.0
    %2483 = vmatpush1.msra.mxu0 0.0
    %2484 = vmatprep.subr.mxu0 0.0
    %2485 = vmatpush1.msra.mxu0 0.0
    %2486 = vmatprep.subr.mxu0 0.0
    %2487 = vmatpush1.msra.mxu0 0.0
    %2488 = vmatprep.subr.mxu0 0.0
    %2489 = vmatpush1.msra.mxu0 0.0
    %2490 = vmatprep.subr.mxu0 0.0
    %2491 = vmatpush1.msra.mxu0 0.0
    %2492 = vmatprep.subr.mxu0 0.0
    %2493 = vmatpush1.msra.mxu0 0.0
    %2494 = vmatprep.mubr.f32.mxu0 0.0
    %2495 = vmatmul.mubr.f32.gmra.mrb[0].mxu0 %v2429
    %v2496 = vpop.f32.mrb[0].mxu0
    %v2497 = vadd.f32 0.0, %v2496
    %v2498 = vpop.f32.mrb[0].mxu0
    %2499 = vdwg.mxu0
    %v2500 = vld [vmem:[%s1375] sm:$0xff]
    %v2501 = vadd.f32 %v2500, %v2497
    %2502 = vst [vmem:[%s1375] sm:$0xff] %v2501
    %v2503 = vld [vmem:[%s738] sm:$0xff]
    %v2504 = vmul.f32 %v2503, %v2278
    %2505 = vmatprep.subr.mxu0 0.0
    %2506 = vmatpush1.msra.mxu0 %v91
    %2507 = vmatprep.subr.mxu0 0.0
    %2508 = vmatpush1.msra.mxu0 %v92
    %2509 = vmatprep.subr.mxu0 0.0
    %2510 = vmatpush1.msra.mxu0 %v93
    %2511 = vmatprep.subr.mxu0 0.0
    %2512 = vmatpush1.msra.mxu0 %v94
    %2513 = vmatprep.subr.mxu0 0.0
    %2514 = vmatpush1.msra.mxu0 %v95
    %2515 = vmatprep.subr.mxu0 0.0
    %2516 = vmatpush1.msra.mxu0 %v96
    %2517 = vmatprep.subr.mxu0 0.0
    %2518 = vmatpush1.msra.mxu0 %v97
    %2519 = vmatprep.subr.mxu0 0.0
    %2520 = vmatpush1.msra.mxu0 %v98
    %2521 = vmatprep.subr.mxu0 0.0
    %2522 = vmatpush1.msra.mxu0 %v99
    %2523 = vmatprep.subr.mxu0 0.0
    %2524 = vmatpush1.msra.mxu0 %v100
    %2525 = vmatprep.subr.mxu0 0.0
    %2526 = vmatpush1.msra.mxu0 %v101
    %2527 = vmatprep.subr.mxu0 0.0
    %2528 = vmatpush1.msra.mxu0 %v102
    %2529 = vmatprep.subr.mxu0 0.0
    %2530 = vmatpush1.msra.mxu0 %v103
    %2531 = vmatprep.subr.mxu0 0.0
    %2532 = vmatpush1.msra.mxu0 %v104
    %2533 = vmatprep.subr.mxu0 0.0
    %2534 = vmatpush1.msra.mxu0 %v105
    %2535 = vmatprep.subr.mxu0 0.0
    %2536 = vmatpush1.msra.mxu0 %v106
    %2537 = vmatprep.subr.mxu0 0.0
    %2538 = vmatpush1.msra.mxu0 0.0
    %2539 = vmatprep.subr.mxu0 0.0
    %2540 = vmatpush1.msra.mxu0 0.0
    %2541 = vmatprep.subr.mxu0 0.0
    %2542 = vmatpush1.msra.mxu0 0.0
    %2543 = vmatprep.subr.mxu0 0.0
    %2544 = vmatpush1.msra.mxu0 0.0
    %2545 = vmatprep.subr.mxu0 0.0
    %2546 = vmatpush1.msra.mxu0 0.0
    %2547 = vmatprep.subr.mxu0 0.0
    %2548 = vmatpush1.msra.mxu0 0.0
    %2549 = vmatprep.subr.mxu0 0.0
    %2550 = vmatpush1.msra.mxu0 0.0
    %2551 = vmatprep.subr.mxu0 0.0
    %2552 = vmatpush1.msra.mxu0 0.0
    %2553 = vmatprep.subr.mxu0 0.0
    %2554 = vmatpush1.msra.mxu0 0.0
    %2555 = vmatprep.subr.mxu0 0.0
    %2556 = vmatpush1.msra.mxu0 0.0
    %2557 = vmatprep.subr.mxu0 0.0
    %2558 = vmatpush1.msra.mxu0 0.0
    %2559 = vmatprep.subr.mxu0 0.0
    %2560 = vmatpush1.msra.mxu0 0.0
    %2561 = vmatprep.subr.mxu0 0.0
    %2562 = vmatpush1.msra.mxu0 0.0
    %2563 = vmatprep.subr.mxu0 0.0
    %2564 = vmatpush1.msra.mxu0 0.0
    %2565 = vmatprep.subr.mxu0 0.0
    %2566 = vmatpush1.msra.mxu0 0.0
    %2567 = vmatprep.subr.mxu0 0.0
    %2568 = vmatpush1.msra.mxu0 0.0
    %2569 = vmatprep.mubr.f32.mxu0 0.0
    %2570 = vmatmul.mubr.f32.gmra.mrb[0].mxu0 %v2504
    %v2571 = vpop.f32.mrb[0].mxu0
    %v2572 = vadd.f32 0.0, %v2571
    %v2573 = vpop.f32.mrb[0].mxu0
    %2574 = vdwg.mxu0
    %v2575 = vld [vmem:[%s1378] sm:$0xff]
    %v2576 = vadd.f32 %v2575, %v2572
    %2577 = vst [vmem:[%s1378] sm:$0xff] %v2576
    %v2578 = vld [vmem:[%s895] sm:$0xff]
    %v2579 = vmul.f32 %v2578, %v2278
    %2580 = vmatprep.subr.mxu0 0.0
    %2581 = vmatpush1.msra.mxu0 %v91
    %2582 = vmatprep.subr.mxu0 0.0
    %2583 = vmatpush1.msra.mxu0 %v92
    %2584 = vmatprep.subr.mxu0 0.0
    %2585 = vmatpush1.msra.mxu0 %v93
    %2586 = vmatprep.subr.mxu0 0.0
    %2587 = vmatpush1.msra.mxu0 %v94
    %2588 = vmatprep.subr.mxu0 0.0
    %2589 = vmatpush1.msra.mxu0 %v95
    %2590 = vmatprep.subr.mxu0 0.0
    %2591 = vmatpush1.msra.mxu0 %v96
    %2592 = vmatprep.subr.mxu0 0.0
    %2593 = vmatpush1.msra.mxu0 %v97
    %2594 = vmatprep.subr.mxu0 0.0
    %2595 = vmatpush1.msra.mxu0 %v98
    %2596 = vmatprep.subr.mxu0 0.0
    %2597 = vmatpush1.msra.mxu0 %v99
    %2598 = vmatprep.subr.mxu0 0.0
    %2599 = vmatpush1.msra.mxu0 %v100
    %2600 = vmatprep.subr.mxu0 0.0
    %2601 = vmatpush1.msra.mxu0 %v101
    %2602 = vmatprep.subr.mxu0 0.0
    %2603 = vmatpush1.msra.mxu0 %v102
    %2604 = vmatprep.subr.mxu0 0.0
    %2605 = vmatpush1.msra.mxu0 %v103
    %2606 = vmatprep.subr.mxu0 0.0
    %2607 = vmatpush1.msra.mxu0 %v104
    %2608 = vmatprep.subr.mxu0 0.0
    %2609 = vmatpush1.msra.mxu0 %v105
    %2610 = vmatprep.subr.mxu0 0.0
    %2611 = vmatpush1.msra.mxu0 %v106
    %2612 = vmatprep.subr.mxu0 0.0
    %2613 = vmatpush1.msra.mxu0 0.0
    %2614 = vmatprep.subr.mxu0 0.0
    %2615 = vmatpush1.msra.mxu0 0.0
    %2616 = vmatprep.subr.mxu0 0.0
    %2617 = vmatpush1.msra.mxu0 0.0
    %2618 = vmatprep.subr.mxu0 0.0
    %2619 = vmatpush1.msra.mxu0 0.0
    %2620 = vmatprep.subr.mxu0 0.0
    %2621 = vmatpush1.msra.mxu0 0.0
    %2622 = vmatprep.subr.mxu0 0.0
    %2623 = vmatpush1.msra.mxu0 0.0
    %2624 = vmatprep.subr.mxu0 0.0
    %2625 = vmatpush1.msra.mxu0 0.0
    %2626 = vmatprep.subr.mxu0 0.0
    %2627 = vmatpush1.msra.mxu0 0.0
    %2628 = vmatprep.subr.mxu0 0.0
    %2629 = vmatpush1.msra.mxu0 0.0
    %2630 = vmatprep.subr.mxu0 0.0
    %2631 = vmatpush1.msra.mxu0 0.0
    %2632 = vmatprep.subr.mxu0 0.0
    %2633 = vmatpush1.msra.mxu0 0.0
    %2634 = vmatprep.subr.mxu0 0.0
    %2635 = vmatpush1.msra.mxu0 0.0
    %2636 = vmatprep.subr.mxu0 0.0
    %2637 = vmatpush1.msra.mxu0 0.0
    %2638 = vmatprep.subr.mxu0 0.0
    %2639 = vmatpush1.msra.mxu0 0.0
    %2640 = vmatprep.subr.mxu0 0.0
    %2641 = vmatpush1.msra.mxu0 0.0
    %2642 = vmatprep.subr.mxu0 0.0
    %2643 = vmatpush1.msra.mxu0 0.0
    %2644 = vmatprep.mubr.f32.mxu0 0.0
    %2645 = vmatmul.mubr.f32.gmra.mrb[0].mxu0 %v2579
    %v2646 = vpop.f32.mrb[0].mxu0
    %v2647 = vadd.f32 0.0, %v2646
    %v2648 = vpop.f32.mrb[0].mxu0
    %2649 = vdwg.mxu0
    %v2650 = vld [vmem:[%s1381] sm:$0xff]
    %v2651 = vadd.f32 %v2650, %v2647
    %2652 = vst [vmem:[%s1381] sm:$0xff] %v2651
    %v2653 = vld [vmem:[%s1052] sm:$0xff]
    %v2654 = vmul.f32 %v2653, %v2278
    %2655 = vmatprep.subr.mxu0 0.0
    %2656 = vmatpush1.msra.mxu0 %v91
    %2657 = vmatprep.subr.mxu0 0.0
    %2658 = vmatpush1.msra.mxu0 %v92
    %2659 = vmatprep.subr.mxu0 0.0
    %2660 = vmatpush1.msra.mxu0 %v93
    %2661 = vmatprep.subr.mxu0 0.0
    %2662 = vmatpush1.msra.mxu0 %v94
    %2663 = vmatprep.subr.mxu0 0.0
    %2664 = vmatpush1.msra.mxu0 %v95
    %2665 = vmatprep.subr.mxu0 0.0
    %2666 = vmatpush1.msra.mxu0 %v96
    %2667 = vmatprep.subr.mxu0 0.0
    %2668 = vmatpush1.msra.mxu0 %v97
    %2669 = vmatprep.subr.mxu0 0.0
    %2670 = vmatpush1.msra.mxu0 %v98
    %2671 = vmatprep.subr.mxu0 0.0
    %2672 = vmatpush1.msra.mxu0 %v99
    %2673 = vmatprep.subr.mxu0 0.0
    %2674 = vmatpush1.msra.mxu0 %v100
    %2675 = vmatprep.subr.mxu0 0.0
    %2676 = vmatpush1.msra.mxu0 %v101
    %2677 = vmatprep.subr.mxu0 0.0
    %2678 = vmatpush1.msra.mxu0 %v102
    %2679 = vmatprep.subr.mxu0 0.0
    %2680 = vmatpush1.msra.mxu0 %v103
    %2681 = vmatprep.subr.mxu0 0.0
    %2682 = vmatpush1.msra.mxu0 %v104
    %2683 = vmatprep.subr.mxu0 0.0
    %2684 = vmatpush1.msra.mxu0 %v105
    %2685 = vmatprep.subr.mxu0 0.0
    %2686 = vmatpush1.msra.mxu0 %v106
    %2687 = vmatprep.subr.mxu0 0.0
    %2688 = vmatpush1.msra.mxu0 0.0
    %2689 = vmatprep.subr.mxu0 0.0
    %2690 = vmatpush1.msra.mxu0 0.0
    %2691 = vmatprep.subr.mxu0 0.0
    %2692 = vmatpush1.msra.mxu0 0.0
    %2693 = vmatprep.subr.mxu0 0.0
    %2694 = vmatpush1.msra.mxu0 0.0
    %2695 = vmatprep.subr.mxu0 0.0
    %2696 = vmatpush1.msra.mxu0 0.0
    %2697 = vmatprep.subr.mxu0 0.0
    %2698 = vmatpush1.msra.mxu0 0.0
    %2699 = vmatprep.subr.mxu0 0.0
    %2700 = vmatpush1.msra.mxu0 0.0
    %2701 = vmatprep.subr.mxu0 0.0
    %2702 = vmatpush1.msra.mxu0 0.0
    %2703 = vmatprep.subr.mxu0 0.0
    %2704 = vmatpush1.msra.mxu0 0.0
    %2705 = vmatprep.subr.mxu0 0.0
    %2706 = vmatpush1.msra.mxu0 0.0
    %2707 = vmatprep.subr.mxu0 0.0
    %2708 = vmatpush1.msra.mxu0 0.0
    %2709 = vmatprep.subr.mxu0 0.0
    %2710 = vmatpush1.msra.mxu0 0.0
    %2711 = vmatprep.subr.mxu0 0.0
    %2712 = vmatpush1.msra.mxu0 0.0
    %2713 = vmatprep.subr.mxu0 0.0
    %2714 = vmatpush1.msra.mxu0 0.0
    %2715 = vmatprep.subr.mxu0 0.0
    %2716 = vmatpush1.msra.mxu0 0.0
    %2717 = vmatprep.subr.mxu0 0.0
    %2718 = vmatpush1.msra.mxu0 0.0
    %2719 = vmatprep.mubr.f32.mxu0 0.0
    %2720 = vmatmul.mubr.f32.gmra.mrb[0].mxu0 %v2654
    %v2721 = vpop.f32.mrb[0].mxu0
    %v2722 = vadd.f32 0.0, %v2721
    %v2723 = vpop.f32.mrb[0].mxu0
    %2724 = vdwg.mxu0
    %v2725 = vld [vmem:[%s1384] sm:$0xff]
    %v2726 = vadd.f32 %v2725, %v2722
    %2727 = vst [vmem:[%s1384] sm:$0xff] %v2726
    %v2728 = vld [vmem:[%s1209] sm:$0xff]
    %v2729 = vmul.f32 %v2728, %v2278
    %2730 = vmatprep.subr.mxu0 0.0
    %2731 = vmatpush1.msra.mxu0 %v91
    %2732 = vmatprep.subr.mxu0 0.0
    %2733 = vmatpush1.msra.mxu0 %v92
    %2734 = vmatprep.subr.mxu0 0.0
    %2735 = vmatpush1.msra.mxu0 %v93
    %2736 = vmatprep.subr.mxu0 0.0
    %2737 = vmatpush1.msra.mxu0 %v94
    %2738 = vmatprep.subr.mxu0 0.0
    %2739 = vmatpush1.msra.mxu0 %v95
    %2740 = vmatprep.subr.mxu0 0.0
    %2741 = vmatpush1.msra.mxu0 %v96
    %2742 = vmatprep.subr.mxu0 0.0
    %2743 = vmatpush1.msra.mxu0 %v97
    %2744 = vmatprep.subr.mxu0 0.0
    %2745 = vmatpush1.msra.mxu0 %v98
    %2746 = vmatprep.subr.mxu0 0.0
    %2747 = vmatpush1.msra.mxu0 %v99
    %2748 = vmatprep.subr.mxu0 0.0
    %2749 = vmatpush1.msra.mxu0 %v100
    %2750 = vmatprep.subr.mxu0 0.0
    %2751 = vmatpush1.msra.mxu0 %v101
    %2752 = vmatprep.subr.mxu0 0.0
    %2753 = vmatpush1.msra.mxu0 %v102
    %2754 = vmatprep.subr.mxu0 0.0
    %2755 = vmatpush1.msra.mxu0 %v103
    %2756 = vmatprep.subr.mxu0 0.0
    %2757 = vmatpush1.msra.mxu0 %v104
    %2758 = vmatprep.subr.mxu0 0.0
    %2759 = vmatpush1.msra.mxu0 %v105
    %2760 = vmatprep.subr.mxu0 0.0
    %2761 = vmatpush1.msra.mxu0 %v106
    %2762 = vmatprep.subr.mxu0 0.0
    %2763 = vmatpush1.msra.mxu0 0.0
    %2764 = vmatprep.subr.mxu0 0.0
    %2765 = vmatpush1.msra.mxu0 0.0
    %2766 = vmatprep.subr.mxu0 0.0
    %2767 = vmatpush1.msra.mxu0 0.0
    %2768 = vmatprep.subr.mxu0 0.0
    %2769 = vmatpush1.msra.mxu0 0.0
    %2770 = vmatprep.subr.mxu0 0.0
    %2771 = vmatpush1.msra.mxu0 0.0
    %2772 = vmatprep.subr.mxu0 0.0
    %2773 = vmatpush1.msra.mxu0 0.0
    %2774 = vmatprep.subr.mxu0 0.0
    %2775 = vmatpush1.msra.mxu0 0.0
    %2776 = vmatprep.subr.mxu0 0.0
    %2777 = vmatpush1.msra.mxu0 0.0
    %2778 = vmatprep.subr.mxu0 0.0
    %2779 = vmatpush1.msra.mxu0 0.0
    %2780 = vmatprep.subr.mxu0 0.0
    %2781 = vmatpush1.msra.mxu0 0.0
    %2782 = vmatprep.subr.mxu0 0.0
    %2783 = vmatpush1.msra.mxu0 0.0
    %2784 = vmatprep.subr.mxu0 0.0
    %2785 = vmatpush1.msra.mxu0 0.0
    %2786 = vmatprep.subr.mxu0 0.0
    %2787 = vmatpush1.msra.mxu0 0.0
    %2788 = vmatprep.subr.mxu0 0.0
    %2789 = vmatpush1.msra.mxu0 0.0
    %2790 = vmatprep.subr.mxu0 0.0
    %2791 = vmatpush1.msra.mxu0 0.0
    %2792 = vmatprep.subr.mxu0 0.0
    %2793 = vmatpush1.msra.mxu0 0.0
    %2794 = vmatprep.mubr.f32.mxu0 0.0
    %2795 = vmatmul.mubr.f32.gmra.mrb[0].mxu0 %v2729
    %v2796 = vpop.f32.mrb[0].mxu0
    %v2797 = vadd.f32 0.0, %v2796
    %v2798 = vpop.f32.mrb[0].mxu0
    %2799 = vdwg.mxu0
    %v2800 = vld [vmem:[%s1387] sm:$0xff]
    %v2801 = vadd.f32 %v2800, %v2797
    %2802 = vst [vmem:[%s1387] sm:$0xff] %v2801
    %v2803 = vld [vmem:[%s1366] sm:$0xff]
    %v2804 = vmul.f32 %v2803, %v2278
    %2805 = vmatprep.subr.mxu0 0.0
    %2806 = vmatpush1.msra.mxu0 %v91
    %2807 = vmatprep.subr.mxu0 0.0
    %2808 = vmatpush1.msra.mxu0 %v92
    %2809 = vmatprep.subr.mxu0 0.0
    %2810 = vmatpush1.msra.mxu0 %v93
    %2811 = vmatprep.subr.mxu0 0.0
    %2812 = vmatpush1.msra.mxu0 %v94
    %2813 = vmatprep.subr.mxu0 0.0
    %2814 = vmatpush1.msra.mxu0 %v95
    %2815 = vmatprep.subr.mxu0 0.0
    %2816 = vmatpush1.msra.mxu0 %v96
    %2817 = vmatprep.subr.mxu0 0.0
    %2818 = vmatpush1.msra.mxu0 %v97
    %2819 = vmatprep.subr.mxu0 0.0
    %2820 = vmatpush1.msra.mxu0 %v98
    %2821 = vmatprep.subr.mxu0 0.0
    %2822 = vmatpush1.msra.mxu0 %v99
    %2823 = vmatprep.subr.mxu0 0.0
    %2824 = vmatpush1.msra.mxu0 %v100
    %2825 = vmatprep.subr.mxu0 0.0
    %2826 = vmatpush1.msra.mxu0 %v101
    %2827 = vmatprep.subr.mxu0 0.0
    %2828 = vmatpush1.msra.mxu0 %v102
    %2829 = vmatprep.subr.mxu0 0.0
    %2830 = vmatpush1.msra.mxu0 %v103
    %2831 = vmatprep.subr.mxu0 0.0
    %2832 = vmatpush1.msra.mxu0 %v104
    %2833 = vmatprep.subr.mxu0 0.0
    %2834 = vmatpush1.msra.mxu0 %v105
    %2835 = vmatprep.subr.mxu0 0.0
    %2836 = vmatpush1.msra.mxu0 %v106
    %2837 = vmatprep.subr.mxu0 0.0
    %2838 = vmatpush1.msra.mxu0 0.0
    %2839 = vmatprep.subr.mxu0 0.0
    %2840 = vmatpush1.msra.mxu0 0.0
    %2841 = vmatprep.subr.mxu0 0.0
    %2842 = vmatpush1.msra.mxu0 0.0
    %2843 = vmatprep.subr.mxu0 0.0
    %2844 = vmatpush1.msra.mxu0 0.0
    %2845 = vmatprep.subr.mxu0 0.0
    %2846 = vmatpush1.msra.mxu0 0.0
    %2847 = vmatprep.subr.mxu0 0.0
    %2848 = vmatpush1.msra.mxu0 0.0
    %2849 = vmatprep.subr.mxu0 0.0
    %2850 = vmatpush1.msra.mxu0 0.0
    %2851 = vmatprep.subr.mxu0 0.0
    %2852 = vmatpush1.msra.mxu0 0.0
    %2853 = vmatprep.subr.mxu0 0.0
    %2854 = vmatpush1.msra.mxu0 0.0
    %2855 = vmatprep.subr.mxu0 0.0
    %2856 = vmatpush1.msra.mxu0 0.0
    %2857 = vmatprep.subr.mxu0 0.0
    %2858 = vmatpush1.msra.mxu0 0.0
    %2859 = vmatprep.subr.mxu0 0.0
    %2860 = vmatpush1.msra.mxu0 0.0
    %2861 = vmatprep.subr.mxu0 0.0
    %2862 = vmatpush1.msra.mxu0 0.0
    %2863 = vmatprep.subr.mxu0 0.0
    %2864 = vmatpush1.msra.mxu0 0.0
    %2865 = vmatprep.subr.mxu0 0.0
    %2866 = vmatpush1.msra.mxu0 0.0
    %2867 = vmatprep.subr.mxu0 0.0
    %2868 = vmatpush1.msra.mxu0 0.0
    %2869 = vmatprep.mubr.f32.mxu0 0.0
    %2870 = vmatmul.mubr.f32.gmra.mrb[0].mxu0 %v2804
    %v2871 = vpop.f32.mrb[0].mxu0
    %v2872 = vadd.f32 0.0, %v2871
    %v2873 = vpop.f32.mrb[0].mxu0
    %2874 = vdwg.mxu0
    %v2875 = vld [vmem:[%s1390] sm:$0xff]
    %v2876 = vadd.f32 %v2875, %v2872
    %2877 = vst [vmem:[%s1390] sm:$0xff] %v2876
    %v2878 = vld [vmem:[#allocation4] sm:$0xff]
    %v2879 = vld [vmem:[%s1372] sm:$0xff]
    %v2880 = vmax.f32 %v2878, %v2879
    %v2881 = vld [vmem:[%s1375] sm:$0xff]
    %v2882 = vmax.f32 %v2880, %v2881
    %v2883 = vld [vmem:[%s1378] sm:$0xff]
    %v2884 = vmax.f32 %v2882, %v2883
    %v2885 = vld [vmem:[%s1381] sm:$0xff]
    %v2886 = vmax.f32 %v2884, %v2885
    %v2887 = vld [vmem:[%s1384] sm:$0xff]
    %v2888 = vmax.f32 %v2886, %v2887
    %v2889 = vld [vmem:[%s1387] sm:$0xff]
    %v2890 = vmax.f32 %v2888, %v2889
    %v2891 = vld [vmem:[%s1390] sm:$0xff]
    %v2892 = vmax.f32 %v2890, %v2891
    %v2893 = vsub.f32 %v2878, %v2892
    %v2894 = vmul.f32 %v2893, 1.442695
    %v2895 = vpow.pop %v2894
    %v2896 = vadd.f32 %v2895, 0.0
    %v2897 = vld [vmem:[#allocation3] sm:$0xff]
    %v2898 = vmul.f32 %v2895, %v2897
    %v2899 = vadd.f32 %v2898, 0.0
    %v2900 = vsub.f32 %v2879, %v2892
    %v2901 = vmul.f32 %v2900, 1.442695
    %v2902 = vpow.pop %v2901
    %v2903 = vadd.f32 %v2896, %v2902
    %v2904 = vld [vmem:[%s427] sm:$0xff]
    %v2905 = vmul.f32 %v2902, %v2904
    %v2906 = vadd.f32 %v2899, %v2905
    %v2907 = vsub.f32 %v2881, %v2892
    %v2908 = vmul.f32 %v2907, 1.442695
    %v2909 = vpow.pop %v2908
    %v2910 = vadd.f32 %v2903, %v2909
    %v2911 = vld [vmem:[%s584] sm:$0xff]
    %v2912 = vmul.f32 %v2909, %v2911
    %v2913 = vadd.f32 %v2906, %v2912
    %v2914 = vsub.f32 %v2883, %v2892
    %v2915 = vmul.f32 %v2914, 1.442695
    %v2916 = vpow.pop %v2915
    %v2917 = vadd.f32 %v2910, %v2916
    %v2918 = vld [vmem:[%s741] sm:$0xff]
    %v2919 = vmul.f32 %v2916, %v2918
    %v2920 = vadd.f32 %v2913, %v2919
    %v2921 = vsub.f32 %v2885, %v2892
    %v2922 = vmul.f32 %v2921, 1.442695
    %v2923 = vpow.pop %v2922
    %v2924 = vadd.f32 %v2917, %v2923
    %v2925 = vld [vmem:[%s898] sm:$0xff]
    %v2926 = vmul.f32 %v2923, %v2925
    %v2927 = vadd.f32 %v2920, %v2926
    %v2928 = vsub.f32 %v2887, %v2892
    %v2929 = vmul.f32 %v2928, 1.442695
    %v2930 = vpow.pop %v2929
    %v2931 = vadd.f32 %v2924, %v2930
    %v2932 = vld [vmem:[%s1055] sm:$0xff]
    %v2933 = vmul.f32 %v2930, %v2932
    %v2934 = vadd.f32 %v2927, %v2933
    %v2935 = vsub.f32 %v2889, %v2892
    %v2936 = vmul.f32 %v2935, 1.442695
    %v2937 = vpow.pop %v2936
    %v2938 = vadd.f32 %v2931, %v2937
    %v2939 = vld [vmem:[%s1212] sm:$0xff]
    %v2940 = vmul.f32 %v2937, %v2939
    %v2941 = vadd.f32 %v2934, %v2940
    %v2942 = vsub.f32 %v2891, %v2892
    %v2943 = vmul.f32 %v2942, 1.442695
    %v2944 = vpow.pop %v2943
    %v2945 = vadd.f32 %v2938, %v2944
    %v2946 = vld [vmem:[%s1369] sm:$0xff]
    %v2947 = vmul.f32 %v2944, %v2946
    %v2948 = vadd.f32 %v2941, %v2947
    %v2949 = vrcp.pop %v2945
    %v2950 = vmul.f32 %v2948, %v2949
    %v2951 = vmul.f32 %v2950, %v2950
    %2952 = vmatprep.subr.mxu0 0.0
    %2953 = vmatpush1.msra.mxu0 %v91
    %2954 = vmatprep.subr.mxu0 0.0
    %2955 = vmatpush1.msra.mxu0 %v92
    %2956 = vmatprep.subr.mxu0 0.0
    %2957 = vmatpush1.msra.mxu0 %v93
    %2958 = vmatprep.subr.mxu0 0.0
    %2959 = vmatpush1.msra.mxu0 %v94
    %2960 = vmatprep.subr.mxu0 0.0
    %2961 = vmatpush1.msra.mxu0 %v95
    %2962 = vmatprep.subr.mxu0 0.0
    %2963 = vmatpush1.msra.mxu0 %v96
    %2964 = vmatprep.subr.mxu0 0.0
    %2965 = vmatpush1.msra.mxu0 %v97
    %2966 = vmatprep.subr.mxu0 0.0
    %2967 = vmatpush1.msra.mxu0 %v98
    %2968 = vmatprep.subr.mxu0 0.0
    %2969 = vmatpush1.msra.mxu0 %v99
    %2970 = vmatprep.subr.mxu0 0.0
    %2971 = vmatpush1.msra.mxu0 %v100
    %2972 = vmatprep.subr.mxu0 0.0
    %2973 = vmatpush1.msra.mxu0 %v101
    %2974 = vmatprep.subr.mxu0 0.0
    %2975 = vmatpush1.msra.mxu0 %v102
    %2976 = vmatprep.subr.mxu0 0.0
    %2977 = vmatpush1.msra.mxu0 %v103
    %2978 = vmatprep.subr.mxu0 0.0
    %2979 = vmatpush1.msra.mxu0 %v104
    %2980 = vmatprep.subr.mxu0 0.0
    %2981 = vmatpush1.msra.mxu0 %v105
    %2982 = vmatprep.subr.mxu0 0.0
    %2983 = vmatpush1.msra.mxu0 %v106
    %2984 = vmatprep.subr.mxu0 0.0
    %2985 = vmatpush1.msra.mxu0 0.0
    %2986 = vmatprep.subr.mxu0 0.0
    %2987 = vmatpush1.msra.mxu0 0.0
    %2988 = vmatprep.subr.mxu0 0.0
    %2989 = vmatpush1.msra.mxu0 0.0
    %2990 = vmatprep.subr.mxu0 0.0
    %2991 = vmatpush1.msra.mxu0 0.0
    %2992 = vmatprep.subr.mxu0 0.0
    %2993 = vmatpush1.msra.mxu0 0.0
    %2994 = vmatprep.subr.mxu0 0.0
    %2995 = vmatpush1.msra.mxu0 0.0
    %2996 = vmatprep.subr.mxu0 0.0
    %2997 = vmatpush1.msra.mxu0 0.0
    %2998 = vmatprep.subr.mxu0 0.0
    %2999 = vmatpush1.msra.mxu0 0.0
    %3000 = vmatprep.subr.mxu0 0.0
    %3001 = vmatpush1.msra.mxu0 0.0
    %3002 = vmatprep.subr.mxu0 0.0
    %3003 = vmatpush1.msra.mxu0 0.0
    %3004 = vmatprep.subr.mxu0 0.0
    %3005 = vmatpush1.msra.mxu0 0.0
    %3006 = vmatprep.subr.mxu0 0.0
    %3007 = vmatpush1.msra.mxu0 0.0
    %3008 = vmatprep.subr.mxu0 0.0
    %3009 = vmatpush1.msra.mxu0 0.0
    %3010 = vmatprep.subr.mxu0 0.0
    %3011 = vmatpush1.msra.mxu0 0.0
    %3012 = vmatprep.subr.mxu0 0.0
    %3013 = vmatpush1.msra.mxu0 0.0
    %3014 = vmatprep.subr.mxu0 0.0
    %3015 = vmatpush1.msra.mxu0 0.0
    %3016 = vmatprep.mubr.f32.mxu0 0.0
    %3017 = vmatmul.mubr.f32.gmra.mrb[0].mxu0 %v2951
    %v3018 = vpop.f32.mrb[0].mxu0
    %v3019 = vadd.f32 0.0, %v3018
    %v3020 = vpop.f32.mrb[0].mxu0
    %3021 = vdwg.mxu0
    %v3022 = vadd.f32 %v3019, 1e-09
    %v3023 = vrsqrt.pop %v3022
    %v3024 = vmul.f32 %v3019, %v3023
    %v3025 = vadd.f32 %v3019, 1.0
    %v3026 = vrcp.pop %v3025
    %v3027 = vmul.f32 %v3024, %v3026
    %v3028 = vmul.f32 %v2950, %v3027
    %3029 = vst [vmem:[#allocation14] sm:$0xff] %v3028
    // Predicated region
    $region42: #{tpu_custom_call.1} parent=1 // pred_check
      _
    $region43: #{tpu_custom_call.1} parent=1 // pred_check_branch
      %3031 = sbr.rel (0) target = $region45
    $region44: #{tpu_custom_call.1} parent=1 // pred_region
      %s3033 = ssub.s32 128, 128
      %3034 = vsyncadd [#allocation7], %s3033
      %s3036 = sshll.u32 [#allocation14], 4
      %s3037 = int_to_ptr.vmem [resolvable:$true] %s3036
      %3039 = dma.vmem_to_hbm [thread:$0]  %s3037, 128, %s5, [#allocation7]
    $region45: #{tpu_custom_call.1} parent=1 // pred_fallthru
      _
    // Predicated region
    $region46: #{tpu_custom_call.1} parent=1 // pred_check
      _
    $region47: #{tpu_custom_call.1} parent=1 // pred_check_branch
      %3041 = sbr.rel (0) target = $region49
    $region48: #{tpu_custom_call.1} parent=1 // pred_region
      %3042 = dma.done [#allocation7], 128
    $region49: #{tpu_custom_call.1} parent=1 // pred_fallthru
      _
    %3043 = vsyncpa [#allocation6], 1
    %3044 = vsyncpa [#allocation9], 1
    %3045 = vsyncpa [#allocation12], 1
    %3046 = vsyncpa [#allocation7], 1

</llo_original>
